<compile_context>
chip_gen: v6e
topology: v6e:2x2x1
jax: 0.10.0
libtpu: 0.0.40
codegen_flags: <defaults>
</compile_context>

<pallas_src>
import functools
import math

import jax
import jax.numpy as jnp
from jax.experimental import pallas as pl
from jax.experimental.pallas import tpu as pltpu

VMEM = pltpu.MemorySpace.VMEM


# ------------------------------ fused kernel -------------------------------

def _fused_forward_kernel(
    # data inputs (batch already folded)
    hist_ref, xk_ref, temb_ref, mask_ref,
    # weights (whole-array, VMEM resident)
    w_in_ref, b_in_ref, conv_w_ref, conv_b_ref,
    w_att_ref, b_att_ref,
    w_qkv_ref, b_qkv_ref, w_o_ref, b_o_ref,
    ln1_g_ref, ln1_b_ref,
    w_ff1_ref, b_ff1_ref, w_ff2_ref, b_ff2_ref,
    ln2_g_ref, ln2_b_ref,
    fc_w1_x_ref, fc_w1_c_ref, fc_w1_t_ref, fc_b1_ref,
    fc_w2_ref, fc_b2_ref,
    # output
    out_ref,
    *, b, n, l, h, ksize, dilations, num_heads):
    f32 = jnp.float32
    bn = b * n
    bnl = bn * l

    # ------------- AttDCNN: input projection (F -> H) + ReLU ----------------
    # hist_ref is already (B*N*L, F) so no in-kernel relayout is needed.
    hflat = jnp.maximum(
        jnp.dot(hist_ref[...], w_in_ref[...], preferred_element_type=f32)
        + b_in_ref[...], 0.0)                                    # (B*N*L, H)

    # ------------- stacked causal dilated convs ------------------------------
    # K taps folded into the contraction dim: one (B*N*L, K*H) @ (K*H, H)
    # matmul per layer; causal zero-prefix kept in vregs (no VMEM scratch).
    for layer, dil in enumerate(dilations):
        pad = (ksize - 1) * dil
        x3 = hflat.reshape(bn, l, h)
        xp = jnp.concatenate([jnp.zeros((bn, pad, h), f32), x3], axis=1)
        xw = jnp.concatenate(
            [xp[:, k * dil:k * dil + l, :] for k in range(ksize)], axis=-1)
        hflat = jnp.maximum(
            jnp.dot(xw.reshape(bnl, ksize * h), conv_w_ref[layer],
                    preferred_element_type=f32) + conv_b_ref[layer], 0.0)

    # ------------------- attention pooling over time -------------------------
    h3 = hflat.reshape(bn, l, h)
    sc = jnp.sum(h3 * w_att_ref[...].reshape(1, 1, h), axis=-1) + b_att_ref[...]
    sc = sc - jnp.max(sc, axis=-1, keepdims=True)
    e = jnp.exp(sc)
    p = e * pl.reciprocal(jnp.sum(e, axis=-1, keepdims=True), approx=True)
    cond = jnp.einsum('bql,blh->bqh', p.reshape(bn, 1, l), h3,
                      preferred_element_type=f32).reshape(bn, h)  # (B*N, H)

    # ---------------- MaskedRelationalTransformer ----------------------------
    dh = h // num_heads
    scale = 1.0 / math.sqrt(dh)
    qkv = jnp.dot(cond, w_qkv_ref[...], preferred_element_type=f32) + b_qkv_ref[...]
    q3 = qkv[:, 0 * h:1 * h].reshape(b, n, h)
    k3 = qkv[:, 1 * h:2 * h].reshape(b, n, h)
    v3 = qkv[:, 2 * h:3 * h].reshape(b, n, h)

    def split_heads(x3d):   # (B, N, H) -> (num_heads*B, N, dh), head-major stack
        return jnp.concatenate(
            [x3d[:, :, i * dh:(i + 1) * dh] for i in range(num_heads)], axis=0)

    qs, ks, vs = split_heads(q3), split_heads(k3), split_heads(v3)
    s = jnp.einsum('gnd,gmd->gnm', qs, ks, preferred_element_type=f32) * scale
    s = jnp.where(mask_ref[...][None, :, :] > 0.5, s, jnp.float32(-1e9))
    s = s - jnp.max(s, axis=-1, keepdims=True)
    es = jnp.exp(s)
    ps = es * pl.reciprocal(jnp.sum(es, axis=-1, keepdims=True), approx=True)
    ov = jnp.einsum('gnm,gmd->gnd', ps, vs, preferred_element_type=f32)
    o = jnp.concatenate([ov[i * b:(i + 1) * b] for i in range(num_heads)],
                        axis=-1)                                   # (B, N, H)
    attn = jnp.dot(o.reshape(bn, h), w_o_ref[...],
                   preferred_element_type=f32) + b_o_ref[...]

    def _ln(z, g_ref, bias_ref):
        mu = jnp.mean(z, axis=-1, keepdims=True)
        var = jnp.mean((z - mu) ** 2, axis=-1, keepdims=True)
        return (z - mu) * jax.lax.rsqrt(var + 1e-5) * g_ref[...] + bias_ref[...]

    y = _ln(cond + attn, ln1_g_ref, ln1_b_ref)
    ff = jnp.maximum(
        jnp.dot(y, w_ff1_ref[...], preferred_element_type=f32) + b_ff1_ref[...], 0.0)
    ff = jnp.dot(ff, w_ff2_ref[...], preferred_element_type=f32) + b_ff2_ref[...]
    cond = _ln(y + ff, ln2_g_ref, ln2_b_ref)                       # (B*N, H)

    # ------- [x_k | cond | temb] @ fc_w1 (concat folded into a split of W1) --
    pre = (jnp.dot(cond, fc_w1_c_ref[...], preferred_element_type=f32)
           + jnp.dot(temb_ref[...], fc_w1_t_ref[...], preferred_element_type=f32)
           + xk_ref[...] * fc_w1_x_ref[...]
           + fc_b1_ref[...])
    hid = jnp.maximum(pre, 0.0)                                    # (B*N, H)
    # final H->1 projection emitted lane-dense as one (1, B*N) row
    out_row = jax.lax.dot_general(fc_w2_ref[...], hid, (((1,), (1,)), ((), ())),
                                  preferred_element_type=f32) + fc_b2_ref[...]
    out_ref[...] = out_row


# ------------------------------ plain-JAX glue ------------------------------

def get_timestep_embedding(t, dim):
    half = dim // 2
    freq = jnp.exp(-math.log(10000.0) / (half - 1) * jnp.arange(half, dtype=jnp.float32))
    args = t.astype(jnp.float32)[:, None] * freq[None, :]
    emb = jnp.concatenate([jnp.sin(args), jnp.cos(args)], axis=-1)
    if dim % 2 == 1:
        emb = jnp.pad(emb, ((0, 0), (0, 1)))
    return emb


def init_params(key, input_dim, hidden_dim, kernel_size, dilation_rates, num_heads):
    del num_heads
    keys = iter(jax.random.split(key, 32))

    def dense(k, fan_in, fan_out):
        w = jax.random.normal(k, (fan_in, fan_out), jnp.float32) * 0.05
        return w, jnp.zeros((fan_out,), jnp.float32)

    p = {}
    p['w_in'], p['b_in'] = dense(next(keys), input_dim, hidden_dim)
    p['convs'] = []
    for _ in dilation_rates:
        w = jax.random.normal(next(keys), (kernel_size, hidden_dim, hidden_dim),
                              jnp.float32) * 0.05
        p['convs'].append((w, jnp.zeros((hidden_dim,), jnp.float32)))
    p['w_att'], p['b_att'] = dense(next(keys), hidden_dim, 1)
    for name in ('q', 'k', 'v', 'o'):
        p[f'w_{name}'], p[f'b_{name}'] = dense(next(keys), hidden_dim, hidden_dim)
    p['ln1_g'] = jnp.ones((hidden_dim,), jnp.float32)
    p['ln1_b'] = jnp.zeros((hidden_dim,), jnp.float32)
    p['w_ff1'], p['b_ff1'] = dense(next(keys), hidden_dim, hidden_dim)
    p['w_ff2'], p['b_ff2'] = dense(next(keys), hidden_dim, hidden_dim)
    p['ln2_g'] = jnp.ones((hidden_dim,), jnp.float32)
    p['ln2_b'] = jnp.zeros((hidden_dim,), jnp.float32)
    p['fc_w1'], p['fc_b1'] = dense(next(keys), 1 + 2 * hidden_dim, hidden_dim)
    p['fc_w2'], p['fc_b2'] = dense(next(keys), hidden_dim, 1)
    return p


def _prepare_weights(params, kernel_size):
    """One-time layout prep: tap folding, merged QKV, bias reshapes, fc_w1 split."""
    H = params['w_in'].shape[1]
    K = kernel_size
    w = {}
    w['w_in'] = params['w_in']
    w['b_in'] = params['b_in'].reshape(1, H)
    # (num_layers, K*H, H): taps stacked along the contraction dim
    w['conv_w'] = jnp.stack([cw.reshape(K * H, H) for cw, _ in params['convs']])
    w['conv_b'] = jnp.stack([cb for _, cb in params['convs']]).reshape(-1, 1, H)
    w['w_att'] = params['w_att'].reshape(1, H)
    w['b_att'] = params['b_att'].reshape(1, 1)
    w['w_qkv'] = jnp.concatenate([params['w_q'], params['w_k'], params['w_v']], axis=1)
    w['b_qkv'] = jnp.concatenate(
        [params['b_q'], params['b_k'], params['b_v']]).reshape(1, 3 * H)
    w['w_o'] = params['w_o']
    w['b_o'] = params['b_o'].reshape(1, H)
    w['ln1_g'] = params['ln1_g'].reshape(1, H)
    w['ln1_b'] = params['ln1_b'].reshape(1, H)
    w['w_ff1'], w['b_ff1'] = params['w_ff1'], params['b_ff1'].reshape(1, H)
    w['w_ff2'], w['b_ff2'] = params['w_ff2'], params['b_ff2'].reshape(1, H)
    w['ln2_g'] = params['ln2_g'].reshape(1, H)
    w['ln2_b'] = params['ln2_b'].reshape(1, H)
    fc_w1 = params['fc_w1']                     # (1 + 2H, H); order [x_k | cond | temb]
    w['fc_w1_x'] = fc_w1[0:1, :]
    w['fc_w1_c'] = fc_w1[1:1 + H, :]
    w['fc_w1_t'] = fc_w1[1 + H:, :]
    w['fc_b1'] = params['fc_b1'].reshape(1, H)
    w['fc_w2'] = params['fc_w2'].reshape(1, H)
    w['fc_b2'] = params['fc_b2'].reshape(1, 1)
    return w


def conditional_diffusion_forward(params, x_k, hist, relation_mask, t, *,
                                  kernel_size, dilation_rates, num_heads):
    B, N, L, F = hist.shape
    H = params['w_in'].shape[1]

    w = _prepare_weights(params, kernel_size)
    temb = get_timestep_embedding(t, H)                                   # (B, H)
    temb_full = jnp.broadcast_to(temb[:, None, :], (B, N, H)).reshape(B * N, H)
    hist2 = hist.reshape(B * N * L, F)         # free HBM reshape; kernel sees it flat
    xk2 = x_k.reshape(B * N, 1)
    mask = relation_mask.astype(jnp.float32)

    kern = functools.partial(
        _fused_forward_kernel, b=B, n=N, l=L, h=H, ksize=kernel_size,
        dilations=tuple(dilation_rates), num_heads=num_heads)

    args = (
        hist2, xk2, temb_full, mask,
        w['w_in'], w['b_in'], w['conv_w'], w['conv_b'],
        w['w_att'], w['b_att'],
        w['w_qkv'], w['b_qkv'], w['w_o'], w['b_o'],
        w['ln1_g'], w['ln1_b'],
        w['w_ff1'], w['b_ff1'], w['w_ff2'], w['b_ff2'],
        w['ln2_g'], w['ln2_b'],
        w['fc_w1_x'], w['fc_w1_c'], w['fc_w1_t'], w['fc_b1'],
        w['fc_w2'], w['fc_b2'])

    # Single invocation (empty grid): whole problem fits trivially in VMEM and
    # per-grid-step overhead would rival the compute.
    out = pl.pallas_call(
        kern,
        out_shape=jax.ShapeDtypeStruct((1, B * N), jnp.float32),
        in_specs=[pl.BlockSpec(memory_space=VMEM) for _ in args],
        out_specs=pl.BlockSpec(memory_space=VMEM),
    )(*args)

    return out.reshape(B, N, 1)


# ----------------------------------- main -----------------------------------

if __name__ == "__main__":
    INPUT_DIM, HIDDEN_DIM = 4, 32
    KERNEL_SIZE, DILATIONS, NUM_HEADS = 3, (1, 2, 4), 4
    B, N, L = 2, 8, 8

    key = jax.random.PRNGKey(0)
    kp, kx, kh, km, kt = jax.random.split(key, 5)

    params = init_params(kp, INPUT_DIM, HIDDEN_DIM, KERNEL_SIZE, DILATIONS, NUM_HEADS)

    x_k = jax.random.normal(kx, (B, N, 1), jnp.float32)
    historical_data = jax.random.normal(kh, (B, N, L, INPUT_DIM), jnp.float32)
    relation_mask = (jax.random.uniform(km, (N, N)) > 0.5).astype(jnp.float32)
    relation_mask = jnp.maximum(relation_mask, jnp.eye(N, dtype=jnp.float32))
    t = jax.random.randint(kt, (B,), 0, 1000)

    noise_pred = conditional_diffusion_forward(
        params, x_k, historical_data, relation_mask, t,
        kernel_size=KERNEL_SIZE, dilation_rates=DILATIONS, num_heads=NUM_HEADS)
    noise_pred = jax.block_until_ready(noise_pred)

    assert noise_pred.shape == (B, N, 1)
    assert bool(jnp.all(jnp.isfinite(noise_pred)))
    print("KERNEL_OK")
</pallas_src>

<mosaic_0001>
module attributes {stable_mosaic.version = 11 : i64} {
  func.func @_fused_forward_kernel(%arg0: memref<128x4xf32, #tpu.memory_space<vmem>>, %arg1: memref<16x1xf32, #tpu.memory_space<vmem>>, %arg2: memref<16x32xf32, #tpu.memory_space<vmem>>, %arg3: memref<8x8xf32, #tpu.memory_space<vmem>>, %arg4: memref<4x32xf32, #tpu.memory_space<vmem>>, %arg5: memref<1x32xf32, #tpu.memory_space<vmem>>, %arg6: memref<3x96x32xf32, #tpu.memory_space<vmem>>, %arg7: memref<3x1x32xf32, #tpu.memory_space<vmem>>, %arg8: memref<1x32xf32, #tpu.memory_space<vmem>>, %arg9: memref<1x1xf32, #tpu.memory_space<vmem>>, %arg10: memref<32x96xf32, #tpu.memory_space<vmem>>, %arg11: memref<1x96xf32, #tpu.memory_space<vmem>>, %arg12: memref<32x32xf32, #tpu.memory_space<vmem>>, %arg13: memref<1x32xf32, #tpu.memory_space<vmem>>, %arg14: memref<1x32xf32, #tpu.memory_space<vmem>>, %arg15: memref<1x32xf32, #tpu.memory_space<vmem>>, %arg16: memref<32x32xf32, #tpu.memory_space<vmem>>, %arg17: memref<1x32xf32, #tpu.memory_space<vmem>>, %arg18: memref<32x32xf32, #tpu.memory_space<vmem>>, %arg19: memref<1x32xf32, #tpu.memory_space<vmem>>, %arg20: memref<1x32xf32, #tpu.memory_space<vmem>>, %arg21: memref<1x32xf32, #tpu.memory_space<vmem>>, %arg22: memref<1x32xf32, #tpu.memory_space<vmem>>, %arg23: memref<32x32xf32, #tpu.memory_space<vmem>>, %arg24: memref<32x32xf32, #tpu.memory_space<vmem>>, %arg25: memref<1x32xf32, #tpu.memory_space<vmem>>, %arg26: memref<1x32xf32, #tpu.memory_space<vmem>>, %arg27: memref<1x1xf32, #tpu.memory_space<vmem>>, %arg28: memref<1x16xf32, #tpu.memory_space<vmem>>) attributes {dimension_semantics = [], scalar_prefetch = 0 : i64, scratch_operands = 0 : i64, tpu.core_type = #tpu.core_type<tc>} {
    %c0 = arith.constant 0 : index
    %c0_0 = arith.constant 0 : index
    %0 = vector.load %arg0[%c0, %c0_0] : memref<128x4xf32, #tpu.memory_space<vmem>>, vector<128x4xf32>
    %c0_1 = arith.constant 0 : index
    %c0_2 = arith.constant 0 : index
    %1 = vector.load %arg4[%c0_1, %c0_2] : memref<4x32xf32, #tpu.memory_space<vmem>>, vector<4x32xf32>
    %cst = arith.constant dense<0.000000e+00> : vector<128x32xf32>
    %2 = tpu.matmul %0, %1, %cst {dimension_numbers = #tpu.dot_dimension_numbers<[1], [0], [0], [1], [0, 0, 1, 1], [], []>} : vector<128x4xf32>, vector<4x32xf32>, vector<128x32xf32> -> vector<128x32xf32>
    %c0_3 = arith.constant 0 : index
    %c0_4 = arith.constant 0 : index
    %3 = vector.load %arg5[%c0_3, %c0_4] : memref<1x32xf32, #tpu.memory_space<vmem>>, vector<1x32xf32>
    %4 = vector.broadcast %3 : vector<1x32xf32> to vector<128x32xf32>
    %5 = arith.addf %2, %4 : vector<128x32xf32>
    %cst_5 = arith.constant 0.000000e+00 : f32
    %6 = vector.broadcast %cst_5 : f32 to vector<128x32xf32>
    %7 = arith.maximumf %5, %6 : vector<128x32xf32>
    %8 = vector.shape_cast %7 : vector<128x32xf32> to vector<16x8x32xf32>
    %cst_6 = arith.constant 0.000000e+00 : f32
    %9 = vector.broadcast %cst_6 : f32 to vector<16x2x32xf32>
    %10 = tpu.concatenate %9, %8 in 1 : vector<16x2x32xf32>, vector<16x8x32xf32> -> vector<16x10x32xf32>
    %11 = vector.extract_strided_slice %10 {offsets = [0, 0, 0], sizes = [16, 8, 32], strides = [1, 1, 1]} : vector<16x10x32xf32> to vector<16x8x32xf32>
    %12 = vector.extract_strided_slice %10 {offsets = [0, 1, 0], sizes = [16, 8, 32], strides = [1, 1, 1]} : vector<16x10x32xf32> to vector<16x8x32xf32>
    %13 = vector.extract_strided_slice %10 {offsets = [0, 2, 0], sizes = [16, 8, 32], strides = [1, 1, 1]} : vector<16x10x32xf32> to vector<16x8x32xf32>
    %14 = tpu.concatenate %11, %12, %13 in 2 : vector<16x8x32xf32>, vector<16x8x32xf32>, vector<16x8x32xf32> -> vector<16x8x96xf32>
    %15 = vector.shape_cast %14 : vector<16x8x96xf32> to vector<128x96xf32>
    %c0_7 = arith.constant 0 : index
    %c0_8 = arith.constant 0 : index
    %c0_9 = arith.constant 0 : index
    %16 = vector.load %arg6[%c0_7, %c0_8, %c0_9] : memref<3x96x32xf32, #tpu.memory_space<vmem>>, vector<1x96x32xf32>
    %17 = vector.shape_cast %16 : vector<1x96x32xf32> to vector<96x32xf32>
    %cst_10 = arith.constant dense<0.000000e+00> : vector<128x32xf32>
    %18 = tpu.matmul %15, %17, %cst_10 {dimension_numbers = #tpu.dot_dimension_numbers<[1], [0], [0], [1], [0, 0, 1, 1], [], []>} : vector<128x96xf32>, vector<96x32xf32>, vector<128x32xf32> -> vector<128x32xf32>
    %c0_11 = arith.constant 0 : index
    %c0_12 = arith.constant 0 : index
    %c0_13 = arith.constant 0 : index
    %19 = vector.load %arg7[%c0_11, %c0_12, %c0_13] : memref<3x1x32xf32, #tpu.memory_space<vmem>>, vector<1x1x32xf32>
    %20 = vector.shape_cast %19 : vector<1x1x32xf32> to vector<1x32xf32>
    %21 = vector.broadcast %20 : vector<1x32xf32> to vector<128x32xf32>
    %22 = arith.addf %18, %21 : vector<128x32xf32>
    %cst_14 = arith.constant 0.000000e+00 : f32
    %23 = vector.broadcast %cst_14 : f32 to vector<128x32xf32>
    %24 = arith.maximumf %22, %23 : vector<128x32xf32>
    %25 = vector.shape_cast %24 : vector<128x32xf32> to vector<16x8x32xf32>
    %cst_15 = arith.constant 0.000000e+00 : f32
    %26 = vector.broadcast %cst_15 : f32 to vector<16x4x32xf32>
    %27 = tpu.concatenate %26, %25 in 1 : vector<16x4x32xf32>, vector<16x8x32xf32> -> vector<16x12x32xf32>
    %28 = vector.extract_strided_slice %27 {offsets = [0, 0, 0], sizes = [16, 8, 32], strides = [1, 1, 1]} : vector<16x12x32xf32> to vector<16x8x32xf32>
    %29 = vector.extract_strided_slice %27 {offsets = [0, 2, 0], sizes = [16, 8, 32], strides = [1, 1, 1]} : vector<16x12x32xf32> to vector<16x8x32xf32>
    %30 = vector.extract_strided_slice %27 {offsets = [0, 4, 0], sizes = [16, 8, 32], strides = [1, 1, 1]} : vector<16x12x32xf32> to vector<16x8x32xf32>
    %31 = tpu.concatenate %28, %29, %30 in 2 : vector<16x8x32xf32>, vector<16x8x32xf32>, vector<16x8x32xf32> -> vector<16x8x96xf32>
    %32 = vector.shape_cast %31 : vector<16x8x96xf32> to vector<128x96xf32>
    %c1 = arith.constant 1 : index
    %c0_16 = arith.constant 0 : index
    %c0_17 = arith.constant 0 : index
    %33 = vector.load %arg6[%c1, %c0_16, %c0_17] : memref<3x96x32xf32, #tpu.memory_space<vmem>>, vector<1x96x32xf32>
    %34 = vector.shape_cast %33 : vector<1x96x32xf32> to vector<96x32xf32>
    %cst_18 = arith.constant dense<0.000000e+00> : vector<128x32xf32>
    %35 = tpu.matmul %32, %34, %cst_18 {dimension_numbers = #tpu.dot_dimension_numbers<[1], [0], [0], [1], [0, 0, 1, 1], [], []>} : vector<128x96xf32>, vector<96x32xf32>, vector<128x32xf32> -> vector<128x32xf32>
    %c1_19 = arith.constant 1 : index
    %c0_20 = arith.constant 0 : index
    %c0_21 = arith.constant 0 : index
    %36 = vector.load %arg7[%c1_19, %c0_20, %c0_21] : memref<3x1x32xf32, #tpu.memory_space<vmem>>, vector<1x1x32xf32>
    %37 = vector.shape_cast %36 : vector<1x1x32xf32> to vector<1x32xf32>
    %38 = vector.broadcast %37 : vector<1x32xf32> to vector<128x32xf32>
    %39 = arith.addf %35, %38 : vector<128x32xf32>
    %cst_22 = arith.constant 0.000000e+00 : f32
    %40 = vector.broadcast %cst_22 : f32 to vector<128x32xf32>
    %41 = arith.maximumf %39, %40 : vector<128x32xf32>
    %42 = vector.shape_cast %41 : vector<128x32xf32> to vector<16x8x32xf32>
    %cst_23 = arith.constant 0.000000e+00 : f32
    %43 = vector.broadcast %cst_23 : f32 to vector<16x8x32xf32>
    %44 = tpu.concatenate %43, %42 in 1 : vector<16x8x32xf32>, vector<16x8x32xf32> -> vector<16x16x32xf32>
    %45 = vector.extract_strided_slice %44 {offsets = [0, 0, 0], sizes = [16, 8, 32], strides = [1, 1, 1]} : vector<16x16x32xf32> to vector<16x8x32xf32>
    %46 = vector.extract_strided_slice %44 {offsets = [0, 4, 0], sizes = [16, 8, 32], strides = [1, 1, 1]} : vector<16x16x32xf32> to vector<16x8x32xf32>
    %47 = vector.extract_strided_slice %44 {offsets = [0, 8, 0], sizes = [16, 8, 32], strides = [1, 1, 1]} : vector<16x16x32xf32> to vector<16x8x32xf32>
    %48 = tpu.concatenate %45, %46, %47 in 2 : vector<16x8x32xf32>, vector<16x8x32xf32>, vector<16x8x32xf32> -> vector<16x8x96xf32>
    %49 = vector.shape_cast %48 : vector<16x8x96xf32> to vector<128x96xf32>
    %c2 = arith.constant 2 : index
    %c0_24 = arith.constant 0 : index
    %c0_25 = arith.constant 0 : index
    %50 = vector.load %arg6[%c2, %c0_24, %c0_25] : memref<3x96x32xf32, #tpu.memory_space<vmem>>, vector<1x96x32xf32>
    %51 = vector.shape_cast %50 : vector<1x96x32xf32> to vector<96x32xf32>
    %cst_26 = arith.constant dense<0.000000e+00> : vector<128x32xf32>
    %52 = tpu.matmul %49, %51, %cst_26 {dimension_numbers = #tpu.dot_dimension_numbers<[1], [0], [0], [1], [0, 0, 1, 1], [], []>} : vector<128x96xf32>, vector<96x32xf32>, vector<128x32xf32> -> vector<128x32xf32>
    %c2_27 = arith.constant 2 : index
    %c0_28 = arith.constant 0 : index
    %c0_29 = arith.constant 0 : index
    %53 = vector.load %arg7[%c2_27, %c0_28, %c0_29] : memref<3x1x32xf32, #tpu.memory_space<vmem>>, vector<1x1x32xf32>
    %54 = vector.shape_cast %53 : vector<1x1x32xf32> to vector<1x32xf32>
    %55 = vector.broadcast %54 : vector<1x32xf32> to vector<128x32xf32>
    %56 = arith.addf %52, %55 : vector<128x32xf32>
    %cst_30 = arith.constant 0.000000e+00 : f32
    %57 = vector.broadcast %cst_30 : f32 to vector<128x32xf32>
    %58 = arith.maximumf %56, %57 : vector<128x32xf32>
    %59 = vector.shape_cast %58 : vector<128x32xf32> to vector<16x8x32xf32>
    %c0_31 = arith.constant 0 : index
    %c0_32 = arith.constant 0 : index
    %60 = vector.load %arg8[%c0_31, %c0_32] : memref<1x32xf32, #tpu.memory_space<vmem>>, vector<1x32xf32>
    %61 = vector.shape_cast %60 : vector<1x32xf32> to vector<1x1x32xf32>
    %62 = vector.broadcast %61 : vector<1x1x32xf32> to vector<16x8x32xf32>
    %63 = arith.mulf %59, %62 : vector<16x8x32xf32>
    %cst_33 = arith.constant dense<0.000000e+00> : vector<16x8xf32>
    %64 = vector.multi_reduction <add>, %63, %cst_33 [2] : vector<16x8x32xf32> to vector<16x8xf32>
    %c0_34 = arith.constant 0 : index
    %c0_35 = arith.constant 0 : index
    %65 = vector.load %arg9[%c0_34, %c0_35] : memref<1x1xf32, #tpu.memory_space<vmem>>, vector<1x1xf32>
    %66 = vector.broadcast %65 : vector<1x1xf32> to vector<16x8xf32>
    %67 = arith.addf %64, %66 : vector<16x8xf32>
    %cst_36 = arith.constant dense<0xFF800000> : vector<16xf32>
    %68 = vector.multi_reduction <maximumf>, %67, %cst_36 [1] : vector<16x8xf32> to vector<16xf32>
    %69 = vector.shape_cast %68 : vector<16xf32> to vector<16x1xf32>
    %70 = vector.broadcast %69 : vector<16x1xf32> to vector<16x8xf32>
    %71 = arith.subf %67, %70 : vector<16x8xf32>
    %72 = math.exp %71 : vector<16x8xf32>
    %cst_37 = arith.constant dense<0.000000e+00> : vector<16xf32>
    %73 = vector.multi_reduction <add>, %72, %cst_37 [1] : vector<16x8xf32> to vector<16xf32>
    %74 = vector.shape_cast %73 : vector<16xf32> to vector<16x1xf32>
    %75 = tpu.reciprocal %74 {approx = true} : vector<16x1xf32> -> vector<16x1xf32>
    %76 = vector.broadcast %75 : vector<16x1xf32> to vector<16x8xf32>
    %77 = arith.mulf %72, %76 : vector<16x8xf32>
    %78 = vector.shape_cast %77 : vector<16x8xf32> to vector<16x1x8xf32>
    "tpu.trace_start"() <{level = 10 : i32, message = "bql,blh->bqh"}> : () -> ()
    %cst_38 = arith.constant dense<0.000000e+00> : vector<16x1x32xf32>
    %79 = tpu.matmul %78, %59, %cst_38 {dimension_numbers = #tpu.dot_dimension_numbers<[2], [1], [1], [2], [0, 0, 0, 1, 1, 2], [0], [0]>} : vector<16x1x8xf32>, vector<16x8x32xf32>, vector<16x1x32xf32> -> vector<16x1x32xf32>
    "tpu.trace_stop"() : () -> ()
    %80 = vector.shape_cast %79 : vector<16x1x32xf32> to vector<16x32xf32>
    %c0_39 = arith.constant 0 : index
    %c0_40 = arith.constant 0 : index
    %81 = vector.load %arg10[%c0_39, %c0_40] : memref<32x96xf32, #tpu.memory_space<vmem>>, vector<32x96xf32>
    %cst_41 = arith.constant dense<0.000000e+00> : vector<16x96xf32>
    %82 = tpu.matmul %80, %81, %cst_41 {dimension_numbers = #tpu.dot_dimension_numbers<[1], [0], [0], [1], [0, 0, 1, 1], [], []>} : vector<16x32xf32>, vector<32x96xf32>, vector<16x96xf32> -> vector<16x96xf32>
    %c0_42 = arith.constant 0 : index
    %c0_43 = arith.constant 0 : index
    %83 = vector.load %arg11[%c0_42, %c0_43] : memref<1x96xf32, #tpu.memory_space<vmem>>, vector<1x96xf32>
    %84 = vector.broadcast %83 : vector<1x96xf32> to vector<16x96xf32>
    %85 = arith.addf %82, %84 : vector<16x96xf32>
    %86 = vector.extract_strided_slice %85 {offsets = [0, 0], sizes = [16, 32], strides = [1, 1]} : vector<16x96xf32> to vector<16x32xf32>
    %87 = vector.shape_cast %86 : vector<16x32xf32> to vector<2x8x32xf32>
    %88 = vector.extract_strided_slice %85 {offsets = [0, 32], sizes = [16, 32], strides = [1, 1]} : vector<16x96xf32> to vector<16x32xf32>
    %89 = vector.shape_cast %88 : vector<16x32xf32> to vector<2x8x32xf32>
    %90 = vector.extract_strided_slice %85 {offsets = [0, 64], sizes = [16, 32], strides = [1, 1]} : vector<16x96xf32> to vector<16x32xf32>
    %91 = vector.shape_cast %90 : vector<16x32xf32> to vector<2x8x32xf32>
    %92 = vector.extract_strided_slice %87 {offsets = [0, 0, 0], sizes = [2, 8, 8], strides = [1, 1, 1]} : vector<2x8x32xf32> to vector<2x8x8xf32>
    %93 = vector.extract_strided_slice %87 {offsets = [0, 0, 8], sizes = [2, 8, 8], strides = [1, 1, 1]} : vector<2x8x32xf32> to vector<2x8x8xf32>
    %94 = vector.extract_strided_slice %87 {offsets = [0, 0, 16], sizes = [2, 8, 8], strides = [1, 1, 1]} : vector<2x8x32xf32> to vector<2x8x8xf32>
    %95 = vector.extract_strided_slice %87 {offsets = [0, 0, 24], sizes = [2, 8, 8], strides = [1, 1, 1]} : vector<2x8x32xf32> to vector<2x8x8xf32>
    %96 = tpu.concatenate %92, %93, %94, %95 in 0 : vector<2x8x8xf32>, vector<2x8x8xf32>, vector<2x8x8xf32>, vector<2x8x8xf32> -> vector<8x8x8xf32>
    %97 = vector.extract_strided_slice %89 {offsets = [0, 0, 0], sizes = [2, 8, 8], strides = [1, 1, 1]} : vector<2x8x32xf32> to vector<2x8x8xf32>
    %98 = vector.extract_strided_slice %89 {offsets = [0, 0, 8], sizes = [2, 8, 8], strides = [1, 1, 1]} : vector<2x8x32xf32> to vector<2x8x8xf32>
    %99 = vector.extract_strided_slice %89 {offsets = [0, 0, 16], sizes = [2, 8, 8], strides = [1, 1, 1]} : vector<2x8x32xf32> to vector<2x8x8xf32>
    %100 = vector.extract_strided_slice %89 {offsets = [0, 0, 24], sizes = [2, 8, 8], strides = [1, 1, 1]} : vector<2x8x32xf32> to vector<2x8x8xf32>
    %101 = tpu.concatenate %97, %98, %99, %100 in 0 : vector<2x8x8xf32>, vector<2x8x8xf32>, vector<2x8x8xf32>, vector<2x8x8xf32> -> vector<8x8x8xf32>
    %102 = vector.extract_strided_slice %91 {offsets = [0, 0, 0], sizes = [2, 8, 8], strides = [1, 1, 1]} : vector<2x8x32xf32> to vector<2x8x8xf32>
    %103 = vector.extract_strided_slice %91 {offsets = [0, 0, 8], sizes = [2, 8, 8], strides = [1, 1, 1]} : vector<2x8x32xf32> to vector<2x8x8xf32>
    %104 = vector.extract_strided_slice %91 {offsets = [0, 0, 16], sizes = [2, 8, 8], strides = [1, 1, 1]} : vector<2x8x32xf32> to vector<2x8x8xf32>
    %105 = vector.extract_strided_slice %91 {offsets = [0, 0, 24], sizes = [2, 8, 8], strides = [1, 1, 1]} : vector<2x8x32xf32> to vector<2x8x8xf32>
    %106 = tpu.concatenate %102, %103, %104, %105 in 0 : vector<2x8x8xf32>, vector<2x8x8xf32>, vector<2x8x8xf32>, vector<2x8x8xf32> -> vector<8x8x8xf32>
    "tpu.trace_start"() <{level = 10 : i32, message = "gnd,gmd->gnm"}> : () -> ()
    %cst_44 = arith.constant dense<0.000000e+00> : vector<8x8x8xf32>
    %107 = tpu.matmul %96, %101, %cst_44 {dimension_numbers = #tpu.dot_dimension_numbers<[2], [2], [1], [1], [0, 0, 0, 1, 1, 1], [0], [0]>} : vector<8x8x8xf32>, vector<8x8x8xf32>, vector<8x8x8xf32> -> vector<8x8x8xf32>
    "tpu.trace_stop"() : () -> ()
    %cst_45 = arith.constant 0.353553385 : f32
    %108 = vector.broadcast %cst_45 : f32 to vector<8x8x8xf32>
    %109 = arith.mulf %107, %108 : vector<8x8x8xf32>
    %c0_46 = arith.constant 0 : index
    %c0_47 = arith.constant 0 : index
    %110 = vector.load %arg3[%c0_46, %c0_47] : memref<8x8xf32, #tpu.memory_space<vmem>>, vector<8x8xf32>
    %111 = vector.shape_cast %110 : vector<8x8xf32> to vector<1x8x8xf32>
    %cst_48 = arith.constant 5.000000e-01 : f32
    %112 = vector.broadcast %cst_48 : f32 to vector<1x8x8xf32>
    %113 = arith.cmpf ogt, %111, %112 : vector<1x8x8xf32>
    %cst_49 = arith.constant -1.000000e+09 : f32
    %114 = vector.shape_cast %113 : vector<1x8x8xi1> to vector<1x8x8xi1>
    %115 = vector.broadcast %114 : vector<1x8x8xi1> to vector<8x8x8xi1>
    %116 = vector.broadcast %cst_49 : f32 to vector<8x8x8xf32>
    %117 = arith.select %115, %109, %116 : vector<8x8x8xi1>, vector<8x8x8xf32>
    %cst_50 = arith.constant dense<0xFF800000> : vector<8x8xf32>
    %118 = vector.multi_reduction <maximumf>, %117, %cst_50 [2] : vector<8x8x8xf32> to vector<8x8xf32>
    %119 = vector.shape_cast %118 : vector<8x8xf32> to vector<8x8x1xf32>
    %120 = vector.broadcast %119 : vector<8x8x1xf32> to vector<8x8x8xf32>
    %121 = arith.subf %117, %120 : vector<8x8x8xf32>
    %122 = math.exp %121 : vector<8x8x8xf32>
    %cst_51 = arith.constant dense<0.000000e+00> : vector<8x8xf32>
    %123 = vector.multi_reduction <add>, %122, %cst_51 [2] : vector<8x8x8xf32> to vector<8x8xf32>
    %124 = vector.shape_cast %123 : vector<8x8xf32> to vector<8x8x1xf32>
    %125 = tpu.reciprocal %124 {approx = true} : vector<8x8x1xf32> -> vector<8x8x1xf32>
    %126 = vector.broadcast %125 : vector<8x8x1xf32> to vector<8x8x8xf32>
    %127 = arith.mulf %122, %126 : vector<8x8x8xf32>
    "tpu.trace_start"() <{level = 10 : i32, message = "gnm,gmd->gnd"}> : () -> ()
    %cst_52 = arith.constant dense<0.000000e+00> : vector<8x8x8xf32>
    %128 = tpu.matmul %127, %106, %cst_52 {dimension_numbers = #tpu.dot_dimension_numbers<[2], [1], [1], [2], [0, 0, 0, 1, 1, 2], [0], [0]>} : vector<8x8x8xf32>, vector<8x8x8xf32>, vector<8x8x8xf32> -> vector<8x8x8xf32>
    "tpu.trace_stop"() : () -> ()
    %129 = vector.extract_strided_slice %128 {offsets = [0, 0, 0], sizes = [2, 8, 8], strides = [1, 1, 1]} : vector<8x8x8xf32> to vector<2x8x8xf32>
    %130 = vector.extract_strided_slice %128 {offsets = [2, 0, 0], sizes = [2, 8, 8], strides = [1, 1, 1]} : vector<8x8x8xf32> to vector<2x8x8xf32>
    %131 = vector.extract_strided_slice %128 {offsets = [4, 0, 0], sizes = [2, 8, 8], strides = [1, 1, 1]} : vector<8x8x8xf32> to vector<2x8x8xf32>
    %132 = vector.extract_strided_slice %128 {offsets = [6, 0, 0], sizes = [2, 8, 8], strides = [1, 1, 1]} : vector<8x8x8xf32> to vector<2x8x8xf32>
    %133 = tpu.concatenate %129, %130, %131, %132 in 2 : vector<2x8x8xf32>, vector<2x8x8xf32>, vector<2x8x8xf32>, vector<2x8x8xf32> -> vector<2x8x32xf32>
    %134 = vector.shape_cast %133 : vector<2x8x32xf32> to vector<16x32xf32>
    %c0_53 = arith.constant 0 : index
    %c0_54 = arith.constant 0 : index
    %135 = vector.load %arg12[%c0_53, %c0_54] : memref<32x32xf32, #tpu.memory_space<vmem>>, vector<32x32xf32>
    %cst_55 = arith.constant dense<0.000000e+00> : vector<16x32xf32>
    %136 = tpu.matmul %134, %135, %cst_55 {dimension_numbers = #tpu.dot_dimension_numbers<[1], [0], [0], [1], [0, 0, 1, 1], [], []>} : vector<16x32xf32>, vector<32x32xf32>, vector<16x32xf32> -> vector<16x32xf32>
    %c0_56 = arith.constant 0 : index
    %c0_57 = arith.constant 0 : index
    %137 = vector.load %arg13[%c0_56, %c0_57] : memref<1x32xf32, #tpu.memory_space<vmem>>, vector<1x32xf32>
    %138 = vector.broadcast %137 : vector<1x32xf32> to vector<16x32xf32>
    %139 = arith.addf %136, %138 : vector<16x32xf32>
    %140 = arith.addf %80, %139 : vector<16x32xf32>
    %cst_58 = arith.constant dense<0.000000e+00> : vector<16xf32>
    %141 = vector.multi_reduction <add>, %140, %cst_58 [1] : vector<16x32xf32> to vector<16xf32>
    %142 = vector.shape_cast %141 : vector<16xf32> to vector<16x1xf32>
    %cst_59 = arith.constant 3.200000e+01 : f32
    %143 = vector.broadcast %cst_59 : f32 to vector<16x1xf32>
    %144 = arith.divf %142, %143 : vector<16x1xf32>
    %145 = vector.broadcast %144 : vector<16x1xf32> to vector<16x32xf32>
    %146 = arith.subf %140, %145 : vector<16x32xf32>
    %147 = arith.mulf %146, %146 : vector<16x32xf32>
    %cst_60 = arith.constant dense<0.000000e+00> : vector<16xf32>
    %148 = vector.multi_reduction <add>, %147, %cst_60 [1] : vector<16x32xf32> to vector<16xf32>
    %149 = vector.shape_cast %148 : vector<16xf32> to vector<16x1xf32>
    %cst_61 = arith.constant 3.200000e+01 : f32
    %150 = vector.broadcast %cst_61 : f32 to vector<16x1xf32>
    %151 = arith.divf %149, %150 : vector<16x1xf32>
    %152 = vector.broadcast %144 : vector<16x1xf32> to vector<16x32xf32>
    %153 = arith.subf %140, %152 : vector<16x32xf32>
    %cst_62 = arith.constant 9.99999974E-6 : f32
    %154 = vector.broadcast %cst_62 : f32 to vector<16x1xf32>
    %155 = arith.addf %151, %154 : vector<16x1xf32>
    %156 = math.rsqrt %155 : vector<16x1xf32>
    %157 = vector.broadcast %156 : vector<16x1xf32> to vector<16x32xf32>
    %158 = arith.mulf %153, %157 : vector<16x32xf32>
    %c0_63 = arith.constant 0 : index
    %c0_64 = arith.constant 0 : index
    %159 = vector.load %arg14[%c0_63, %c0_64] : memref<1x32xf32, #tpu.memory_space<vmem>>, vector<1x32xf32>
    %160 = vector.broadcast %159 : vector<1x32xf32> to vector<16x32xf32>
    %161 = arith.mulf %158, %160 : vector<16x32xf32>
    %c0_65 = arith.constant 0 : index
    %c0_66 = arith.constant 0 : index
    %162 = vector.load %arg15[%c0_65, %c0_66] : memref<1x32xf32, #tpu.memory_space<vmem>>, vector<1x32xf32>
    %163 = vector.broadcast %162 : vector<1x32xf32> to vector<16x32xf32>
    %164 = arith.addf %161, %163 : vector<16x32xf32>
    %c0_67 = arith.constant 0 : index
    %c0_68 = arith.constant 0 : index
    %165 = vector.load %arg16[%c0_67, %c0_68] : memref<32x32xf32, #tpu.memory_space<vmem>>, vector<32x32xf32>
    %cst_69 = arith.constant dense<0.000000e+00> : vector<16x32xf32>
    %166 = tpu.matmul %164, %165, %cst_69 {dimension_numbers = #tpu.dot_dimension_numbers<[1], [0], [0], [1], [0, 0, 1, 1], [], []>} : vector<16x32xf32>, vector<32x32xf32>, vector<16x32xf32> -> vector<16x32xf32>
    %c0_70 = arith.constant 0 : index
    %c0_71 = arith.constant 0 : index
    %167 = vector.load %arg17[%c0_70, %c0_71] : memref<1x32xf32, #tpu.memory_space<vmem>>, vector<1x32xf32>
    %168 = vector.broadcast %167 : vector<1x32xf32> to vector<16x32xf32>
    %169 = arith.addf %166, %168 : vector<16x32xf32>
    %cst_72 = arith.constant 0.000000e+00 : f32
    %170 = vector.broadcast %cst_72 : f32 to vector<16x32xf32>
    %171 = arith.maximumf %169, %170 : vector<16x32xf32>
    %c0_73 = arith.constant 0 : index
    %c0_74 = arith.constant 0 : index
    %172 = vector.load %arg18[%c0_73, %c0_74] : memref<32x32xf32, #tpu.memory_space<vmem>>, vector<32x32xf32>
    %cst_75 = arith.constant dense<0.000000e+00> : vector<16x32xf32>
    %173 = tpu.matmul %171, %172, %cst_75 {dimension_numbers = #tpu.dot_dimension_numbers<[1], [0], [0], [1], [0, 0, 1, 1], [], []>} : vector<16x32xf32>, vector<32x32xf32>, vector<16x32xf32> -> vector<16x32xf32>
    %c0_76 = arith.constant 0 : index
    %c0_77 = arith.constant 0 : index
    %174 = vector.load %arg19[%c0_76, %c0_77] : memref<1x32xf32, #tpu.memory_space<vmem>>, vector<1x32xf32>
    %175 = vector.broadcast %174 : vector<1x32xf32> to vector<16x32xf32>
    %176 = arith.addf %173, %175 : vector<16x32xf32>
    %177 = arith.addf %164, %176 : vector<16x32xf32>
    %cst_78 = arith.constant dense<0.000000e+00> : vector<16xf32>
    %178 = vector.multi_reduction <add>, %177, %cst_78 [1] : vector<16x32xf32> to vector<16xf32>
    %179 = vector.shape_cast %178 : vector<16xf32> to vector<16x1xf32>
    %cst_79 = arith.constant 3.200000e+01 : f32
    %180 = vector.broadcast %cst_79 : f32 to vector<16x1xf32>
    %181 = arith.divf %179, %180 : vector<16x1xf32>
    %182 = vector.broadcast %181 : vector<16x1xf32> to vector<16x32xf32>
    %183 = arith.subf %177, %182 : vector<16x32xf32>
    %184 = arith.mulf %183, %183 : vector<16x32xf32>
    %cst_80 = arith.constant dense<0.000000e+00> : vector<16xf32>
    %185 = vector.multi_reduction <add>, %184, %cst_80 [1] : vector<16x32xf32> to vector<16xf32>
    %186 = vector.shape_cast %185 : vector<16xf32> to vector<16x1xf32>
    %cst_81 = arith.constant 3.200000e+01 : f32
    %187 = vector.broadcast %cst_81 : f32 to vector<16x1xf32>
    %188 = arith.divf %186, %187 : vector<16x1xf32>
    %189 = vector.broadcast %181 : vector<16x1xf32> to vector<16x32xf32>
    %190 = arith.subf %177, %189 : vector<16x32xf32>
    %cst_82 = arith.constant 9.99999974E-6 : f32
    %191 = vector.broadcast %cst_82 : f32 to vector<16x1xf32>
    %192 = arith.addf %188, %191 : vector<16x1xf32>
    %193 = math.rsqrt %192 : vector<16x1xf32>
    %194 = vector.broadcast %193 : vector<16x1xf32> to vector<16x32xf32>
    %195 = arith.mulf %190, %194 : vector<16x32xf32>
    %c0_83 = arith.constant 0 : index
    %c0_84 = arith.constant 0 : index
    %196 = vector.load %arg20[%c0_83, %c0_84] : memref<1x32xf32, #tpu.memory_space<vmem>>, vector<1x32xf32>
    %197 = vector.broadcast %196 : vector<1x32xf32> to vector<16x32xf32>
    %198 = arith.mulf %195, %197 : vector<16x32xf32>
    %c0_85 = arith.constant 0 : index
    %c0_86 = arith.constant 0 : index
    %199 = vector.load %arg21[%c0_85, %c0_86] : memref<1x32xf32, #tpu.memory_space<vmem>>, vector<1x32xf32>
    %200 = vector.broadcast %199 : vector<1x32xf32> to vector<16x32xf32>
    %201 = arith.addf %198, %200 : vector<16x32xf32>
    %c0_87 = arith.constant 0 : index
    %c0_88 = arith.constant 0 : index
    %202 = vector.load %arg23[%c0_87, %c0_88] : memref<32x32xf32, #tpu.memory_space<vmem>>, vector<32x32xf32>
    %cst_89 = arith.constant dense<0.000000e+00> : vector<16x32xf32>
    %203 = tpu.matmul %201, %202, %cst_89 {dimension_numbers = #tpu.dot_dimension_numbers<[1], [0], [0], [1], [0, 0, 1, 1], [], []>} : vector<16x32xf32>, vector<32x32xf32>, vector<16x32xf32> -> vector<16x32xf32>
    %c0_90 = arith.constant 0 : index
    %c0_91 = arith.constant 0 : index
    %204 = vector.load %arg2[%c0_90, %c0_91] : memref<16x32xf32, #tpu.memory_space<vmem>>, vector<16x32xf32>
    %c0_92 = arith.constant 0 : index
    %c0_93 = arith.constant 0 : index
    %205 = vector.load %arg24[%c0_92, %c0_93] : memref<32x32xf32, #tpu.memory_space<vmem>>, vector<32x32xf32>
    %cst_94 = arith.constant dense<0.000000e+00> : vector<16x32xf32>
    %206 = tpu.matmul %204, %205, %cst_94 {dimension_numbers = #tpu.dot_dimension_numbers<[1], [0], [0], [1], [0, 0, 1, 1], [], []>} : vector<16x32xf32>, vector<32x32xf32>, vector<16x32xf32> -> vector<16x32xf32>
    %207 = arith.addf %203, %206 : vector<16x32xf32>
    %c0_95 = arith.constant 0 : index
    %c0_96 = arith.constant 0 : index
    %208 = vector.load %arg1[%c0_95, %c0_96] : memref<16x1xf32, #tpu.memory_space<vmem>>, vector<16x1xf32>
    %c0_97 = arith.constant 0 : index
    %c0_98 = arith.constant 0 : index
    %209 = vector.load %arg22[%c0_97, %c0_98] : memref<1x32xf32, #tpu.memory_space<vmem>>, vector<1x32xf32>
    %210 = vector.broadcast %208 : vector<16x1xf32> to vector<16x32xf32>
    %211 = vector.broadcast %209 : vector<1x32xf32> to vector<16x32xf32>
    %212 = arith.mulf %210, %211 : vector<16x32xf32>
    %213 = arith.addf %207, %212 : vector<16x32xf32>
    %c0_99 = arith.constant 0 : index
    %c0_100 = arith.constant 0 : index
    %214 = vector.load %arg25[%c0_99, %c0_100] : memref<1x32xf32, #tpu.memory_space<vmem>>, vector<1x32xf32>
    %215 = vector.broadcast %214 : vector<1x32xf32> to vector<16x32xf32>
    %216 = arith.addf %213, %215 : vector<16x32xf32>
    %cst_101 = arith.constant 0.000000e+00 : f32
    %217 = vector.broadcast %cst_101 : f32 to vector<16x32xf32>
    %218 = arith.maximumf %216, %217 : vector<16x32xf32>
    %c0_102 = arith.constant 0 : index
    %c0_103 = arith.constant 0 : index
    %219 = vector.load %arg26[%c0_102, %c0_103] : memref<1x32xf32, #tpu.memory_space<vmem>>, vector<1x32xf32>
    %cst_104 = arith.constant dense<0.000000e+00> : vector<1x16xf32>
    %220 = tpu.matmul %219, %218, %cst_104 {dimension_numbers = #tpu.dot_dimension_numbers<[1], [1], [0], [0], [0, 0, 1, 0], [], []>} : vector<1x32xf32>, vector<16x32xf32>, vector<1x16xf32> -> vector<1x16xf32>
    %c0_105 = arith.constant 0 : index
    %c0_106 = arith.constant 0 : index
    %221 = vector.load %arg27[%c0_105, %c0_106] : memref<1x1xf32, #tpu.memory_space<vmem>>, vector<1x1xf32>
    %222 = vector.broadcast %221 : vector<1x1xf32> to vector<1x16xf32>
    %223 = arith.addf %220, %222 : vector<1x16xf32>
    %c0_107 = arith.constant 0 : index
    %c0_108 = arith.constant 0 : index
    %224 = vector.load %arg28[%c0_107, %c0_108] : memref<1x16xf32, #tpu.memory_space<vmem>>, vector<1x16xf32>
    tpu.vector_store %arg28[%c0_107, %c0_108], %223 {strides = array<i32>} : memref<1x16xf32, #tpu.memory_space<vmem>>, vector<1x16xf32>,
    return
  }
}

</mosaic_0001>

<llo_original>
// kernel: tpu_custom_call.1
$region0: #{tpu_custom_call.1}
  #allocation0 [shape = 'u32[]', space=smem, size = 0x4, offset = 0x4, fixed_abs, tag = 'smem constant byte address 0x4 - core index']
  #allocation1 [shape = 'u32[144,128]{1,0:T(1,128)}', space=vmem, size = 0x12000, scoped, tag = 'internal scratch']
  #allocation2 [shape = 'f32[1,1]{1,0:T(1,128)S(1)}', space=vmem, size = 0x200, scoped, tag = 'scoped memory for tpu_custom_call.1']
  #allocation3 [shape = 'f32[1,1]{1,0:T(1,128)S(1)}', space=vmem, size = 0x200, scoped, tag = 'scoped memory for tpu_custom_call.1']
  %s0 = inlined_call_operand.vmem [shape: f32[128,4], index: 0, kind: input, shape index: {}]
  %s1 = inlined_call_operand.vmem [shape: f32[16,1], index: 1, kind: input, shape index: {}]
  %s2 = inlined_call_operand.vmem [shape: f32[16,32], index: 2, kind: input, shape index: {}]
  %s3 = inlined_call_operand.vmem [shape: f32[8,8], index: 3, kind: input, shape index: {}]
  %s4 = inlined_call_operand.vmem [shape: f32[4,32], index: 4, kind: input, shape index: {}]
  %s5 = inlined_call_operand.vmem [shape: f32[1,32], index: 5, kind: input, shape index: {}]
  %s6 = inlined_call_operand.vmem [shape: f32[3,96,32], index: 6, kind: input, shape index: {}]
  %s7 = inlined_call_operand.vmem [shape: f32[3,1,32], index: 7, kind: input, shape index: {}]
  %s8 = inlined_call_operand.vmem [shape: f32[1,32], index: 8, kind: input, shape index: {}]
  %s9 = inlined_call_operand.<no memory space> [shape: f32[1,1], index: 9, kind: input, shape index: {}]
  %s10 = inlined_call_operand.vmem [shape: f32[32,96], index: 10, kind: input, shape index: {}]
  %s11 = inlined_call_operand.vmem [shape: f32[1,96], index: 11, kind: input, shape index: {}]
  %s12 = inlined_call_operand.vmem [shape: f32[32,32], index: 12, kind: input, shape index: {}]
  %s13 = inlined_call_operand.vmem [shape: f32[1,32], index: 13, kind: input, shape index: {}]
  %s14 = inlined_call_operand.vmem [shape: f32[1,32], index: 14, kind: input, shape index: {}]
  %s15 = inlined_call_operand.vmem [shape: f32[1,32], index: 15, kind: input, shape index: {}]
  %s16 = inlined_call_operand.vmem [shape: f32[32,32], index: 16, kind: input, shape index: {}]
  %s17 = inlined_call_operand.vmem [shape: f32[1,32], index: 17, kind: input, shape index: {}]
  %s18 = inlined_call_operand.vmem [shape: f32[32,32], index: 18, kind: input, shape index: {}]
  %s19 = inlined_call_operand.vmem [shape: f32[1,32], index: 19, kind: input, shape index: {}]
  %s20 = inlined_call_operand.vmem [shape: f32[1,32], index: 20, kind: input, shape index: {}]
  %s21 = inlined_call_operand.vmem [shape: f32[1,32], index: 21, kind: input, shape index: {}]
  %s22 = inlined_call_operand.vmem [shape: f32[1,32], index: 22, kind: input, shape index: {}]
  %s23 = inlined_call_operand.vmem [shape: f32[32,32], index: 23, kind: input, shape index: {}]
  %s24 = inlined_call_operand.vmem [shape: f32[32,32], index: 24, kind: input, shape index: {}]
  %s25 = inlined_call_operand.vmem [shape: f32[1,32], index: 25, kind: input, shape index: {}]
  %s26 = inlined_call_operand.vmem [shape: f32[1,32], index: 26, kind: input, shape index: {}]
  %s27 = inlined_call_operand.<no memory space> [shape: f32[1,1], index: 27, kind: input, shape index: {}]
  %s28 = inlined_call_operand.hbm [shape: f32[1,16], index: 28, kind: output, shape index: {}]
  %s29 = sld [smem:[#allocation0]]
  $region122: #{tpu_custom_call.1} parent=0
    _
  %s31 = ssub.s32 1, %s29
  %s32 = scalar_select 0, %s31, %s29
  %v33 = vstv %s9
  %34 = vst [vmem:[#allocation2] sm:$0x1] %v33
  %v35 = vstv %s27
  %36 = vst [vmem:[#allocation3] sm:$0x1] %v35
  $region1: #{tpu_custom_call.1} parent=0
    #allocation4 [shape = 'u8[512]{0}', space=vmem, size = 0x400, scoped, tag = 'output window, operand 0, single buffered']
    #allocation5 [shape = 's32[1]{0}', space=sflag, size = 0x4, scoped, tag = 'scoped memory for tpu_custom_call.1']
    %37 = vsyncpa [#allocation5], 0
    // Predicated region
    $region2: #{tpu_custom_call.1} parent=1 // pred_check
      _
    $region3: #{tpu_custom_call.1} parent=1 // pred_check_branch
      %39 = sbr.rel (0) target = $region5
    $region4: #{tpu_custom_call.1} parent=1 // pred_region
      _
    $region5: #{tpu_custom_call.1} parent=1 // pred_fallthru
      _
    // Predicated region
    $region6: #{tpu_custom_call.1} parent=1 // pred_check
      _
    $region7: #{tpu_custom_call.1} parent=1 // pred_check_branch
      %41 = sbr.rel (0) target = $region9
    $region8: #{tpu_custom_call.1} parent=1 // pred_region
      _
    $region9: #{tpu_custom_call.1} parent=1 // pred_fallthru
      _
    // Predicated region
    $region10: #{tpu_custom_call.1} parent=1 // pred_check
      _
    $region11: #{tpu_custom_call.1} parent=1 // pred_check_branch
      %43 = sbr.rel (0) target = $region13
    $region12: #{tpu_custom_call.1} parent=1 // pred_region
      _
    $region13: #{tpu_custom_call.1} parent=1 // pred_fallthru
      _
    // Predicated region
    $region14: #{tpu_custom_call.1} parent=1 // pred_check
      _
    $region15: #{tpu_custom_call.1} parent=1 // pred_check_branch
      %45 = sbr.rel (0) target = $region17
    $region16: #{tpu_custom_call.1} parent=1 // pred_region
      _
    $region17: #{tpu_custom_call.1} parent=1 // pred_fallthru
      _
    // Predicated region
    $region18: #{tpu_custom_call.1} parent=1 // pred_check
      _
    $region19: #{tpu_custom_call.1} parent=1 // pred_check_branch
      %47 = sbr.rel (0) target = $region21
    $region20: #{tpu_custom_call.1} parent=1 // pred_region
      _
    $region21: #{tpu_custom_call.1} parent=1 // pred_fallthru
      _
    // Predicated region
    $region22: #{tpu_custom_call.1} parent=1 // pred_check
      _
    $region23: #{tpu_custom_call.1} parent=1 // pred_check_branch
      %49 = sbr.rel (0) target = $region25
    $region24: #{tpu_custom_call.1} parent=1 // pred_region
      _
    $region25: #{tpu_custom_call.1} parent=1 // pred_fallthru
      _
    // Predicated region
    $region26: #{tpu_custom_call.1} parent=1 // pred_check
      _
    $region27: #{tpu_custom_call.1} parent=1 // pred_check_branch
      %51 = sbr.rel (0) target = $region29
    $region28: #{tpu_custom_call.1} parent=1 // pred_region
      _
    $region29: #{tpu_custom_call.1} parent=1 // pred_fallthru
      _
    // Predicated region
    $region30: #{tpu_custom_call.1} parent=1 // pred_check
      _
    $region31: #{tpu_custom_call.1} parent=1 // pred_check_branch
      %53 = sbr.rel (0) target = $region33
    $region32: #{tpu_custom_call.1} parent=1 // pred_region
      _
    $region33: #{tpu_custom_call.1} parent=1 // pred_fallthru
      _
    // Predicated region
    $region34: #{tpu_custom_call.1} parent=1 // pred_check
      _
    $region35: #{tpu_custom_call.1} parent=1 // pred_check_branch
      %55 = sbr.rel (0) target = $region37
    $region36: #{tpu_custom_call.1} parent=1 // pred_region
      _
    $region37: #{tpu_custom_call.1} parent=1 // pred_fallthru
      _
    // Predicated region
    $region38: #{tpu_custom_call.1} parent=1 // pred_check
      _
    $region39: #{tpu_custom_call.1} parent=1 // pred_check_branch
      %57 = sbr.rel (0) target = $region41
    $region40: #{tpu_custom_call.1} parent=1 // pred_region
      _
    $region41: #{tpu_custom_call.1} parent=1 // pred_fallthru
      _
    // Predicated region
    $region42: #{tpu_custom_call.1} parent=1 // pred_check
      _
    $region43: #{tpu_custom_call.1} parent=1 // pred_check_branch
      %59 = sbr.rel (0) target = $region45
    $region44: #{tpu_custom_call.1} parent=1 // pred_region
      _
    $region45: #{tpu_custom_call.1} parent=1 // pred_fallthru
      _
    // Predicated region
    $region46: #{tpu_custom_call.1} parent=1 // pred_check
      _
    $region47: #{tpu_custom_call.1} parent=1 // pred_check_branch
      %61 = sbr.rel (0) target = $region49
    $region48: #{tpu_custom_call.1} parent=1 // pred_region
      _
    $region49: #{tpu_custom_call.1} parent=1 // pred_fallthru
      _
    // Predicated region
    $region50: #{tpu_custom_call.1} parent=1 // pred_check
      _
    $region51: #{tpu_custom_call.1} parent=1 // pred_check_branch
      %63 = sbr.rel (0) target = $region53
    $region52: #{tpu_custom_call.1} parent=1 // pred_region
      _
    $region53: #{tpu_custom_call.1} parent=1 // pred_fallthru
      _
    // Predicated region
    $region54: #{tpu_custom_call.1} parent=1 // pred_check
      _
    $region55: #{tpu_custom_call.1} parent=1 // pred_check_branch
      %65 = sbr.rel (0) target = $region57
    $region56: #{tpu_custom_call.1} parent=1 // pred_region
      _
    $region57: #{tpu_custom_call.1} parent=1 // pred_fallthru
      _
    // Predicated region
    $region58: #{tpu_custom_call.1} parent=1 // pred_check
      _
    $region59: #{tpu_custom_call.1} parent=1 // pred_check_branch
      %67 = sbr.rel (0) target = $region61
    $region60: #{tpu_custom_call.1} parent=1 // pred_region
      _
    $region61: #{tpu_custom_call.1} parent=1 // pred_fallthru
      _
    // Predicated region
    $region62: #{tpu_custom_call.1} parent=1 // pred_check
      _
    $region63: #{tpu_custom_call.1} parent=1 // pred_check_branch
      %69 = sbr.rel (0) target = $region65
    $region64: #{tpu_custom_call.1} parent=1 // pred_region
      _
    $region65: #{tpu_custom_call.1} parent=1 // pred_fallthru
      _
    // Predicated region
    $region66: #{tpu_custom_call.1} parent=1 // pred_check
      _
    $region67: #{tpu_custom_call.1} parent=1 // pred_check_branch
      %71 = sbr.rel (0) target = $region69
    $region68: #{tpu_custom_call.1} parent=1 // pred_region
      _
    $region69: #{tpu_custom_call.1} parent=1 // pred_fallthru
      _
    // Predicated region
    $region70: #{tpu_custom_call.1} parent=1 // pred_check
      _
    $region71: #{tpu_custom_call.1} parent=1 // pred_check_branch
      %73 = sbr.rel (0) target = $region73
    $region72: #{tpu_custom_call.1} parent=1 // pred_region
      _
    $region73: #{tpu_custom_call.1} parent=1 // pred_fallthru
      _
    // Predicated region
    $region74: #{tpu_custom_call.1} parent=1 // pred_check
      _
    $region75: #{tpu_custom_call.1} parent=1 // pred_check_branch
      %75 = sbr.rel (0) target = $region77
    $region76: #{tpu_custom_call.1} parent=1 // pred_region
      _
    $region77: #{tpu_custom_call.1} parent=1 // pred_fallthru
      _
    // Predicated region
    $region78: #{tpu_custom_call.1} parent=1 // pred_check
      _
    $region79: #{tpu_custom_call.1} parent=1 // pred_check_branch
      %77 = sbr.rel (0) target = $region81
    $region80: #{tpu_custom_call.1} parent=1 // pred_region
      _
    $region81: #{tpu_custom_call.1} parent=1 // pred_fallthru
      _
    // Predicated region
    $region82: #{tpu_custom_call.1} parent=1 // pred_check
      _
    $region83: #{tpu_custom_call.1} parent=1 // pred_check_branch
      %79 = sbr.rel (0) target = $region85
    $region84: #{tpu_custom_call.1} parent=1 // pred_region
      _
    $region85: #{tpu_custom_call.1} parent=1 // pred_fallthru
      _
    // Predicated region
    $region86: #{tpu_custom_call.1} parent=1 // pred_check
      _
    $region87: #{tpu_custom_call.1} parent=1 // pred_check_branch
      %81 = sbr.rel (0) target = $region89
    $region88: #{tpu_custom_call.1} parent=1 // pred_region
      _
    $region89: #{tpu_custom_call.1} parent=1 // pred_fallthru
      _
    // Predicated region
    $region90: #{tpu_custom_call.1} parent=1 // pred_check
      _
    $region91: #{tpu_custom_call.1} parent=1 // pred_check_branch
      %83 = sbr.rel (0) target = $region93
    $region92: #{tpu_custom_call.1} parent=1 // pred_region
      _
    $region93: #{tpu_custom_call.1} parent=1 // pred_fallthru
      _
    // Predicated region
    $region94: #{tpu_custom_call.1} parent=1 // pred_check
      _
    $region95: #{tpu_custom_call.1} parent=1 // pred_check_branch
      %85 = sbr.rel (0) target = $region97
    $region96: #{tpu_custom_call.1} parent=1 // pred_region
      _
    $region97: #{tpu_custom_call.1} parent=1 // pred_fallthru
      _
    // Predicated region
    $region98: #{tpu_custom_call.1} parent=1 // pred_check
      _
    $region99: #{tpu_custom_call.1} parent=1 // pred_check_branch
      %87 = sbr.rel (0) target = $region101
    $region100: #{tpu_custom_call.1} parent=1 // pred_region
      _
    $region101: #{tpu_custom_call.1} parent=1 // pred_fallthru
      _
    // Predicated region
    $region102: #{tpu_custom_call.1} parent=1 // pred_check
      _
    $region103: #{tpu_custom_call.1} parent=1 // pred_check_branch
      %89 = sbr.rel (0) target = $region105
    $region104: #{tpu_custom_call.1} parent=1 // pred_region
      _
    $region105: #{tpu_custom_call.1} parent=1 // pred_fallthru
      _
    // Predicated region
    $region106: #{tpu_custom_call.1} parent=1 // pred_check
      _
    $region107: #{tpu_custom_call.1} parent=1 // pred_check_branch
      %91 = sbr.rel (0) target = $region109
    $region108: #{tpu_custom_call.1} parent=1 // pred_region
      _
    $region109: #{tpu_custom_call.1} parent=1 // pred_fallthru
      _
    // Predicated region
    $region110: #{tpu_custom_call.1} parent=1 // pred_check
      _
    $region111: #{tpu_custom_call.1} parent=1 // pred_check_branch
      %93 = sbr.rel (0) target = $region113
    $region112: #{tpu_custom_call.1} parent=1 // pred_region
      _
    $region113: #{tpu_custom_call.1} parent=1 // pred_fallthru
      _
    %v94 = vld [vmem:[%s0] sm:$0xff]
    %v95 = vld [vmem:[%s0 + $0x8] sm:$0xff]
    %v96 = vld [vmem:[%s0 + $0x10] sm:$0xff]
    %v97 = vld [vmem:[%s0 + $0x18] sm:$0xff]
    %v98 = vld [vmem:[%s0 + $0x20] sm:$0xff]
    %v99 = vld [vmem:[%s0 + $0x28] sm:$0xff]
    %v100 = vld [vmem:[%s0 + $0x30] sm:$0xff]
    %v101 = vld [vmem:[%s0 + $0x38] sm:$0xff]
    %v102 = vld [vmem:[%s0 + $0x40] sm:$0xff]
    %v103 = vld [vmem:[%s0 + $0x48] sm:$0xff]
    %v104 = vld [vmem:[%s0 + $0x50] sm:$0xff]
    %v105 = vld [vmem:[%s0 + $0x58] sm:$0xff]
    %v106 = vld [vmem:[%s0 + $0x60] sm:$0xff]
    %v107 = vld [vmem:[%s0 + $0x68] sm:$0xff]
    %v108 = vld [vmem:[%s0 + $0x70] sm:$0xff]
    %v109 = vld [vmem:[%s0 + $0x78] sm:$0xff]
    %v110 = vld [vmem:[%s4] sm:$0xf]
    %v111 = vld [vmem:[%s5] sm:$0x1]
    %v113 = vlaneseq
    %v114 = vshrl.u32 %v113, 7
    %v115 = vsub.s32 0, %v114
    %v116 = vrot.slane %v111, %v115
    %vm118 = vcmask 31744
    %v120 = vsel %vm118, %v94, 0
    %v123 = vsel %vm118, %v95, 0
    %v126 = vsel %vm118, %v96, 0
    %v129 = vsel %vm118, %v97, 0
    %v132 = vsel %vm118, %v98, 0
    %v135 = vsel %vm118, %v99, 0
    %v138 = vsel %vm118, %v100, 0
    %v141 = vsel %vm118, %v101, 0
    %v144 = vsel %vm118, %v102, 0
    %v147 = vsel %vm118, %v103, 0
    %v150 = vsel %vm118, %v104, 0
    %v153 = vsel %vm118, %v105, 0
    %v156 = vsel %vm118, %v106, 0
    %v159 = vsel %vm118, %v107, 0
    %v162 = vsel %vm118, %v108, 0
    %v165 = vsel %vm118, %v109, 0
    %vm167 = vcmask 1043456
    %v169 = vsel %vm167, %v110, 0
    %171 = vmatprep.subr.mxu0 0.0
    %172 = vmatpush1.msra.mxu0 0.0
    %173 = vmatprep.subr.mxu0 0.0
    %174 = vmatpush1.msra.mxu0 0.0
    %175 = vmatprep.subr.mxu0 0.0
    %176 = vmatpush1.msra.mxu0 0.0
    %177 = vmatprep.subr.mxu0 0.0
    %178 = vmatpush1.msra.mxu0 0.0
    %179 = vmatprep.subr.mxu0 0.0
    %180 = vmatpush1.msra.mxu0 0.0
    %181 = vmatprep.subr.mxu0 0.0
    %182 = vmatpush1.msra.mxu0 0.0
    %183 = vmatprep.subr.mxu0 0.0
    %184 = vmatpush1.msra.mxu0 0.0
    %185 = vmatprep.subr.mxu0 0.0
    %186 = vmatpush1.msra.mxu0 0.0
    %187 = vmatprep.subr.mxu0 0.0
    %188 = vmatpush1.msra.mxu0 0.0
    %189 = vmatprep.subr.mxu0 0.0
    %190 = vmatpush1.msra.mxu0 0.0
    %191 = vmatprep.subr.mxu0 0.0
    %192 = vmatpush1.msra.mxu0 0.0
    %193 = vmatprep.subr.mxu0 0.0
    %194 = vmatpush1.msra.mxu0 0.0
    %195 = vmatprep.subr.mxu0 0.0
    %196 = vmatpush1.msra.mxu0 0.0
    %197 = vmatprep.subr.mxu0 0.0
    %198 = vmatpush1.msra.mxu0 0.0
    %199 = vmatprep.subr.mxu0 0.0
    %200 = vmatpush1.msra.mxu0 0.0
    %201 = vmatprep.subr.mxu0 0.0
    %202 = vmatpush1.msra.mxu0 %v169
    %203 = vmatprep.subr.mxu0 0.0
    %204 = vmatpush2.msra.mxu0 0.0
    %205 = vmatprep.subr.mxu0 0.0
    %206 = vmatpush2.msra.mxu0 0.0
    %207 = vmatprep.subr.mxu0 0.0
    %208 = vmatpush2.msra.mxu0 0.0
    %209 = vmatprep.subr.mxu0 0.0
    %210 = vmatpush2.msra.mxu0 0.0
    %211 = vmatprep.subr.mxu0 0.0
    %212 = vmatpush2.msra.mxu0 0.0
    %213 = vmatprep.subr.mxu0 0.0
    %214 = vmatpush2.msra.mxu0 0.0
    %215 = vmatprep.subr.mxu0 0.0
    %216 = vmatpush2.msra.mxu0 0.0
    %217 = vmatprep.subr.mxu0 0.0
    %218 = vmatpush2.msra.mxu0 0.0
    %219 = vmatprep.subr.mxu0 0.0
    %220 = vmatpush2.msra.mxu0 0.0
    %221 = vmatprep.subr.mxu0 0.0
    %222 = vmatpush2.msra.mxu0 0.0
    %223 = vmatprep.subr.mxu0 0.0
    %224 = vmatpush2.msra.mxu0 0.0
    %225 = vmatprep.subr.mxu0 0.0
    %226 = vmatpush2.msra.mxu0 0.0
    %227 = vmatprep.subr.mxu0 0.0
    %228 = vmatpush2.msra.mxu0 0.0
    %229 = vmatprep.subr.mxu0 0.0
    %230 = vmatpush2.msra.mxu0 0.0
    %231 = vmatprep.subr.mxu0 0.0
    %232 = vmatpush2.msra.mxu0 0.0
    %233 = vmatprep.subr.mxu0 0.0
    %234 = vmatpush2.msra.mxu0 0.0
    %235 = vmatprep.mubr.f32.mxu0 0.0
    %236 = vmatmul.mubr.f32.gmra.mxu0 %v120
    %v237 = vpop.f32.mrf.mxu0
    %v238 = vadd.f32 %v116, %v237
    %v239 = vpop.f32.mrf.mxu0
    %240 = vmatprep.mubr.f32.mxu0 0.0
    %241 = vmatmul.mubr.f32.gmra.mxu0 %v123
    %v242 = vpop.f32.mrf.mxu0
    %v243 = vadd.f32 %v116, %v242
    %v244 = vpop.f32.mrf.mxu0
    %245 = vmatprep.mubr.f32.mxu0 0.0
    %246 = vmatmul.mubr.f32.gmra.mxu0 %v126
    %v247 = vpop.f32.mrf.mxu0
    %v248 = vadd.f32 %v116, %v247
    %v249 = vpop.f32.mrf.mxu0
    %250 = vmatprep.mubr.f32.mxu0 0.0
    %251 = vmatmul.mubr.f32.gmra.mxu0 %v129
    %v252 = vpop.f32.mrf.mxu0
    %v253 = vadd.f32 %v116, %v252
    %v254 = vpop.f32.mrf.mxu0
    %255 = vmatprep.mubr.f32.mxu0 0.0
    %256 = vmatmul.mubr.f32.gmra.mxu0 %v132
    %v257 = vpop.f32.mrf.mxu0
    %v258 = vadd.f32 %v116, %v257
    %v259 = vpop.f32.mrf.mxu0
    %260 = vmatprep.mubr.f32.mxu0 0.0
    %261 = vmatmul.mubr.f32.gmra.mxu0 %v135
    %v262 = vpop.f32.mrf.mxu0
    %v263 = vadd.f32 %v116, %v262
    %v264 = vpop.f32.mrf.mxu0
    %265 = vmatprep.mubr.f32.mxu0 0.0
    %266 = vmatmul.mubr.f32.gmra.mxu0 %v138
    %v267 = vpop.f32.mrf.mxu0
    %v268 = vadd.f32 %v116, %v267
    %v269 = vpop.f32.mrf.mxu0
    %270 = vmatprep.mubr.f32.mxu0 0.0
    %271 = vmatmul.mubr.f32.gmra.mxu0 %v141
    %v272 = vpop.f32.mrf.mxu0
    %v273 = vadd.f32 %v116, %v272
    %v274 = vpop.f32.mrf.mxu0
    %275 = vmatprep.mubr.f32.mxu0 0.0
    %276 = vmatmul.mubr.f32.gmra.mxu0 %v144
    %v277 = vpop.f32.mrf.mxu0
    %v278 = vadd.f32 %v116, %v277
    %v279 = vpop.f32.mrf.mxu0
    %280 = vmatprep.mubr.f32.mxu0 0.0
    %281 = vmatmul.mubr.f32.gmra.mxu0 %v147
    %v282 = vpop.f32.mrf.mxu0
    %v283 = vadd.f32 %v116, %v282
    %v284 = vpop.f32.mrf.mxu0
    %285 = vmatprep.mubr.f32.mxu0 0.0
    %286 = vmatmul.mubr.f32.gmra.mxu0 %v150
    %v287 = vpop.f32.mrf.mxu0
    %v288 = vadd.f32 %v116, %v287
    %v289 = vpop.f32.mrf.mxu0
    %290 = vmatprep.mubr.f32.mxu0 0.0
    %291 = vmatmul.mubr.f32.gmra.mxu0 %v153
    %v292 = vpop.f32.mrf.mxu0
    %v293 = vadd.f32 %v116, %v292
    %v294 = vpop.f32.mrf.mxu0
    %295 = vmatprep.mubr.f32.mxu0 0.0
    %296 = vmatmul.mubr.f32.gmra.mxu0 %v156
    %v297 = vpop.f32.mrf.mxu0
    %v298 = vadd.f32 %v116, %v297
    %v299 = vpop.f32.mrf.mxu0
    %300 = vmatprep.mubr.f32.mxu0 0.0
    %301 = vmatmul.mubr.f32.gmra.mxu0 %v159
    %v302 = vpop.f32.mrf.mxu0
    %v303 = vadd.f32 %v116, %v302
    %v304 = vpop.f32.mrf.mxu0
    %305 = vmatprep.mubr.f32.mxu0 0.0
    %306 = vmatmul.mubr.f32.gmra.mxu0 %v162
    %v307 = vpop.f32.mrf.mxu0
    %v308 = vadd.f32 %v116, %v307
    %v309 = vpop.f32.mrf.mxu0
    %310 = vmatprep.mubr.f32.mxu0 0.0
    %311 = vmatmul.mubr.f32.gmra.mxu0 %v165
    %v312 = vpop.f32.mrf.mxu0
    %v313 = vadd.f32 %v116, %v312
    %v314 = vpop.f32.mrf.mxu0
    %315 = vdwg.mxu0
    %v316 = vmax.f32 %v238, 0.0
    %v317 = vmax.f32 %v243, 0.0
    %v318 = vmax.f32 %v248, 0.0
    %v319 = vmax.f32 %v253, 0.0
    %v320 = vmax.f32 %v258, 0.0
    %v321 = vmax.f32 %v263, 0.0
    %v322 = vmax.f32 %v268, 0.0
    %v323 = vmax.f32 %v273, 0.0
    %v324 = vmax.f32 %v278, 0.0
    %v325 = vmax.f32 %v283, 0.0
    %v326 = vmax.f32 %v288, 0.0
    %v327 = vmax.f32 %v293, 0.0
    %v328 = vmax.f32 %v298, 0.0
    %v329 = vmax.f32 %v303, 0.0
    %v330 = vmax.f32 %v308, 0.0
    %v331 = vmax.f32 %v313, 0.0
    %v348 = vrot.slane %v316, 6
    %v349 = vrot.slane %v317, 6
    %v350 = vrot.slane %v318, 6
    %v351 = vrot.slane %v319, 6
    %v352 = vrot.slane %v320, 6
    %v353 = vrot.slane %v321, 6
    %v354 = vrot.slane %v322, 6
    %v355 = vrot.slane %v323, 6
    %v356 = vrot.slane %v324, 6
    %v357 = vrot.slane %v325, 6
    %v358 = vrot.slane %v326, 6
    %v359 = vrot.slane %v327, 6
    %v360 = vrot.slane %v328, 6
    %v361 = vrot.slane %v329, 6
    %v362 = vrot.slane %v330, 6
    %v363 = vrot.slane %v331, 6
    %vm380 = vcmask 1041408
    %v381 = vsel %vm380, 0.0, %v348
    %v382 = vsel %vm380, 0.0, %v349
    %v383 = vsel %vm380, 0.0, %v350
    %v384 = vsel %vm380, 0.0, %v351
    %v385 = vsel %vm380, 0.0, %v352
    %v386 = vsel %vm380, 0.0, %v353
    %v387 = vsel %vm380, 0.0, %v354
    %v388 = vsel %vm380, 0.0, %v355
    %v389 = vsel %vm380, 0.0, %v356
    %v390 = vsel %vm380, 0.0, %v357
    %v391 = vsel %vm380, 0.0, %v358
    %v392 = vsel %vm380, 0.0, %v359
    %v393 = vsel %vm380, 0.0, %v360
    %v394 = vsel %vm380, 0.0, %v361
    %v395 = vsel %vm380, 0.0, %v362
    %v396 = vsel %vm380, 0.0, %v363
    %vm413 = vcmask 1046528
    %v414 = vrot.slane %v381, 1
    %v415 = vrot.slane %v348, 1
    %v416 = vsel %vm413, %v414, %v415
    %v417 = vrot.slane %v382, 1
    %v418 = vrot.slane %v349, 1
    %v419 = vsel %vm413, %v417, %v418
    %v420 = vrot.slane %v383, 1
    %v421 = vrot.slane %v350, 1
    %v422 = vsel %vm413, %v420, %v421
    %v423 = vrot.slane %v384, 1
    %v424 = vrot.slane %v351, 1
    %v425 = vsel %vm413, %v423, %v424
    %v426 = vrot.slane %v385, 1
    %v427 = vrot.slane %v352, 1
    %v428 = vsel %vm413, %v426, %v427
    %v429 = vrot.slane %v386, 1
    %v430 = vrot.slane %v353, 1
    %v431 = vsel %vm413, %v429, %v430
    %v432 = vrot.slane %v387, 1
    %v433 = vrot.slane %v354, 1
    %v434 = vsel %vm413, %v432, %v433
    %v435 = vrot.slane %v388, 1
    %v436 = vrot.slane %v355, 1
    %v437 = vsel %vm413, %v435, %v436
    %v438 = vrot.slane %v389, 1
    %v439 = vrot.slane %v356, 1
    %v440 = vsel %vm413, %v438, %v439
    %v441 = vrot.slane %v390, 1
    %v442 = vrot.slane %v357, 1
    %v443 = vsel %vm413, %v441, %v442
    %v444 = vrot.slane %v391, 1
    %v445 = vrot.slane %v358, 1
    %v446 = vsel %vm413, %v444, %v445
    %v447 = vrot.slane %v392, 1
    %v448 = vrot.slane %v359, 1
    %v449 = vsel %vm413, %v447, %v448
    %v450 = vrot.slane %v393, 1
    %v451 = vrot.slane %v360, 1
    %v452 = vsel %vm413, %v450, %v451
    %v453 = vrot.slane %v394, 1
    %v454 = vrot.slane %v361, 1
    %v455 = vsel %vm413, %v453, %v454
    %v456 = vrot.slane %v395, 1
    %v457 = vrot.slane %v362, 1
    %v458 = vsel %vm413, %v456, %v457
    %v459 = vrot.slane %v396, 1
    %v460 = vrot.slane %v363, 1
    %v461 = vsel %vm413, %v459, %v460
    %462 = vrot.lane.b32.xlu0 %v416, 32
    %v463 = vpop.permute.xlu0 %462
    %464 = vrot.lane.b32.xlu0 %v419, 32
    %v465 = vpop.permute.xlu0 %464
    %466 = vrot.lane.b32.xlu0 %v422, 32
    %v467 = vpop.permute.xlu0 %466
    %468 = vrot.lane.b32.xlu0 %v425, 32
    %v469 = vpop.permute.xlu0 %468
    %470 = vrot.lane.b32.xlu0 %v428, 32
    %v471 = vpop.permute.xlu0 %470
    %472 = vrot.lane.b32.xlu0 %v431, 32
    %v473 = vpop.permute.xlu0 %472
    %474 = vrot.lane.b32.xlu0 %v434, 32
    %v475 = vpop.permute.xlu0 %474
    %476 = vrot.lane.b32.xlu0 %v437, 32
    %v477 = vpop.permute.xlu0 %476
    %478 = vrot.lane.b32.xlu0 %v440, 32
    %v479 = vpop.permute.xlu0 %478
    %480 = vrot.lane.b32.xlu0 %v443, 32
    %v481 = vpop.permute.xlu0 %480
    %482 = vrot.lane.b32.xlu0 %v446, 32
    %v483 = vpop.permute.xlu0 %482
    %484 = vrot.lane.b32.xlu0 %v449, 32
    %v485 = vpop.permute.xlu0 %484
    %486 = vrot.lane.b32.xlu0 %v452, 32
    %v487 = vpop.permute.xlu0 %486
    %488 = vrot.lane.b32.xlu0 %v455, 32
    %v489 = vpop.permute.xlu0 %488
    %490 = vrot.lane.b32.xlu0 %v458, 32
    %v491 = vpop.permute.xlu0 %490
    %492 = vrot.lane.b32.xlu0 %v461, 32
    %v493 = vpop.permute.xlu0 %492
    %vm510 = vcmask 1045504
    %v511 = vrot.slane %v381, 2
    %v512 = vrot.slane %v348, 2
    %v513 = vsel %vm510, %v511, %v512
    %v514 = vrot.slane %v382, 2
    %v515 = vrot.slane %v349, 2
    %v516 = vsel %vm510, %v514, %v515
    %v517 = vrot.slane %v383, 2
    %v518 = vrot.slane %v350, 2
    %v519 = vsel %vm510, %v517, %v518
    %v520 = vrot.slane %v384, 2
    %v521 = vrot.slane %v351, 2
    %v522 = vsel %vm510, %v520, %v521
    %v523 = vrot.slane %v385, 2
    %v524 = vrot.slane %v352, 2
    %v525 = vsel %vm510, %v523, %v524
    %v526 = vrot.slane %v386, 2
    %v527 = vrot.slane %v353, 2
    %v528 = vsel %vm510, %v526, %v527
    %v529 = vrot.slane %v387, 2
    %v530 = vrot.slane %v354, 2
    %v531 = vsel %vm510, %v529, %v530
    %v532 = vrot.slane %v388, 2
    %v533 = vrot.slane %v355, 2
    %v534 = vsel %vm510, %v532, %v533
    %v535 = vrot.slane %v389, 2
    %v536 = vrot.slane %v356, 2
    %v537 = vsel %vm510, %v535, %v536
    %v538 = vrot.slane %v390, 2
    %v539 = vrot.slane %v357, 2
    %v540 = vsel %vm510, %v538, %v539
    %v541 = vrot.slane %v391, 2
    %v542 = vrot.slane %v358, 2
    %v543 = vsel %vm510, %v541, %v542
    %v544 = vrot.slane %v392, 2
    %v545 = vrot.slane %v359, 2
    %v546 = vsel %vm510, %v544, %v545
    %v547 = vrot.slane %v393, 2
    %v548 = vrot.slane %v360, 2
    %v549 = vsel %vm510, %v547, %v548
    %v550 = vrot.slane %v394, 2
    %v551 = vrot.slane %v361, 2
    %v552 = vsel %vm510, %v550, %v551
    %v553 = vrot.slane %v395, 2
    %v554 = vrot.slane %v362, 2
    %v555 = vsel %vm510, %v553, %v554
    %v556 = vrot.slane %v396, 2
    %v557 = vrot.slane %v363, 2
    %v558 = vsel %vm510, %v556, %v557
    %559 = vrot.lane.b32.xlu0 %v513, 64
    %v560 = vpop.permute.xlu0 %559
    %561 = vrot.lane.b32.xlu0 %v516, 64
    %v562 = vpop.permute.xlu0 %561
    %563 = vrot.lane.b32.xlu0 %v519, 64
    %v564 = vpop.permute.xlu0 %563
    %565 = vrot.lane.b32.xlu0 %v522, 64
    %v566 = vpop.permute.xlu0 %565
    %567 = vrot.lane.b32.xlu0 %v525, 64
    %v568 = vpop.permute.xlu0 %567
    %569 = vrot.lane.b32.xlu0 %v528, 64
    %v570 = vpop.permute.xlu0 %569
    %571 = vrot.lane.b32.xlu0 %v531, 64
    %v572 = vpop.permute.xlu0 %571
    %573 = vrot.lane.b32.xlu0 %v534, 64
    %v574 = vpop.permute.xlu0 %573
    %575 = vrot.lane.b32.xlu0 %v537, 64
    %v576 = vpop.permute.xlu0 %575
    %577 = vrot.lane.b32.xlu0 %v540, 64
    %v578 = vpop.permute.xlu0 %577
    %579 = vrot.lane.b32.xlu0 %v543, 64
    %v580 = vpop.permute.xlu0 %579
    %581 = vrot.lane.b32.xlu0 %v546, 64
    %v582 = vpop.permute.xlu0 %581
    %583 = vrot.lane.b32.xlu0 %v549, 64
    %v584 = vpop.permute.xlu0 %583
    %585 = vrot.lane.b32.xlu0 %v552, 64
    %v586 = vpop.permute.xlu0 %585
    %587 = vrot.lane.b32.xlu0 %v555, 64
    %v588 = vpop.permute.xlu0 %587
    %589 = vrot.lane.b32.xlu0 %v558, 64
    %v590 = vpop.permute.xlu0 %589
    %vm607 = vcmask 261120
    %v608 = vsel %vm607, %v381, %v463
    %v609 = vsel %vm607, %v382, %v465
    %v610 = vsel %vm607, %v383, %v467
    %v611 = vsel %vm607, %v384, %v469
    %v612 = vsel %vm607, %v385, %v471
    %v613 = vsel %vm607, %v386, %v473
    %v614 = vsel %vm607, %v387, %v475
    %v615 = vsel %vm607, %v388, %v477
    %v616 = vsel %vm607, %v389, %v479
    %v617 = vsel %vm607, %v390, %v481
    %v618 = vsel %vm607, %v391, %v483
    %v619 = vsel %vm607, %v392, %v485
    %v620 = vsel %vm607, %v393, %v487
    %v621 = vsel %vm607, %v394, %v489
    %v622 = vsel %vm607, %v395, %v491
    %v623 = vsel %vm607, %v396, %v493
    %vm624 = vcmask 523264
    %v625 = vsel %vm624, %v608, %v560
    %v626 = vsel %vm624, %v609, %v562
    %v627 = vsel %vm624, %v610, %v564
    %v628 = vsel %vm624, %v611, %v566
    %v629 = vsel %vm624, %v612, %v568
    %v630 = vsel %vm624, %v613, %v570
    %v631 = vsel %vm624, %v614, %v572
    %v632 = vsel %vm624, %v615, %v574
    %v633 = vsel %vm624, %v616, %v576
    %v634 = vsel %vm624, %v617, %v578
    %v635 = vsel %vm624, %v618, %v580
    %v636 = vsel %vm624, %v619, %v582
    %v637 = vsel %vm624, %v620, %v584
    %v638 = vsel %vm624, %v621, %v586
    %v639 = vsel %vm624, %v622, %v588
    %v640 = vsel %vm624, %v623, %v590
    %v641 = vld [vmem:[%s6] sm:$0xff]
    %v642 = vld [vmem:[%s6 + $0x8] sm:$0xff]
    %v643 = vld [vmem:[%s6 + $0x10] sm:$0xff]
    %v644 = vld [vmem:[%s6 + $0x18] sm:$0xff]
    %v645 = vld [vmem:[%s6 + $0x20] sm:$0xff]
    %v646 = vld [vmem:[%s6 + $0x28] sm:$0xff]
    %v647 = vld [vmem:[%s6 + $0x30] sm:$0xff]
    %v648 = vld [vmem:[%s6 + $0x38] sm:$0xff]
    %v649 = vld [vmem:[%s6 + $0x40] sm:$0xff]
    %v650 = vld [vmem:[%s6 + $0x48] sm:$0xff]
    %v651 = vld [vmem:[%s6 + $0x50] sm:$0xff]
    %v652 = vld [vmem:[%s6 + $0x58] sm:$0xff]
    %v653 = vld [vmem:[%s7] sm:$0x1]
    %v655 = vlaneseq
    %v656 = vshrl.u32 %v655, 7
    %v657 = vsub.s32 0, %v656
    %v658 = vrot.slane %v653, %v657
    %vm660 = vcmask 785408
    %v662 = vsel %vm660, %v625, 0
    %v665 = vsel %vm660, %v626, 0
    %v668 = vsel %vm660, %v627, 0
    %v671 = vsel %vm660, %v628, 0
    %v674 = vsel %vm660, %v629, 0
    %v677 = vsel %vm660, %v630, 0
    %v680 = vsel %vm660, %v631, 0
    %v683 = vsel %vm660, %v632, 0
    %v686 = vsel %vm660, %v633, 0
    %v689 = vsel %vm660, %v634, 0
    %v692 = vsel %vm660, %v635, 0
    %v695 = vsel %vm660, %v636, 0
    %v698 = vsel %vm660, %v637, 0
    %v701 = vsel %vm660, %v638, 0
    %v704 = vsel %vm660, %v639, 0
    %v707 = vsel %vm660, %v640, 0
    %709 = vmatprep.subr.mxu0 0.0
    %710 = vmatpush1.msra.mxu0 0.0
    %711 = vmatprep.subr.mxu0 0.0
    %712 = vmatpush1.msra.mxu0 0.0
    %713 = vmatprep.subr.mxu0 0.0
    %714 = vmatpush1.msra.mxu0 0.0
    %715 = vmatprep.subr.mxu0 0.0
    %716 = vmatpush1.msra.mxu0 0.0
    %717 = vmatprep.subr.mxu0 0.0
    %718 = vmatpush1.msra.mxu0 %v652
    %719 = vmatprep.subr.mxu0 0.0
    %720 = vmatpush1.msra.mxu0 %v651
    %721 = vmatprep.subr.mxu0 0.0
    %722 = vmatpush1.msra.mxu0 %v650
    %723 = vmatprep.subr.mxu0 0.0
    %724 = vmatpush1.msra.mxu0 %v649
    %725 = vmatprep.subr.mxu0 0.0
    %726 = vmatpush1.msra.mxu0 %v648
    %727 = vmatprep.subr.mxu0 0.0
    %728 = vmatpush1.msra.mxu0 %v647
    %729 = vmatprep.subr.mxu0 0.0
    %730 = vmatpush1.msra.mxu0 %v646
    %731 = vmatprep.subr.mxu0 0.0
    %732 = vmatpush1.msra.mxu0 %v645
    %733 = vmatprep.subr.mxu0 0.0
    %734 = vmatpush1.msra.mxu0 %v644
    %735 = vmatprep.subr.mxu0 0.0
    %736 = vmatpush1.msra.mxu0 %v643
    %737 = vmatprep.subr.mxu0 0.0
    %738 = vmatpush1.msra.mxu0 %v642
    %739 = vmatprep.subr.mxu0 0.0
    %740 = vmatpush1.msra.mxu0 %v641
    %741 = vmatprep.subr.mxu0 0.0
    %742 = vmatpush2.msra.mxu0 0.0
    %743 = vmatprep.subr.mxu0 0.0
    %744 = vmatpush2.msra.mxu0 0.0
    %745 = vmatprep.subr.mxu0 0.0
    %746 = vmatpush2.msra.mxu0 0.0
    %747 = vmatprep.subr.mxu0 0.0
    %748 = vmatpush2.msra.mxu0 0.0
    %749 = vmatprep.subr.mxu0 0.0
    %750 = vmatpush2.msra.mxu0 0.0
    %751 = vmatprep.subr.mxu0 0.0
    %752 = vmatpush2.msra.mxu0 0.0
    %753 = vmatprep.subr.mxu0 0.0
    %754 = vmatpush2.msra.mxu0 0.0
    %755 = vmatprep.subr.mxu0 0.0
    %756 = vmatpush2.msra.mxu0 0.0
    %757 = vmatprep.subr.mxu0 0.0
    %758 = vmatpush2.msra.mxu0 0.0
    %759 = vmatprep.subr.mxu0 0.0
    %760 = vmatpush2.msra.mxu0 0.0
    %761 = vmatprep.subr.mxu0 0.0
    %762 = vmatpush2.msra.mxu0 0.0
    %763 = vmatprep.subr.mxu0 0.0
    %764 = vmatpush2.msra.mxu0 0.0
    %765 = vmatprep.subr.mxu0 0.0
    %766 = vmatpush2.msra.mxu0 0.0
    %767 = vmatprep.subr.mxu0 0.0
    %768 = vmatpush2.msra.mxu0 0.0
    %769 = vmatprep.subr.mxu0 0.0
    %770 = vmatpush2.msra.mxu0 0.0
    %771 = vmatprep.subr.mxu0 0.0
    %772 = vmatpush2.msra.mxu0 0.0
    %773 = vmatprep.mubr.f32.mxu0 0.0
    %774 = vmatmul.mubr.f32.gmra.mxu0 %v662
    %v775 = vpop.f32.mrf.mxu0
    %v776 = vadd.f32 %v658, %v775
    %v777 = vpop.f32.mrf.mxu0
    %778 = vmatprep.mubr.f32.mxu0 0.0
    %779 = vmatmul.mubr.f32.gmra.mxu0 %v665
    %v780 = vpop.f32.mrf.mxu0
    %v781 = vadd.f32 %v658, %v780
    %v782 = vpop.f32.mrf.mxu0
    %783 = vmatprep.mubr.f32.mxu0 0.0
    %784 = vmatmul.mubr.f32.gmra.mxu0 %v668
    %v785 = vpop.f32.mrf.mxu0
    %v786 = vadd.f32 %v658, %v785
    %v787 = vpop.f32.mrf.mxu0
    %788 = vmatprep.mubr.f32.mxu0 0.0
    %789 = vmatmul.mubr.f32.gmra.mxu0 %v671
    %v790 = vpop.f32.mrf.mxu0
    %v791 = vadd.f32 %v658, %v790
    %v792 = vpop.f32.mrf.mxu0
    %793 = vmatprep.mubr.f32.mxu0 0.0
    %794 = vmatmul.mubr.f32.gmra.mxu0 %v674
    %v795 = vpop.f32.mrf.mxu0
    %v796 = vadd.f32 %v658, %v795
    %v797 = vpop.f32.mrf.mxu0
    %798 = vmatprep.mubr.f32.mxu0 0.0
    %799 = vmatmul.mubr.f32.gmra.mxu0 %v677
    %v800 = vpop.f32.mrf.mxu0
    %v801 = vadd.f32 %v658, %v800
    %v802 = vpop.f32.mrf.mxu0
    %803 = vmatprep.mubr.f32.mxu0 0.0
    %804 = vmatmul.mubr.f32.gmra.mxu0 %v680
    %v805 = vpop.f32.mrf.mxu0
    %v806 = vadd.f32 %v658, %v805
    %v807 = vpop.f32.mrf.mxu0
    %808 = vmatprep.mubr.f32.mxu0 0.0
    %809 = vmatmul.mubr.f32.gmra.mxu0 %v683
    %v810 = vpop.f32.mrf.mxu0
    %v811 = vadd.f32 %v658, %v810
    %v812 = vpop.f32.mrf.mxu0
    %813 = vmatprep.mubr.f32.mxu0 0.0
    %814 = vmatmul.mubr.f32.gmra.mxu0 %v686
    %v815 = vpop.f32.mrf.mxu0
    %v816 = vadd.f32 %v658, %v815
    %v817 = vpop.f32.mrf.mxu0
    %818 = vmatprep.mubr.f32.mxu0 0.0
    %819 = vmatmul.mubr.f32.gmra.mxu0 %v689
    %v820 = vpop.f32.mrf.mxu0
    %v821 = vadd.f32 %v658, %v820
    %v822 = vpop.f32.mrf.mxu0
    %823 = vmatprep.mubr.f32.mxu0 0.0
    %824 = vmatmul.mubr.f32.gmra.mxu0 %v692
    %v825 = vpop.f32.mrf.mxu0
    %v826 = vadd.f32 %v658, %v825
    %v827 = vpop.f32.mrf.mxu0
    %828 = vmatprep.mubr.f32.mxu0 0.0
    %829 = vmatmul.mubr.f32.gmra.mxu0 %v695
    %v830 = vpop.f32.mrf.mxu0
    %v831 = vadd.f32 %v658, %v830
    %v832 = vpop.f32.mrf.mxu0
    %833 = vmatprep.mubr.f32.mxu0 0.0
    %834 = vmatmul.mubr.f32.gmra.mxu0 %v698
    %v835 = vpop.f32.mrf.mxu0
    %v836 = vadd.f32 %v658, %v835
    %v837 = vpop.f32.mrf.mxu0
    %838 = vmatprep.mubr.f32.mxu0 0.0
    %839 = vmatmul.mubr.f32.gmra.mxu0 %v701
    %v840 = vpop.f32.mrf.mxu0
    %v841 = vadd.f32 %v658, %v840
    %v842 = vpop.f32.mrf.mxu0
    %843 = vmatprep.mubr.f32.mxu0 0.0
    %844 = vmatmul.mubr.f32.gmra.mxu0 %v704
    %v845 = vpop.f32.mrf.mxu0
    %v846 = vadd.f32 %v658, %v845
    %v847 = vpop.f32.mrf.mxu0
    %848 = vmatprep.mubr.f32.mxu0 0.0
    %849 = vmatmul.mubr.f32.gmra.mxu0 %v707
    %v850 = vpop.f32.mrf.mxu0
    %v851 = vadd.f32 %v658, %v850
    %v852 = vpop.f32.mrf.mxu0
    %853 = vdwg.mxu0
    %v854 = vmax.f32 %v776, 0.0
    %v855 = vmax.f32 %v781, 0.0
    %v856 = vmax.f32 %v786, 0.0
    %v857 = vmax.f32 %v791, 0.0
    %v858 = vmax.f32 %v796, 0.0
    %v859 = vmax.f32 %v801, 0.0
    %v860 = vmax.f32 %v806, 0.0
    %v861 = vmax.f32 %v811, 0.0
    %v862 = vmax.f32 %v816, 0.0
    %v863 = vmax.f32 %v821, 0.0
    %v864 = vmax.f32 %v826, 0.0
    %v865 = vmax.f32 %v831, 0.0
    %v866 = vmax.f32 %v836, 0.0
    %v867 = vmax.f32 %v841, 0.0
    %v868 = vmax.f32 %v846, 0.0
    %v869 = vmax.f32 %v851, 0.0
    %v886 = vrot.slane %v854, 4
    %v887 = vrot.slane %v855, 4
    %v888 = vrot.slane %v856, 4
    %v889 = vrot.slane %v857, 4
    %v890 = vrot.slane %v858, 4
    %v891 = vrot.slane %v859, 4
    %v892 = vrot.slane %v860, 4
    %v893 = vrot.slane %v861, 4
    %v894 = vrot.slane %v862, 4
    %v895 = vrot.slane %v863, 4
    %v896 = vrot.slane %v864, 4
    %v897 = vrot.slane %v865, 4
    %v898 = vrot.slane %v866, 4
    %v899 = vrot.slane %v867, 4
    %v900 = vrot.slane %v868, 4
    %v901 = vrot.slane %v869, 4
    %v918 = vsel %vm167, 0.0, %v886
    %v919 = vsel %vm167, 0.0, %v887
    %v920 = vsel %vm167, 0.0, %v888
    %v921 = vsel %vm167, 0.0, %v889
    %v922 = vsel %vm167, 0.0, %v890
    %v923 = vsel %vm167, 0.0, %v891
    %v924 = vsel %vm167, 0.0, %v892
    %v925 = vsel %vm167, 0.0, %v893
    %v926 = vsel %vm167, 0.0, %v894
    %v927 = vsel %vm167, 0.0, %v895
    %v928 = vsel %vm167, 0.0, %v896
    %v929 = vsel %vm167, 0.0, %v897
    %v930 = vsel %vm167, 0.0, %v898
    %v931 = vsel %vm167, 0.0, %v899
    %v932 = vsel %vm167, 0.0, %v900
    %v933 = vsel %vm167, 0.0, %v901
    %v950 = vrot.slane %v918, 2
    %v951 = vrot.slane %v886, 2
    %v952 = vsel %vm510, %v950, %v951
    %v953 = vrot.slane %v919, 2
    %v954 = vrot.slane %v887, 2
    %v955 = vsel %vm510, %v953, %v954
    %v956 = vrot.slane %v920, 2
    %v957 = vrot.slane %v888, 2
    %v958 = vsel %vm510, %v956, %v957
    %v959 = vrot.slane %v921, 2
    %v960 = vrot.slane %v889, 2
    %v961 = vsel %vm510, %v959, %v960
    %v962 = vrot.slane %v922, 2
    %v963 = vrot.slane %v890, 2
    %v964 = vsel %vm510, %v962, %v963
    %v965 = vrot.slane %v923, 2
    %v966 = vrot.slane %v891, 2
    %v967 = vsel %vm510, %v965, %v966
    %v968 = vrot.slane %v924, 2
    %v969 = vrot.slane %v892, 2
    %v970 = vsel %vm510, %v968, %v969
    %v971 = vrot.slane %v925, 2
    %v972 = vrot.slane %v893, 2
    %v973 = vsel %vm510, %v971, %v972
    %v974 = vrot.slane %v926, 2
    %v975 = vrot.slane %v894, 2
    %v976 = vsel %vm510, %v974, %v975
    %v977 = vrot.slane %v927, 2
    %v978 = vrot.slane %v895, 2
    %v979 = vsel %vm510, %v977, %v978
    %v980 = vrot.slane %v928, 2
    %v981 = vrot.slane %v896, 2
    %v982 = vsel %vm510, %v980, %v981
    %v983 = vrot.slane %v929, 2
    %v984 = vrot.slane %v897, 2
    %v985 = vsel %vm510, %v983, %v984
    %v986 = vrot.slane %v930, 2
    %v987 = vrot.slane %v898, 2
    %v988 = vsel %vm510, %v986, %v987
    %v989 = vrot.slane %v931, 2
    %v990 = vrot.slane %v899, 2
    %v991 = vsel %vm510, %v989, %v990
    %v992 = vrot.slane %v932, 2
    %v993 = vrot.slane %v900, 2
    %v994 = vsel %vm510, %v992, %v993
    %v995 = vrot.slane %v933, 2
    %v996 = vrot.slane %v901, 2
    %v997 = vsel %vm510, %v995, %v996
    %998 = vrot.lane.b32.xlu0 %v952, 32
    %v999 = vpop.permute.xlu0 %998
    %1000 = vrot.lane.b32.xlu0 %v955, 32
    %v1001 = vpop.permute.xlu0 %1000
    %1002 = vrot.lane.b32.xlu0 %v958, 32
    %v1003 = vpop.permute.xlu0 %1002
    %1004 = vrot.lane.b32.xlu0 %v961, 32
    %v1005 = vpop.permute.xlu0 %1004
    %1006 = vrot.lane.b32.xlu0 %v964, 32
    %v1007 = vpop.permute.xlu0 %1006
    %1008 = vrot.lane.b32.xlu0 %v967, 32
    %v1009 = vpop.permute.xlu0 %1008
    %1010 = vrot.lane.b32.xlu0 %v970, 32
    %v1011 = vpop.permute.xlu0 %1010
    %1012 = vrot.lane.b32.xlu0 %v973, 32
    %v1013 = vpop.permute.xlu0 %1012
    %1014 = vrot.lane.b32.xlu0 %v976, 32
    %v1015 = vpop.permute.xlu0 %1014
    %1016 = vrot.lane.b32.xlu0 %v979, 32
    %v1017 = vpop.permute.xlu0 %1016
    %1018 = vrot.lane.b32.xlu0 %v982, 32
    %v1019 = vpop.permute.xlu0 %1018
    %1020 = vrot.lane.b32.xlu0 %v985, 32
    %v1021 = vpop.permute.xlu0 %1020
    %1022 = vrot.lane.b32.xlu0 %v988, 32
    %v1023 = vpop.permute.xlu0 %1022
    %1024 = vrot.lane.b32.xlu0 %v991, 32
    %v1025 = vpop.permute.xlu0 %1024
    %1026 = vrot.lane.b32.xlu0 %v994, 32
    %v1027 = vpop.permute.xlu0 %1026
    %1028 = vrot.lane.b32.xlu0 %v997, 32
    %v1029 = vpop.permute.xlu0 %1028
    %v1046 = vrot.slane %v918, 4
    %v1047 = vrot.slane %v886, 4
    %v1048 = vsel %vm167, %v1046, %v1047
    %v1049 = vrot.slane %v919, 4
    %v1050 = vrot.slane %v887, 4
    %v1051 = vsel %vm167, %v1049, %v1050
    %v1052 = vrot.slane %v920, 4
    %v1053 = vrot.slane %v888, 4
    %v1054 = vsel %vm167, %v1052, %v1053
    %v1055 = vrot.slane %v921, 4
    %v1056 = vrot.slane %v889, 4
    %v1057 = vsel %vm167, %v1055, %v1056
    %v1058 = vrot.slane %v922, 4
    %v1059 = vrot.slane %v890, 4
    %v1060 = vsel %vm167, %v1058, %v1059
    %v1061 = vrot.slane %v923, 4
    %v1062 = vrot.slane %v891, 4
    %v1063 = vsel %vm167, %v1061, %v1062
    %v1064 = vrot.slane %v924, 4
    %v1065 = vrot.slane %v892, 4
    %v1066 = vsel %vm167, %v1064, %v1065
    %v1067 = vrot.slane %v925, 4
    %v1068 = vrot.slane %v893, 4
    %v1069 = vsel %vm167, %v1067, %v1068
    %v1070 = vrot.slane %v926, 4
    %v1071 = vrot.slane %v894, 4
    %v1072 = vsel %vm167, %v1070, %v1071
    %v1073 = vrot.slane %v927, 4
    %v1074 = vrot.slane %v895, 4
    %v1075 = vsel %vm167, %v1073, %v1074
    %v1076 = vrot.slane %v928, 4
    %v1077 = vrot.slane %v896, 4
    %v1078 = vsel %vm167, %v1076, %v1077
    %v1079 = vrot.slane %v929, 4
    %v1080 = vrot.slane %v897, 4
    %v1081 = vsel %vm167, %v1079, %v1080
    %v1082 = vrot.slane %v930, 4
    %v1083 = vrot.slane %v898, 4
    %v1084 = vsel %vm167, %v1082, %v1083
    %v1085 = vrot.slane %v931, 4
    %v1086 = vrot.slane %v899, 4
    %v1087 = vsel %vm167, %v1085, %v1086
    %v1088 = vrot.slane %v932, 4
    %v1089 = vrot.slane %v900, 4
    %v1090 = vsel %vm167, %v1088, %v1089
    %v1091 = vrot.slane %v933, 4
    %v1092 = vrot.slane %v901, 4
    %v1093 = vsel %vm167, %v1091, %v1092
    %1094 = vrot.lane.b32.xlu0 %v1048, 64
    %v1095 = vpop.permute.xlu0 %1094
    %1096 = vrot.lane.b32.xlu0 %v1051, 64
    %v1097 = vpop.permute.xlu0 %1096
    %1098 = vrot.lane.b32.xlu0 %v1054, 64
    %v1099 = vpop.permute.xlu0 %1098
    %1100 = vrot.lane.b32.xlu0 %v1057, 64
    %v1101 = vpop.permute.xlu0 %1100
    %1102 = vrot.lane.b32.xlu0 %v1060, 64
    %v1103 = vpop.permute.xlu0 %1102
    %1104 = vrot.lane.b32.xlu0 %v1063, 64
    %v1105 = vpop.permute.xlu0 %1104
    %1106 = vrot.lane.b32.xlu0 %v1066, 64
    %v1107 = vpop.permute.xlu0 %1106
    %1108 = vrot.lane.b32.xlu0 %v1069, 64
    %v1109 = vpop.permute.xlu0 %1108
    %1110 = vrot.lane.b32.xlu0 %v1072, 64
    %v1111 = vpop.permute.xlu0 %1110
    %1112 = vrot.lane.b32.xlu0 %v1075, 64
    %v1113 = vpop.permute.xlu0 %1112
    %1114 = vrot.lane.b32.xlu0 %v1078, 64
    %v1115 = vpop.permute.xlu0 %1114
    %1116 = vrot.lane.b32.xlu0 %v1081, 64
    %v1117 = vpop.permute.xlu0 %1116
    %1118 = vrot.lane.b32.xlu0 %v1084, 64
    %v1119 = vpop.permute.xlu0 %1118
    %1120 = vrot.lane.b32.xlu0 %v1087, 64
    %v1121 = vpop.permute.xlu0 %1120
    %1122 = vrot.lane.b32.xlu0 %v1090, 64
    %v1123 = vpop.permute.xlu0 %1122
    %1124 = vrot.lane.b32.xlu0 %v1093, 64
    %v1125 = vpop.permute.xlu0 %1124
    %v1142 = vsel %vm607, %v918, %v999
    %v1143 = vsel %vm607, %v919, %v1001
    %v1144 = vsel %vm607, %v920, %v1003
    %v1145 = vsel %vm607, %v921, %v1005
    %v1146 = vsel %vm607, %v922, %v1007
    %v1147 = vsel %vm607, %v923, %v1009
    %v1148 = vsel %vm607, %v924, %v1011
    %v1149 = vsel %vm607, %v925, %v1013
    %v1150 = vsel %vm607, %v926, %v1015
    %v1151 = vsel %vm607, %v927, %v1017
    %v1152 = vsel %vm607, %v928, %v1019
    %v1153 = vsel %vm607, %v929, %v1021
    %v1154 = vsel %vm607, %v930, %v1023
    %v1155 = vsel %vm607, %v931, %v1025
    %v1156 = vsel %vm607, %v932, %v1027
    %v1157 = vsel %vm607, %v933, %v1029
    %v1158 = vsel %vm624, %v1142, %v1095
    %v1159 = vsel %vm624, %v1143, %v1097
    %v1160 = vsel %vm624, %v1144, %v1099
    %v1161 = vsel %vm624, %v1145, %v1101
    %v1162 = vsel %vm624, %v1146, %v1103
    %v1163 = vsel %vm624, %v1147, %v1105
    %v1164 = vsel %vm624, %v1148, %v1107
    %v1165 = vsel %vm624, %v1149, %v1109
    %v1166 = vsel %vm624, %v1150, %v1111
    %v1167 = vsel %vm624, %v1151, %v1113
    %v1168 = vsel %vm624, %v1152, %v1115
    %v1169 = vsel %vm624, %v1153, %v1117
    %v1170 = vsel %vm624, %v1154, %v1119
    %v1171 = vsel %vm624, %v1155, %v1121
    %v1172 = vsel %vm624, %v1156, %v1123
    %v1173 = vsel %vm624, %v1157, %v1125
    %s1174 = scalar_lea.vmem %s6, 96
    %v1175 = vld [vmem:[%s1174] sm:$0xff]
    %v1176 = vld [vmem:[%s1174 + $0x8] sm:$0xff]
    %v1177 = vld [vmem:[%s1174 + $0x10] sm:$0xff]
    %v1178 = vld [vmem:[%s1174 + $0x18] sm:$0xff]
    %v1179 = vld [vmem:[%s1174 + $0x20] sm:$0xff]
    %v1180 = vld [vmem:[%s1174 + $0x28] sm:$0xff]
    %v1181 = vld [vmem:[%s1174 + $0x30] sm:$0xff]
    %v1182 = vld [vmem:[%s1174 + $0x38] sm:$0xff]
    %v1183 = vld [vmem:[%s1174 + $0x40] sm:$0xff]
    %v1184 = vld [vmem:[%s1174 + $0x48] sm:$0xff]
    %v1185 = vld [vmem:[%s1174 + $0x50] sm:$0xff]
    %v1186 = vld [vmem:[%s1174 + $0x58] sm:$0xff]
    %s1187 = scalar_lea.vmem %s7, 1
    %v1188 = vld [vmem:[%s1187] sm:$0x1]
    %v1190 = vlaneseq
    %v1191 = vshrl.u32 %v1190, 7
    %v1192 = vsub.s32 0, %v1191
    %v1193 = vrot.slane %v1188, %v1192
    %v1196 = vsel %vm660, %v1158, 0
    %v1199 = vsel %vm660, %v1159, 0
    %v1202 = vsel %vm660, %v1160, 0
    %v1205 = vsel %vm660, %v1161, 0
    %v1208 = vsel %vm660, %v1162, 0
    %v1211 = vsel %vm660, %v1163, 0
    %v1214 = vsel %vm660, %v1164, 0
    %v1217 = vsel %vm660, %v1165, 0
    %v1220 = vsel %vm660, %v1166, 0
    %v1223 = vsel %vm660, %v1167, 0
    %v1226 = vsel %vm660, %v1168, 0
    %v1229 = vsel %vm660, %v1169, 0
    %v1232 = vsel %vm660, %v1170, 0
    %v1235 = vsel %vm660, %v1171, 0
    %v1238 = vsel %vm660, %v1172, 0
    %v1241 = vsel %vm660, %v1173, 0
    %1243 = vmatprep.subr.mxu0 0.0
    %1244 = vmatpush1.msra.mxu0 0.0
    %1245 = vmatprep.subr.mxu0 0.0
    %1246 = vmatpush1.msra.mxu0 0.0
    %1247 = vmatprep.subr.mxu0 0.0
    %1248 = vmatpush1.msra.mxu0 0.0
    %1249 = vmatprep.subr.mxu0 0.0
    %1250 = vmatpush1.msra.mxu0 0.0
    %1251 = vmatprep.subr.mxu0 0.0
    %1252 = vmatpush1.msra.mxu0 %v1186
    %1253 = vmatprep.subr.mxu0 0.0
    %1254 = vmatpush1.msra.mxu0 %v1185
    %1255 = vmatprep.subr.mxu0 0.0
    %1256 = vmatpush1.msra.mxu0 %v1184
    %1257 = vmatprep.subr.mxu0 0.0
    %1258 = vmatpush1.msra.mxu0 %v1183
    %1259 = vmatprep.subr.mxu0 0.0
    %1260 = vmatpush1.msra.mxu0 %v1182
    %1261 = vmatprep.subr.mxu0 0.0
    %1262 = vmatpush1.msra.mxu0 %v1181
    %1263 = vmatprep.subr.mxu0 0.0
    %1264 = vmatpush1.msra.mxu0 %v1180
    %1265 = vmatprep.subr.mxu0 0.0
    %1266 = vmatpush1.msra.mxu0 %v1179
    %1267 = vmatprep.subr.mxu0 0.0
    %1268 = vmatpush1.msra.mxu0 %v1178
    %1269 = vmatprep.subr.mxu0 0.0
    %1270 = vmatpush1.msra.mxu0 %v1177
    %1271 = vmatprep.subr.mxu0 0.0
    %1272 = vmatpush1.msra.mxu0 %v1176
    %1273 = vmatprep.subr.mxu0 0.0
    %1274 = vmatpush1.msra.mxu0 %v1175
    %1275 = vmatprep.subr.mxu0 0.0
    %1276 = vmatpush2.msra.mxu0 0.0
    %1277 = vmatprep.subr.mxu0 0.0
    %1278 = vmatpush2.msra.mxu0 0.0
    %1279 = vmatprep.subr.mxu0 0.0
    %1280 = vmatpush2.msra.mxu0 0.0
    %1281 = vmatprep.subr.mxu0 0.0
    %1282 = vmatpush2.msra.mxu0 0.0
    %1283 = vmatprep.subr.mxu0 0.0
    %1284 = vmatpush2.msra.mxu0 0.0
    %1285 = vmatprep.subr.mxu0 0.0
    %1286 = vmatpush2.msra.mxu0 0.0
    %1287 = vmatprep.subr.mxu0 0.0
    %1288 = vmatpush2.msra.mxu0 0.0
    %1289 = vmatprep.subr.mxu0 0.0
    %1290 = vmatpush2.msra.mxu0 0.0
    %1291 = vmatprep.subr.mxu0 0.0
    %1292 = vmatpush2.msra.mxu0 0.0
    %1293 = vmatprep.subr.mxu0 0.0
    %1294 = vmatpush2.msra.mxu0 0.0
    %1295 = vmatprep.subr.mxu0 0.0
    %1296 = vmatpush2.msra.mxu0 0.0
    %1297 = vmatprep.subr.mxu0 0.0
    %1298 = vmatpush2.msra.mxu0 0.0
    %1299 = vmatprep.subr.mxu0 0.0
    %1300 = vmatpush2.msra.mxu0 0.0
    %1301 = vmatprep.subr.mxu0 0.0
    %1302 = vmatpush2.msra.mxu0 0.0
    %1303 = vmatprep.subr.mxu0 0.0
    %1304 = vmatpush2.msra.mxu0 0.0
    %1305 = vmatprep.subr.mxu0 0.0
    %1306 = vmatpush2.msra.mxu0 0.0
    %1307 = vmatprep.mubr.f32.mxu0 0.0
    %1308 = vmatmul.mubr.f32.gmra.mxu0 %v1196
    %v1309 = vpop.f32.mrf.mxu0
    %v1310 = vadd.f32 %v1193, %v1309
    %v1311 = vpop.f32.mrf.mxu0
    %1312 = vmatprep.mubr.f32.mxu0 0.0
    %1313 = vmatmul.mubr.f32.gmra.mxu0 %v1199
    %v1314 = vpop.f32.mrf.mxu0
    %v1315 = vadd.f32 %v1193, %v1314
    %v1316 = vpop.f32.mrf.mxu0
    %1317 = vmatprep.mubr.f32.mxu0 0.0
    %1318 = vmatmul.mubr.f32.gmra.mxu0 %v1202
    %v1319 = vpop.f32.mrf.mxu0
    %v1320 = vadd.f32 %v1193, %v1319
    %v1321 = vpop.f32.mrf.mxu0
    %1322 = vmatprep.mubr.f32.mxu0 0.0
    %1323 = vmatmul.mubr.f32.gmra.mxu0 %v1205
    %v1324 = vpop.f32.mrf.mxu0
    %v1325 = vadd.f32 %v1193, %v1324
    %v1326 = vpop.f32.mrf.mxu0
    %1327 = vmatprep.mubr.f32.mxu0 0.0
    %1328 = vmatmul.mubr.f32.gmra.mxu0 %v1208
    %v1329 = vpop.f32.mrf.mxu0
    %v1330 = vadd.f32 %v1193, %v1329
    %v1331 = vpop.f32.mrf.mxu0
    %1332 = vmatprep.mubr.f32.mxu0 0.0
    %1333 = vmatmul.mubr.f32.gmra.mxu0 %v1211
    %v1334 = vpop.f32.mrf.mxu0
    %v1335 = vadd.f32 %v1193, %v1334
    %v1336 = vpop.f32.mrf.mxu0
    %1337 = vmatprep.mubr.f32.mxu0 0.0
    %1338 = vmatmul.mubr.f32.gmra.mxu0 %v1214
    %v1339 = vpop.f32.mrf.mxu0
    %v1340 = vadd.f32 %v1193, %v1339
    %v1341 = vpop.f32.mrf.mxu0
    %1342 = vmatprep.mubr.f32.mxu0 0.0
    %1343 = vmatmul.mubr.f32.gmra.mxu0 %v1217
    %v1344 = vpop.f32.mrf.mxu0
    %v1345 = vadd.f32 %v1193, %v1344
    %v1346 = vpop.f32.mrf.mxu0
    %1347 = vmatprep.mubr.f32.mxu0 0.0
    %1348 = vmatmul.mubr.f32.gmra.mxu0 %v1220
    %v1349 = vpop.f32.mrf.mxu0
    %v1350 = vadd.f32 %v1193, %v1349
    %v1351 = vpop.f32.mrf.mxu0
    %1352 = vmatprep.mubr.f32.mxu0 0.0
    %1353 = vmatmul.mubr.f32.gmra.mxu0 %v1223
    %v1354 = vpop.f32.mrf.mxu0
    %v1355 = vadd.f32 %v1193, %v1354
    %v1356 = vpop.f32.mrf.mxu0
    %1357 = vmatprep.mubr.f32.mxu0 0.0
    %1358 = vmatmul.mubr.f32.gmra.mxu0 %v1226
    %v1359 = vpop.f32.mrf.mxu0
    %v1360 = vadd.f32 %v1193, %v1359
    %v1361 = vpop.f32.mrf.mxu0
    %1362 = vmatprep.mubr.f32.mxu0 0.0
    %1363 = vmatmul.mubr.f32.gmra.mxu0 %v1229
    %v1364 = vpop.f32.mrf.mxu0
    %v1365 = vadd.f32 %v1193, %v1364
    %v1366 = vpop.f32.mrf.mxu0
    %1367 = vmatprep.mubr.f32.mxu0 0.0
    %1368 = vmatmul.mubr.f32.gmra.mxu0 %v1232
    %v1369 = vpop.f32.mrf.mxu0
    %v1370 = vadd.f32 %v1193, %v1369
    %v1371 = vpop.f32.mrf.mxu0
    %1372 = vmatprep.mubr.f32.mxu0 0.0
    %1373 = vmatmul.mubr.f32.gmra.mxu0 %v1235
    %v1374 = vpop.f32.mrf.mxu0
    %v1375 = vadd.f32 %v1193, %v1374
    %v1376 = vpop.f32.mrf.mxu0
    %1377 = vmatprep.mubr.f32.mxu0 0.0
    %1378 = vmatmul.mubr.f32.gmra.mxu0 %v1238
    %v1379 = vpop.f32.mrf.mxu0
    %v1380 = vadd.f32 %v1193, %v1379
    %v1381 = vpop.f32.mrf.mxu0
    %1382 = vmatprep.mubr.f32.mxu0 0.0
    %1383 = vmatmul.mubr.f32.gmra.mxu0 %v1241
    %v1384 = vpop.f32.mrf.mxu0
    %v1385 = vadd.f32 %v1193, %v1384
    %v1386 = vpop.f32.mrf.mxu0
    %1387 = vdwg.mxu0
    %v1388 = vmax.f32 %v1310, 0.0
    %v1389 = vmax.f32 %v1315, 0.0
    %v1390 = vmax.f32 %v1320, 0.0
    %v1391 = vmax.f32 %v1325, 0.0
    %v1392 = vmax.f32 %v1330, 0.0
    %v1393 = vmax.f32 %v1335, 0.0
    %v1394 = vmax.f32 %v1340, 0.0
    %v1395 = vmax.f32 %v1345, 0.0
    %v1396 = vmax.f32 %v1350, 0.0
    %v1397 = vmax.f32 %v1355, 0.0
    %v1398 = vmax.f32 %v1360, 0.0
    %v1399 = vmax.f32 %v1365, 0.0
    %v1400 = vmax.f32 %v1370, 0.0
    %v1401 = vmax.f32 %v1375, 0.0
    %v1402 = vmax.f32 %v1380, 0.0
    %v1403 = vmax.f32 %v1385, 0.0
    %v1421 = vrot.slane 0.0, 4
    %v1422 = vrot.slane %v1388, 4
    %v1423 = vsel %vm167, %v1421, %v1422
    %v1424 = vrot.slane %v1389, 4
    %v1425 = vsel %vm167, %v1421, %v1424
    %v1426 = vrot.slane %v1390, 4
    %v1427 = vsel %vm167, %v1421, %v1426
    %v1428 = vrot.slane %v1391, 4
    %v1429 = vsel %vm167, %v1421, %v1428
    %v1430 = vrot.slane %v1392, 4
    %v1431 = vsel %vm167, %v1421, %v1430
    %v1432 = vrot.slane %v1393, 4
    %v1433 = vsel %vm167, %v1421, %v1432
    %v1434 = vrot.slane %v1394, 4
    %v1435 = vsel %vm167, %v1421, %v1434
    %v1436 = vrot.slane %v1395, 4
    %v1437 = vsel %vm167, %v1421, %v1436
    %v1438 = vrot.slane %v1396, 4
    %v1439 = vsel %vm167, %v1421, %v1438
    %v1440 = vrot.slane %v1397, 4
    %v1441 = vsel %vm167, %v1421, %v1440
    %v1442 = vrot.slane %v1398, 4
    %v1443 = vsel %vm167, %v1421, %v1442
    %v1444 = vrot.slane %v1399, 4
    %v1445 = vsel %vm167, %v1421, %v1444
    %v1446 = vrot.slane %v1400, 4
    %v1447 = vsel %vm167, %v1421, %v1446
    %v1448 = vrot.slane %v1401, 4
    %v1449 = vsel %vm167, %v1421, %v1448
    %v1450 = vrot.slane %v1402, 4
    %v1451 = vsel %vm167, %v1421, %v1450
    %v1452 = vrot.slane %v1403, 4
    %v1453 = vsel %vm167, %v1421, %v1452
    %1454 = vrot.lane.b32.xlu0 %v1423, 32
    %v1455 = vpop.permute.xlu0 %1454
    %1456 = vrot.lane.b32.xlu0 %v1425, 32
    %v1457 = vpop.permute.xlu0 %1456
    %1458 = vrot.lane.b32.xlu0 %v1427, 32
    %v1459 = vpop.permute.xlu0 %1458
    %1460 = vrot.lane.b32.xlu0 %v1429, 32
    %v1461 = vpop.permute.xlu0 %1460
    %1462 = vrot.lane.b32.xlu0 %v1431, 32
    %v1463 = vpop.permute.xlu0 %1462
    %1464 = vrot.lane.b32.xlu0 %v1433, 32
    %v1465 = vpop.permute.xlu0 %1464
    %1466 = vrot.lane.b32.xlu0 %v1435, 32
    %v1467 = vpop.permute.xlu0 %1466
    %1468 = vrot.lane.b32.xlu0 %v1437, 32
    %v1469 = vpop.permute.xlu0 %1468
    %1470 = vrot.lane.b32.xlu0 %v1439, 32
    %v1471 = vpop.permute.xlu0 %1470
    %1472 = vrot.lane.b32.xlu0 %v1441, 32
    %v1473 = vpop.permute.xlu0 %1472
    %1474 = vrot.lane.b32.xlu0 %v1443, 32
    %v1475 = vpop.permute.xlu0 %1474
    %1476 = vrot.lane.b32.xlu0 %v1445, 32
    %v1477 = vpop.permute.xlu0 %1476
    %1478 = vrot.lane.b32.xlu0 %v1447, 32
    %v1479 = vpop.permute.xlu0 %1478
    %1480 = vrot.lane.b32.xlu0 %v1449, 32
    %v1481 = vpop.permute.xlu0 %1480
    %1482 = vrot.lane.b32.xlu0 %v1451, 32
    %v1483 = vpop.permute.xlu0 %1482
    %1484 = vrot.lane.b32.xlu0 %v1453, 32
    %v1485 = vpop.permute.xlu0 %1484
    %1502 = vrot.lane.b32.xlu0 %v1388, 64
    %v1503 = vpop.permute.xlu0 %1502
    %1504 = vrot.lane.b32.xlu0 %v1389, 64
    %v1505 = vpop.permute.xlu0 %1504
    %1506 = vrot.lane.b32.xlu0 %v1390, 64
    %v1507 = vpop.permute.xlu0 %1506
    %1508 = vrot.lane.b32.xlu0 %v1391, 64
    %v1509 = vpop.permute.xlu0 %1508
    %1510 = vrot.lane.b32.xlu0 %v1392, 64
    %v1511 = vpop.permute.xlu0 %1510
    %1512 = vrot.lane.b32.xlu0 %v1393, 64
    %v1513 = vpop.permute.xlu0 %1512
    %1514 = vrot.lane.b32.xlu0 %v1394, 64
    %v1515 = vpop.permute.xlu0 %1514
    %1516 = vrot.lane.b32.xlu0 %v1395, 64
    %v1517 = vpop.permute.xlu0 %1516
    %1518 = vrot.lane.b32.xlu0 %v1396, 64
    %v1519 = vpop.permute.xlu0 %1518
    %1520 = vrot.lane.b32.xlu0 %v1397, 64
    %v1521 = vpop.permute.xlu0 %1520
    %1522 = vrot.lane.b32.xlu0 %v1398, 64
    %v1523 = vpop.permute.xlu0 %1522
    %1524 = vrot.lane.b32.xlu0 %v1399, 64
    %v1525 = vpop.permute.xlu0 %1524
    %1526 = vrot.lane.b32.xlu0 %v1400, 64
    %v1527 = vpop.permute.xlu0 %1526
    %1528 = vrot.lane.b32.xlu0 %v1401, 64
    %v1529 = vpop.permute.xlu0 %1528
    %1530 = vrot.lane.b32.xlu0 %v1402, 64
    %v1531 = vpop.permute.xlu0 %1530
    %1532 = vrot.lane.b32.xlu0 %v1403, 64
    %v1533 = vpop.permute.xlu0 %1532
    %v1550 = vsel %vm607, 0.0, %v1455
    %v1551 = vsel %vm607, 0.0, %v1457
    %v1552 = vsel %vm607, 0.0, %v1459
    %v1553 = vsel %vm607, 0.0, %v1461
    %v1554 = vsel %vm607, 0.0, %v1463
    %v1555 = vsel %vm607, 0.0, %v1465
    %v1556 = vsel %vm607, 0.0, %v1467
    %v1557 = vsel %vm607, 0.0, %v1469
    %v1558 = vsel %vm607, 0.0, %v1471
    %v1559 = vsel %vm607, 0.0, %v1473
    %v1560 = vsel %vm607, 0.0, %v1475
    %v1561 = vsel %vm607, 0.0, %v1477
    %v1562 = vsel %vm607, 0.0, %v1479
    %v1563 = vsel %vm607, 0.0, %v1481
    %v1564 = vsel %vm607, 0.0, %v1483
    %v1565 = vsel %vm607, 0.0, %v1485
    %v1566 = vsel %vm624, %v1550, %v1503
    %v1567 = vsel %vm624, %v1551, %v1505
    %v1568 = vsel %vm624, %v1552, %v1507
    %v1569 = vsel %vm624, %v1553, %v1509
    %v1570 = vsel %vm624, %v1554, %v1511
    %v1571 = vsel %vm624, %v1555, %v1513
    %v1572 = vsel %vm624, %v1556, %v1515
    %v1573 = vsel %vm624, %v1557, %v1517
    %v1574 = vsel %vm624, %v1558, %v1519
    %v1575 = vsel %vm624, %v1559, %v1521
    %v1576 = vsel %vm624, %v1560, %v1523
    %v1577 = vsel %vm624, %v1561, %v1525
    %v1578 = vsel %vm624, %v1562, %v1527
    %v1579 = vsel %vm624, %v1563, %v1529
    %v1580 = vsel %vm624, %v1564, %v1531
    %v1581 = vsel %vm624, %v1565, %v1533
    %s1582 = scalar_lea.vmem %s6, 192
    %v1583 = vld [vmem:[%s1582] sm:$0xff]
    %v1584 = vld [vmem:[%s1582 + $0x8] sm:$0xff]
    %v1585 = vld [vmem:[%s1582 + $0x10] sm:$0xff]
    %v1586 = vld [vmem:[%s1582 + $0x18] sm:$0xff]
    %v1587 = vld [vmem:[%s1582 + $0x20] sm:$0xff]
    %v1588 = vld [vmem:[%s1582 + $0x28] sm:$0xff]
    %v1589 = vld [vmem:[%s1582 + $0x30] sm:$0xff]
    %v1590 = vld [vmem:[%s1582 + $0x38] sm:$0xff]
    %v1591 = vld [vmem:[%s1582 + $0x40] sm:$0xff]
    %v1592 = vld [vmem:[%s1582 + $0x48] sm:$0xff]
    %v1593 = vld [vmem:[%s1582 + $0x50] sm:$0xff]
    %v1594 = vld [vmem:[%s1582 + $0x58] sm:$0xff]
    %s1595 = scalar_lea.vmem %s7, 2
    %v1596 = vld [vmem:[%s1595] sm:$0x1]
    %v1598 = vlaneseq
    %v1599 = vshrl.u32 %v1598, 7
    %v1600 = vsub.s32 0, %v1599
    %v1601 = vrot.slane %v1596, %v1600
    %v1604 = vsel %vm660, %v1566, 0
    %v1607 = vsel %vm660, %v1567, 0
    %v1610 = vsel %vm660, %v1568, 0
    %v1613 = vsel %vm660, %v1569, 0
    %v1616 = vsel %vm660, %v1570, 0
    %v1619 = vsel %vm660, %v1571, 0
    %v1622 = vsel %vm660, %v1572, 0
    %v1625 = vsel %vm660, %v1573, 0
    %v1628 = vsel %vm660, %v1574, 0
    %v1631 = vsel %vm660, %v1575, 0
    %v1634 = vsel %vm660, %v1576, 0
    %v1637 = vsel %vm660, %v1577, 0
    %v1640 = vsel %vm660, %v1578, 0
    %v1643 = vsel %vm660, %v1579, 0
    %v1646 = vsel %vm660, %v1580, 0
    %v1649 = vsel %vm660, %v1581, 0
    %1651 = vmatprep.subr.mxu0 0.0
    %1652 = vmatpush1.msra.mxu0 0.0
    %1653 = vmatprep.subr.mxu0 0.0
    %1654 = vmatpush1.msra.mxu0 0.0
    %1655 = vmatprep.subr.mxu0 0.0
    %1656 = vmatpush1.msra.mxu0 0.0
    %1657 = vmatprep.subr.mxu0 0.0
    %1658 = vmatpush1.msra.mxu0 0.0
    %1659 = vmatprep.subr.mxu0 0.0
    %1660 = vmatpush1.msra.mxu0 %v1594
    %1661 = vmatprep.subr.mxu0 0.0
    %1662 = vmatpush1.msra.mxu0 %v1593
    %1663 = vmatprep.subr.mxu0 0.0
    %1664 = vmatpush1.msra.mxu0 %v1592
    %1665 = vmatprep.subr.mxu0 0.0
    %1666 = vmatpush1.msra.mxu0 %v1591
    %1667 = vmatprep.subr.mxu0 0.0
    %1668 = vmatpush1.msra.mxu0 %v1590
    %1669 = vmatprep.subr.mxu0 0.0
    %1670 = vmatpush1.msra.mxu0 %v1589
    %1671 = vmatprep.subr.mxu0 0.0
    %1672 = vmatpush1.msra.mxu0 %v1588
    %1673 = vmatprep.subr.mxu0 0.0
    %1674 = vmatpush1.msra.mxu0 %v1587
    %1675 = vmatprep.subr.mxu0 0.0
    %1676 = vmatpush1.msra.mxu0 %v1586
    %1677 = vmatprep.subr.mxu0 0.0
    %1678 = vmatpush1.msra.mxu0 %v1585
    %1679 = vmatprep.subr.mxu0 0.0
    %1680 = vmatpush1.msra.mxu0 %v1584
    %1681 = vmatprep.subr.mxu0 0.0
    %1682 = vmatpush1.msra.mxu0 %v1583
    %1683 = vmatprep.subr.mxu0 0.0
    %1684 = vmatpush2.msra.mxu0 0.0
    %1685 = vmatprep.subr.mxu0 0.0
    %1686 = vmatpush2.msra.mxu0 0.0
    %1687 = vmatprep.subr.mxu0 0.0
    %1688 = vmatpush2.msra.mxu0 0.0
    %1689 = vmatprep.subr.mxu0 0.0
    %1690 = vmatpush2.msra.mxu0 0.0
    %1691 = vmatprep.subr.mxu0 0.0
    %1692 = vmatpush2.msra.mxu0 0.0
    %1693 = vmatprep.subr.mxu0 0.0
    %1694 = vmatpush2.msra.mxu0 0.0
    %1695 = vmatprep.subr.mxu0 0.0
    %1696 = vmatpush2.msra.mxu0 0.0
    %1697 = vmatprep.subr.mxu0 0.0
    %1698 = vmatpush2.msra.mxu0 0.0
    %1699 = vmatprep.subr.mxu0 0.0
    %1700 = vmatpush2.msra.mxu0 0.0
    %1701 = vmatprep.subr.mxu0 0.0
    %1702 = vmatpush2.msra.mxu0 0.0
    %1703 = vmatprep.subr.mxu0 0.0
    %1704 = vmatpush2.msra.mxu0 0.0
    %1705 = vmatprep.subr.mxu0 0.0
    %1706 = vmatpush2.msra.mxu0 0.0
    %1707 = vmatprep.subr.mxu0 0.0
    %1708 = vmatpush2.msra.mxu0 0.0
    %1709 = vmatprep.subr.mxu0 0.0
    %1710 = vmatpush2.msra.mxu0 0.0
    %1711 = vmatprep.subr.mxu0 0.0
    %1712 = vmatpush2.msra.mxu0 0.0
    %1713 = vmatprep.subr.mxu0 0.0
    %1714 = vmatpush2.msra.mxu0 0.0
    %1715 = vmatprep.mubr.f32.mxu0 0.0
    %1716 = vmatmul.mubr.f32.gmra.mxu0 %v1604
    %v1717 = vpop.f32.mrf.mxu0
    %v1718 = vadd.f32 %v1601, %v1717
    %v1719 = vpop.f32.mrf.mxu0
    %1720 = vmatprep.mubr.f32.mxu0 0.0
    %1721 = vmatmul.mubr.f32.gmra.mxu0 %v1607
    %v1722 = vpop.f32.mrf.mxu0
    %v1723 = vadd.f32 %v1601, %v1722
    %v1724 = vpop.f32.mrf.mxu0
    %1725 = vmatprep.mubr.f32.mxu0 0.0
    %1726 = vmatmul.mubr.f32.gmra.mxu0 %v1610
    %v1727 = vpop.f32.mrf.mxu0
    %v1728 = vadd.f32 %v1601, %v1727
    %v1729 = vpop.f32.mrf.mxu0
    %1730 = vmatprep.mubr.f32.mxu0 0.0
    %1731 = vmatmul.mubr.f32.gmra.mxu0 %v1613
    %v1732 = vpop.f32.mrf.mxu0
    %v1733 = vadd.f32 %v1601, %v1732
    %v1734 = vpop.f32.mrf.mxu0
    %1735 = vmatprep.mubr.f32.mxu0 0.0
    %1736 = vmatmul.mubr.f32.gmra.mxu0 %v1616
    %v1737 = vpop.f32.mrf.mxu0
    %v1738 = vadd.f32 %v1601, %v1737
    %v1739 = vpop.f32.mrf.mxu0
    %1740 = vmatprep.mubr.f32.mxu0 0.0
    %1741 = vmatmul.mubr.f32.gmra.mxu0 %v1619
    %v1742 = vpop.f32.mrf.mxu0
    %v1743 = vadd.f32 %v1601, %v1742
    %v1744 = vpop.f32.mrf.mxu0
    %1745 = vmatprep.mubr.f32.mxu0 0.0
    %1746 = vmatmul.mubr.f32.gmra.mxu0 %v1622
    %v1747 = vpop.f32.mrf.mxu0
    %v1748 = vadd.f32 %v1601, %v1747
    %v1749 = vpop.f32.mrf.mxu0
    %1750 = vmatprep.mubr.f32.mxu0 0.0
    %1751 = vmatmul.mubr.f32.gmra.mxu0 %v1625
    %v1752 = vpop.f32.mrf.mxu0
    %v1753 = vadd.f32 %v1601, %v1752
    %v1754 = vpop.f32.mrf.mxu0
    %1755 = vmatprep.mubr.f32.mxu0 0.0
    %1756 = vmatmul.mubr.f32.gmra.mxu0 %v1628
    %v1757 = vpop.f32.mrf.mxu0
    %v1758 = vadd.f32 %v1601, %v1757
    %v1759 = vpop.f32.mrf.mxu0
    %1760 = vmatprep.mubr.f32.mxu0 0.0
    %1761 = vmatmul.mubr.f32.gmra.mxu0 %v1631
    %v1762 = vpop.f32.mrf.mxu0
    %v1763 = vadd.f32 %v1601, %v1762
    %v1764 = vpop.f32.mrf.mxu0
    %1765 = vmatprep.mubr.f32.mxu0 0.0
    %1766 = vmatmul.mubr.f32.gmra.mxu0 %v1634
    %v1767 = vpop.f32.mrf.mxu0
    %v1768 = vadd.f32 %v1601, %v1767
    %v1769 = vpop.f32.mrf.mxu0
    %1770 = vmatprep.mubr.f32.mxu0 0.0
    %1771 = vmatmul.mubr.f32.gmra.mxu0 %v1637
    %v1772 = vpop.f32.mrf.mxu0
    %v1773 = vadd.f32 %v1601, %v1772
    %v1774 = vpop.f32.mrf.mxu0
    %1775 = vmatprep.mubr.f32.mxu0 0.0
    %1776 = vmatmul.mubr.f32.gmra.mxu0 %v1640
    %v1777 = vpop.f32.mrf.mxu0
    %v1778 = vadd.f32 %v1601, %v1777
    %v1779 = vpop.f32.mrf.mxu0
    %1780 = vmatprep.mubr.f32.mxu0 0.0
    %1781 = vmatmul.mubr.f32.gmra.mxu0 %v1643
    %v1782 = vpop.f32.mrf.mxu0
    %v1783 = vadd.f32 %v1601, %v1782
    %v1784 = vpop.f32.mrf.mxu0
    %1785 = vmatprep.mubr.f32.mxu0 0.0
    %1786 = vmatmul.mubr.f32.gmra.mxu0 %v1646
    %v1787 = vpop.f32.mrf.mxu0
    %v1788 = vadd.f32 %v1601, %v1787
    %v1789 = vpop.f32.mrf.mxu0
    %1790 = vmatprep.mubr.f32.mxu0 0.0
    %1791 = vmatmul.mubr.f32.gmra.mxu0 %v1649
    %v1792 = vpop.f32.mrf.mxu0
    %v1793 = vadd.f32 %v1601, %v1792
    %v1794 = vpop.f32.mrf.mxu0
    %1795 = vdwg.mxu0
    %v1796 = vmax.f32 %v1718, 0.0
    %v1797 = vmax.f32 %v1723, 0.0
    %v1798 = vmax.f32 %v1728, 0.0
    %v1799 = vmax.f32 %v1733, 0.0
    %v1800 = vmax.f32 %v1738, 0.0
    %v1801 = vmax.f32 %v1743, 0.0
    %v1802 = vmax.f32 %v1748, 0.0
    %v1803 = vmax.f32 %v1753, 0.0
    %v1804 = vmax.f32 %v1758, 0.0
    %v1805 = vmax.f32 %v1763, 0.0
    %v1806 = vmax.f32 %v1768, 0.0
    %v1807 = vmax.f32 %v1773, 0.0
    %v1808 = vmax.f32 %v1778, 0.0
    %v1809 = vmax.f32 %v1783, 0.0
    %v1810 = vmax.f32 %v1788, 0.0
    %v1811 = vmax.f32 %v1793, 0.0
    %v1812 = vld [vmem:[%s8] sm:$0x1]
    %v1814 = vlaneseq
    %v1815 = vshrl.u32 %v1814, 7
    %v1816 = vsub.s32 0, %v1815
    %v1817 = vrot.slane %v1812, %v1816
    %v1819 = vmul.f32 %v1796, %v1817
    %v1820 = vmul.f32 %v1797, %v1817
    %v1821 = vmul.f32 %v1798, %v1817
    %v1822 = vmul.f32 %v1799, %v1817
    %v1823 = vmul.f32 %v1800, %v1817
    %v1824 = vmul.f32 %v1801, %v1817
    %v1825 = vmul.f32 %v1802, %v1817
    %v1826 = vmul.f32 %v1803, %v1817
    %v1827 = vmul.f32 %v1804, %v1817
    %v1828 = vmul.f32 %v1805, %v1817
    %v1829 = vmul.f32 %v1806, %v1817
    %v1830 = vmul.f32 %v1807, %v1817
    %v1831 = vmul.f32 %v1808, %v1817
    %v1832 = vmul.f32 %v1809, %v1817
    %v1833 = vmul.f32 %v1810, %v1817
    %v1834 = vmul.f32 %v1811, %v1817
    %v1835 = vsel %vm607, %v1819, 0.0
    %1836 = vadd.xlane.f32.xlu0 %v1835
    %v1837 = vpop.xlane.xlu0 %1836
    %v1838 = vsel %vm607, %v1820, 0.0
    %1839 = vadd.xlane.f32.xlu0 %v1838
    %v1840 = vpop.xlane.xlu0 %1839
    %v1841 = vsel %vm607, %v1821, 0.0
    %1842 = vadd.xlane.f32.xlu0 %v1841
    %v1843 = vpop.xlane.xlu0 %1842
    %v1844 = vsel %vm607, %v1822, 0.0
    %1845 = vadd.xlane.f32.xlu0 %v1844
    %v1846 = vpop.xlane.xlu0 %1845
    %v1847 = vsel %vm607, %v1823, 0.0
    %1848 = vadd.xlane.f32.xlu0 %v1847
    %v1849 = vpop.xlane.xlu0 %1848
    %v1850 = vsel %vm607, %v1824, 0.0
    %1851 = vadd.xlane.f32.xlu0 %v1850
    %v1852 = vpop.xlane.xlu0 %1851
    %v1853 = vsel %vm607, %v1825, 0.0
    %1854 = vadd.xlane.f32.xlu0 %v1853
    %v1855 = vpop.xlane.xlu0 %1854
    %v1856 = vsel %vm607, %v1826, 0.0
    %1857 = vadd.xlane.f32.xlu0 %v1856
    %v1858 = vpop.xlane.xlu0 %1857
    %v1859 = vsel %vm607, %v1827, 0.0
    %1860 = vadd.xlane.f32.xlu0 %v1859
    %v1861 = vpop.xlane.xlu0 %1860
    %v1862 = vsel %vm607, %v1828, 0.0
    %1863 = vadd.xlane.f32.xlu0 %v1862
    %v1864 = vpop.xlane.xlu0 %1863
    %v1865 = vsel %vm607, %v1829, 0.0
    %1866 = vadd.xlane.f32.xlu0 %v1865
    %v1867 = vpop.xlane.xlu0 %1866
    %v1868 = vsel %vm607, %v1830, 0.0
    %1869 = vadd.xlane.f32.xlu0 %v1868
    %v1870 = vpop.xlane.xlu0 %1869
    %v1871 = vsel %vm607, %v1831, 0.0
    %1872 = vadd.xlane.f32.xlu0 %v1871
    %v1873 = vpop.xlane.xlu0 %1872
    %v1874 = vsel %vm607, %v1832, 0.0
    %1875 = vadd.xlane.f32.xlu0 %v1874
    %v1876 = vpop.xlane.xlu0 %1875
    %v1877 = vsel %vm607, %v1833, 0.0
    %1878 = vadd.xlane.f32.xlu0 %v1877
    %v1879 = vpop.xlane.xlu0 %1878
    %v1880 = vsel %vm607, %v1834, 0.0
    %1881 = vadd.xlane.f32.xlu0 %v1880
    %v1882 = vpop.xlane.xlu0 %1881
    %v1883 = vld [vmem:[#allocation2] sm:$0x1]
    %v1885 = vlaneseq
    %v1886 = vshrl.u32 %v1885, 7
    %v1887 = vsub.s32 0, %v1886
    %v1888 = vrot.slane %v1883, %v1887
    %1889 = vset.pattern.permute.xlu0 0
    %1890 = vperm.xlu0 %1889, %v1888
    %v1891 = vpop.permute.xlu0 %1890
    %v1893 = vadd.f32 %v1837, %v1891
    %v1894 = vadd.f32 %v1840, %v1891
    %v1895 = vadd.f32 %v1843, %v1891
    %v1896 = vadd.f32 %v1846, %v1891
    %v1897 = vadd.f32 %v1849, %v1891
    %v1898 = vadd.f32 %v1852, %v1891
    %v1899 = vadd.f32 %v1855, %v1891
    %v1900 = vadd.f32 %v1858, %v1891
    %v1901 = vadd.f32 %v1861, %v1891
    %v1902 = vadd.f32 %v1864, %v1891
    %v1903 = vadd.f32 %v1867, %v1891
    %v1904 = vadd.f32 %v1870, %v1891
    %v1905 = vadd.f32 %v1873, %v1891
    %v1906 = vadd.f32 %v1876, %v1891
    %v1907 = vadd.f32 %v1879, %v1891
    %v1908 = vadd.f32 %v1882, %v1891
    %v1925 = vlaneseq
    %v1926 = vand.u32 %v1925, 127
    %v1927 = vlaneseq
    %v1928 = vshrl.u32 %v1927, 7
    %v1929 = vsub.s32 %v1926, %v1928
    %v1930 = vrot.slane %v1893, %v1929
    %v1931 = vlaneseq
    %v1932 = vshrl.u32 %v1931, 7
    %v1933 = vsub.s32 %v1926, %v1932
    %v1934 = vrot.slane %v1894, %v1933
    %v1935 = vlaneseq
    %v1936 = vshrl.u32 %v1935, 7
    %v1937 = vsub.s32 %v1926, %v1936
    %v1938 = vrot.slane %v1895, %v1937
    %v1939 = vlaneseq
    %v1940 = vshrl.u32 %v1939, 7
    %v1941 = vsub.s32 %v1926, %v1940
    %v1942 = vrot.slane %v1896, %v1941
    %v1943 = vlaneseq
    %v1944 = vshrl.u32 %v1943, 7
    %v1945 = vsub.s32 %v1926, %v1944
    %v1946 = vrot.slane %v1897, %v1945
    %v1947 = vlaneseq
    %v1948 = vshrl.u32 %v1947, 7
    %v1949 = vsub.s32 %v1926, %v1948
    %v1950 = vrot.slane %v1898, %v1949
    %v1951 = vlaneseq
    %v1952 = vshrl.u32 %v1951, 7
    %v1953 = vsub.s32 %v1926, %v1952
    %v1954 = vrot.slane %v1899, %v1953
    %v1955 = vlaneseq
    %v1956 = vshrl.u32 %v1955, 7
    %v1957 = vsub.s32 %v1926, %v1956
    %v1958 = vrot.slane %v1900, %v1957
    %v1959 = vlaneseq
    %v1960 = vshrl.u32 %v1959, 7
    %v1961 = vsub.s32 %v1926, %v1960
    %v1962 = vrot.slane %v1901, %v1961
    %v1963 = vlaneseq
    %v1964 = vshrl.u32 %v1963, 7
    %v1965 = vsub.s32 %v1926, %v1964
    %v1966 = vrot.slane %v1902, %v1965
    %v1967 = vlaneseq
    %v1968 = vshrl.u32 %v1967, 7
    %v1969 = vsub.s32 %v1926, %v1968
    %v1970 = vrot.slane %v1903, %v1969
    %v1971 = vlaneseq
    %v1972 = vshrl.u32 %v1971, 7
    %v1973 = vsub.s32 %v1926, %v1972
    %v1974 = vrot.slane %v1904, %v1973
    %v1975 = vlaneseq
    %v1976 = vshrl.u32 %v1975, 7
    %v1977 = vsub.s32 %v1926, %v1976
    %v1978 = vrot.slane %v1905, %v1977
    %v1979 = vlaneseq
    %v1980 = vshrl.u32 %v1979, 7
    %v1981 = vsub.s32 %v1926, %v1980
    %v1982 = vrot.slane %v1906, %v1981
    %v1983 = vlaneseq
    %v1984 = vshrl.u32 %v1983, 7
    %v1985 = vsub.s32 %v1926, %v1984
    %v1986 = vrot.slane %v1907, %v1985
    %v1987 = vlaneseq
    %v1988 = vshrl.u32 %v1987, 7
    %v1989 = vsub.s32 %v1926, %v1988
    %v1990 = vrot.slane %v1908, %v1989
    %vm1991 = vcmask 1041409
    %v1992 = vsel %vm1991, %v1934, %v1930
    %vm1993 = vcmask 1042434
    %v1994 = vsel %vm1993, %v1938, %v1992
    %vm1995 = vcmask 1043459
    %v1996 = vsel %vm1995, %v1942, %v1994
    %vm1997 = vcmask 1044484
    %v1998 = vsel %vm1997, %v1946, %v1996
    %vm1999 = vcmask 1045509
    %v2000 = vsel %vm1999, %v1950, %v1998
    %vm2001 = vcmask 1046534
    %v2002 = vsel %vm2001, %v1954, %v2000
    %vm2003 = vcmask 1047559
    %v2004 = vsel %vm2003, %v1958, %v2002
    %v2005 = vsel %vm1991, %v1966, %v1962
    %v2006 = vsel %vm1993, %v1970, %v2005
    %v2007 = vsel %vm1995, %v1974, %v2006
    %v2008 = vsel %vm1997, %v1978, %v2007
    %v2009 = vsel %vm1999, %v1982, %v2008
    %v2010 = vsel %vm2001, %v1986, %v2009
    %v2011 = vsel %vm2003, %v1990, %v2010
    %vm2014 = vcmask 64512
    %v2015 = vsel %vm2014, %v2004, -inf
    %2016 = vmax.xlane.f32.xlu0 %v2015
    %v2017 = vpop.xlane.xlu0 %2016
    %v2018 = vsel %vm2014, %v2011, -inf
    %2019 = vmax.xlane.f32.xlu0 %v2018
    %v2020 = vpop.xlane.xlu0 %2019
    %v2023 = vlaneseq
    %v2024 = vshrl.u32 %v2023, 7
    %v2025 = vsub.s32 0, %v2024
    %v2026 = vrot.slane %v2017, %v2025
    %v2027 = vlaneseq
    %v2028 = vshrl.u32 %v2027, 7
    %v2029 = vsub.s32 1, %v2028
    %v2030 = vrot.slane %v2017, %v2029
    %v2031 = vlaneseq
    %v2032 = vshrl.u32 %v2031, 7
    %v2033 = vsub.s32 2, %v2032
    %v2034 = vrot.slane %v2017, %v2033
    %v2035 = vlaneseq
    %v2036 = vshrl.u32 %v2035, 7
    %v2037 = vsub.s32 3, %v2036
    %v2038 = vrot.slane %v2017, %v2037
    %v2039 = vlaneseq
    %v2040 = vshrl.u32 %v2039, 7
    %v2041 = vsub.s32 4, %v2040
    %v2042 = vrot.slane %v2017, %v2041
    %v2043 = vlaneseq
    %v2044 = vshrl.u32 %v2043, 7
    %v2045 = vsub.s32 5, %v2044
    %v2046 = vrot.slane %v2017, %v2045
    %v2047 = vlaneseq
    %v2048 = vshrl.u32 %v2047, 7
    %v2049 = vsub.s32 6, %v2048
    %v2050 = vrot.slane %v2017, %v2049
    %v2051 = vlaneseq
    %v2052 = vshrl.u32 %v2051, 7
    %v2053 = vsub.s32 7, %v2052
    %v2054 = vrot.slane %v2017, %v2053
    %v2055 = vlaneseq
    %v2056 = vshrl.u32 %v2055, 7
    %v2057 = vsub.s32 0, %v2056
    %v2058 = vrot.slane %v2020, %v2057
    %v2059 = vlaneseq
    %v2060 = vshrl.u32 %v2059, 7
    %v2061 = vsub.s32 1, %v2060
    %v2062 = vrot.slane %v2020, %v2061
    %v2063 = vlaneseq
    %v2064 = vshrl.u32 %v2063, 7
    %v2065 = vsub.s32 2, %v2064
    %v2066 = vrot.slane %v2020, %v2065
    %v2067 = vlaneseq
    %v2068 = vshrl.u32 %v2067, 7
    %v2069 = vsub.s32 3, %v2068
    %v2070 = vrot.slane %v2020, %v2069
    %v2071 = vlaneseq
    %v2072 = vshrl.u32 %v2071, 7
    %v2073 = vsub.s32 4, %v2072
    %v2074 = vrot.slane %v2020, %v2073
    %v2075 = vlaneseq
    %v2076 = vshrl.u32 %v2075, 7
    %v2077 = vsub.s32 5, %v2076
    %v2078 = vrot.slane %v2020, %v2077
    %v2079 = vlaneseq
    %v2080 = vshrl.u32 %v2079, 7
    %v2081 = vsub.s32 6, %v2080
    %v2082 = vrot.slane %v2020, %v2081
    %v2083 = vlaneseq
    %v2084 = vshrl.u32 %v2083, 7
    %v2085 = vsub.s32 7, %v2084
    %v2086 = vrot.slane %v2020, %v2085
    %v2103 = vsub.f32 %v1893, %v2026
    %v2104 = vsub.f32 %v1894, %v2030
    %v2105 = vsub.f32 %v1895, %v2034
    %v2106 = vsub.f32 %v1896, %v2038
    %v2107 = vsub.f32 %v1897, %v2042
    %v2108 = vsub.f32 %v1898, %v2046
    %v2109 = vsub.f32 %v1899, %v2050
    %v2110 = vsub.f32 %v1900, %v2054
    %v2111 = vsub.f32 %v1901, %v2058
    %v2112 = vsub.f32 %v1902, %v2062
    %v2113 = vsub.f32 %v1903, %v2066
    %v2114 = vsub.f32 %v1904, %v2070
    %v2115 = vsub.f32 %v1905, %v2074
    %v2116 = vsub.f32 %v1906, %v2078
    %v2117 = vsub.f32 %v1907, %v2082
    %v2118 = vsub.f32 %v1908, %v2086
    %v2119 = vmul.f32 %v2103, 1.442695
    %v2120 = vpow.pop %v2119
    %v2121 = vmul.f32 %v2104, 1.442695
    %v2122 = vpow.pop %v2121
    %v2123 = vmul.f32 %v2105, 1.442695
    %v2124 = vpow.pop %v2123
    %v2125 = vmul.f32 %v2106, 1.442695
    %v2126 = vpow.pop %v2125
    %v2127 = vmul.f32 %v2107, 1.442695
    %v2128 = vpow.pop %v2127
    %v2129 = vmul.f32 %v2108, 1.442695
    %v2130 = vpow.pop %v2129
    %v2131 = vmul.f32 %v2109, 1.442695
    %v2132 = vpow.pop %v2131
    %v2133 = vmul.f32 %v2110, 1.442695
    %v2134 = vpow.pop %v2133
    %v2135 = vmul.f32 %v2111, 1.442695
    %v2136 = vpow.pop %v2135
    %v2137 = vmul.f32 %v2112, 1.442695
    %v2138 = vpow.pop %v2137
    %v2139 = vmul.f32 %v2113, 1.442695
    %v2140 = vpow.pop %v2139
    %v2141 = vmul.f32 %v2114, 1.442695
    %v2142 = vpow.pop %v2141
    %v2143 = vmul.f32 %v2115, 1.442695
    %v2144 = vpow.pop %v2143
    %v2145 = vmul.f32 %v2116, 1.442695
    %v2146 = vpow.pop %v2145
    %v2147 = vmul.f32 %v2117, 1.442695
    %v2148 = vpow.pop %v2147
    %v2149 = vmul.f32 %v2118, 1.442695
    %v2150 = vpow.pop %v2149
    %2167 = vset.pattern.permute.xlu0 0
    %2168 = vperm.xlu0 %2167, %v2120
    %v2169 = vpop.permute.xlu0 %2168
    %2170 = vset.pattern.permute.xlu0 0
    %2171 = vperm.xlu0 %2170, %v2122
    %v2172 = vpop.permute.xlu0 %2171
    %2173 = vset.pattern.permute.xlu0 0
    %2174 = vperm.xlu0 %2173, %v2124
    %v2175 = vpop.permute.xlu0 %2174
    %2176 = vset.pattern.permute.xlu0 0
    %2177 = vperm.xlu0 %2176, %v2126
    %v2178 = vpop.permute.xlu0 %2177
    %2179 = vset.pattern.permute.xlu0 0
    %2180 = vperm.xlu0 %2179, %v2128
    %v2181 = vpop.permute.xlu0 %2180
    %2182 = vset.pattern.permute.xlu0 0
    %2183 = vperm.xlu0 %2182, %v2130
    %v2184 = vpop.permute.xlu0 %2183
    %2185 = vset.pattern.permute.xlu0 0
    %2186 = vperm.xlu0 %2185, %v2132
    %v2187 = vpop.permute.xlu0 %2186
    %2188 = vset.pattern.permute.xlu0 0
    %2189 = vperm.xlu0 %2188, %v2134
    %v2190 = vpop.permute.xlu0 %2189
    %2191 = vset.pattern.permute.xlu0 0
    %2192 = vperm.xlu0 %2191, %v2136
    %v2193 = vpop.permute.xlu0 %2192
    %2194 = vset.pattern.permute.xlu0 0
    %2195 = vperm.xlu0 %2194, %v2138
    %v2196 = vpop.permute.xlu0 %2195
    %2197 = vset.pattern.permute.xlu0 0
    %2198 = vperm.xlu0 %2197, %v2140
    %v2199 = vpop.permute.xlu0 %2198
    %2200 = vset.pattern.permute.xlu0 0
    %2201 = vperm.xlu0 %2200, %v2142
    %v2202 = vpop.permute.xlu0 %2201
    %2203 = vset.pattern.permute.xlu0 0
    %2204 = vperm.xlu0 %2203, %v2144
    %v2205 = vpop.permute.xlu0 %2204
    %2206 = vset.pattern.permute.xlu0 0
    %2207 = vperm.xlu0 %2206, %v2146
    %v2208 = vpop.permute.xlu0 %2207
    %2209 = vset.pattern.permute.xlu0 0
    %2210 = vperm.xlu0 %2209, %v2148
    %v2211 = vpop.permute.xlu0 %2210
    %2212 = vset.pattern.permute.xlu0 0
    %2213 = vperm.xlu0 %2212, %v2150
    %v2214 = vpop.permute.xlu0 %2213
    %v2215 = vlaneseq
    %v2216 = vshrl.u32 %v2215, 7
    %v2217 = vsub.s32 %v1926, %v2216
    %v2218 = vrot.slane %v2169, %v2217
    %v2219 = vlaneseq
    %v2220 = vshrl.u32 %v2219, 7
    %v2221 = vsub.s32 %v1926, %v2220
    %v2222 = vrot.slane %v2172, %v2221
    %v2223 = vlaneseq
    %v2224 = vshrl.u32 %v2223, 7
    %v2225 = vsub.s32 %v1926, %v2224
    %v2226 = vrot.slane %v2175, %v2225
    %v2227 = vlaneseq
    %v2228 = vshrl.u32 %v2227, 7
    %v2229 = vsub.s32 %v1926, %v2228
    %v2230 = vrot.slane %v2178, %v2229
    %v2231 = vlaneseq
    %v2232 = vshrl.u32 %v2231, 7
    %v2233 = vsub.s32 %v1926, %v2232
    %v2234 = vrot.slane %v2181, %v2233
    %v2235 = vlaneseq
    %v2236 = vshrl.u32 %v2235, 7
    %v2237 = vsub.s32 %v1926, %v2236
    %v2238 = vrot.slane %v2184, %v2237
    %v2239 = vlaneseq
    %v2240 = vshrl.u32 %v2239, 7
    %v2241 = vsub.s32 %v1926, %v2240
    %v2242 = vrot.slane %v2187, %v2241
    %v2243 = vlaneseq
    %v2244 = vshrl.u32 %v2243, 7
    %v2245 = vsub.s32 %v1926, %v2244
    %v2246 = vrot.slane %v2190, %v2245
    %v2247 = vlaneseq
    %v2248 = vshrl.u32 %v2247, 7
    %v2249 = vsub.s32 %v1926, %v2248
    %v2250 = vrot.slane %v2193, %v2249
    %v2251 = vlaneseq
    %v2252 = vshrl.u32 %v2251, 7
    %v2253 = vsub.s32 %v1926, %v2252
    %v2254 = vrot.slane %v2196, %v2253
    %v2255 = vlaneseq
    %v2256 = vshrl.u32 %v2255, 7
    %v2257 = vsub.s32 %v1926, %v2256
    %v2258 = vrot.slane %v2199, %v2257
    %v2259 = vlaneseq
    %v2260 = vshrl.u32 %v2259, 7
    %v2261 = vsub.s32 %v1926, %v2260
    %v2262 = vrot.slane %v2202, %v2261
    %v2263 = vlaneseq
    %v2264 = vshrl.u32 %v2263, 7
    %v2265 = vsub.s32 %v1926, %v2264
    %v2266 = vrot.slane %v2205, %v2265
    %v2267 = vlaneseq
    %v2268 = vshrl.u32 %v2267, 7
    %v2269 = vsub.s32 %v1926, %v2268
    %v2270 = vrot.slane %v2208, %v2269
    %v2271 = vlaneseq
    %v2272 = vshrl.u32 %v2271, 7
    %v2273 = vsub.s32 %v1926, %v2272
    %v2274 = vrot.slane %v2211, %v2273
    %v2275 = vlaneseq
    %v2276 = vshrl.u32 %v2275, 7
    %v2277 = vsub.s32 %v1926, %v2276
    %v2278 = vrot.slane %v2214, %v2277
    %v2279 = vsel %vm1991, %v2222, %v2218
    %v2280 = vsel %vm1993, %v2226, %v2279
    %v2281 = vsel %vm1995, %v2230, %v2280
    %v2282 = vsel %vm1997, %v2234, %v2281
    %v2283 = vsel %vm1999, %v2238, %v2282
    %v2284 = vsel %vm2001, %v2242, %v2283
    %v2285 = vsel %vm2003, %v2246, %v2284
    %v2286 = vsel %vm1991, %v2254, %v2250
    %v2287 = vsel %vm1993, %v2258, %v2286
    %v2288 = vsel %vm1995, %v2262, %v2287
    %v2289 = vsel %vm1997, %v2266, %v2288
    %v2290 = vsel %vm1999, %v2270, %v2289
    %v2291 = vsel %vm2001, %v2274, %v2290
    %v2292 = vsel %vm2003, %v2278, %v2291
    %v2295 = vsel %vm2014, %v2285, 0.0
    %2296 = vadd.xlane.f32.xlu0 %v2295
    %v2297 = vpop.xlane.xlu0 %2296
    %v2298 = vsel %vm2014, %v2292, 0.0
    %2299 = vadd.xlane.f32.xlu0 %v2298
    %v2300 = vpop.xlane.xlu0 %2299
    %v2301 = vrcp.pop %v2297
    %v2302 = vrcp.pop %v2300
    %v2305 = vlaneseq
    %v2306 = vshrl.u32 %v2305, 7
    %v2307 = vsub.s32 0, %v2306
    %v2308 = vrot.slane %v2301, %v2307
    %v2309 = vlaneseq
    %v2310 = vshrl.u32 %v2309, 7
    %v2311 = vsub.s32 1, %v2310
    %v2312 = vrot.slane %v2301, %v2311
    %v2313 = vlaneseq
    %v2314 = vshrl.u32 %v2313, 7
    %v2315 = vsub.s32 2, %v2314
    %v2316 = vrot.slane %v2301, %v2315
    %v2317 = vlaneseq
    %v2318 = vshrl.u32 %v2317, 7
    %v2319 = vsub.s32 3, %v2318
    %v2320 = vrot.slane %v2301, %v2319
    %v2321 = vlaneseq
    %v2322 = vshrl.u32 %v2321, 7
    %v2323 = vsub.s32 4, %v2322
    %v2324 = vrot.slane %v2301, %v2323
    %v2325 = vlaneseq
    %v2326 = vshrl.u32 %v2325, 7
    %v2327 = vsub.s32 5, %v2326
    %v2328 = vrot.slane %v2301, %v2327
    %v2329 = vlaneseq
    %v2330 = vshrl.u32 %v2329, 7
    %v2331 = vsub.s32 6, %v2330
    %v2332 = vrot.slane %v2301, %v2331
    %v2333 = vlaneseq
    %v2334 = vshrl.u32 %v2333, 7
    %v2335 = vsub.s32 7, %v2334
    %v2336 = vrot.slane %v2301, %v2335
    %v2337 = vlaneseq
    %v2338 = vshrl.u32 %v2337, 7
    %v2339 = vsub.s32 0, %v2338
    %v2340 = vrot.slane %v2302, %v2339
    %v2341 = vlaneseq
    %v2342 = vshrl.u32 %v2341, 7
    %v2343 = vsub.s32 1, %v2342
    %v2344 = vrot.slane %v2302, %v2343
    %v2345 = vlaneseq
    %v2346 = vshrl.u32 %v2345, 7
    %v2347 = vsub.s32 2, %v2346
    %v2348 = vrot.slane %v2302, %v2347
    %v2349 = vlaneseq
    %v2350 = vshrl.u32 %v2349, 7
    %v2351 = vsub.s32 3, %v2350
    %v2352 = vrot.slane %v2302, %v2351
    %v2353 = vlaneseq
    %v2354 = vshrl.u32 %v2353, 7
    %v2355 = vsub.s32 4, %v2354
    %v2356 = vrot.slane %v2302, %v2355
    %v2357 = vlaneseq
    %v2358 = vshrl.u32 %v2357, 7
    %v2359 = vsub.s32 5, %v2358
    %v2360 = vrot.slane %v2302, %v2359
    %v2361 = vlaneseq
    %v2362 = vshrl.u32 %v2361, 7
    %v2363 = vsub.s32 6, %v2362
    %v2364 = vrot.slane %v2302, %v2363
    %v2365 = vlaneseq
    %v2366 = vshrl.u32 %v2365, 7
    %v2367 = vsub.s32 7, %v2366
    %v2368 = vrot.slane %v2302, %v2367
    %v2385 = vmul.f32 %v2120, %v2308
    %v2386 = vmul.f32 %v2122, %v2312
    %v2387 = vmul.f32 %v2124, %v2316
    %v2388 = vmul.f32 %v2126, %v2320
    %v2389 = vmul.f32 %v2128, %v2324
    %v2390 = vmul.f32 %v2130, %v2328
    %v2391 = vmul.f32 %v2132, %v2332
    %v2392 = vmul.f32 %v2134, %v2336
    %v2393 = vmul.f32 %v2136, %v2340
    %v2394 = vmul.f32 %v2138, %v2344
    %v2395 = vmul.f32 %v2140, %v2348
    %v2396 = vmul.f32 %v2142, %v2352
    %v2397 = vmul.f32 %v2144, %v2356
    %v2398 = vmul.f32 %v2146, %v2360
    %v2399 = vmul.f32 %v2148, %v2364
    %v2400 = vmul.f32 %v2150, %v2368
    %2402 = vset.pattern.permute.xlu0 0
    %2403 = vperm.xlu0 %2402, %v2385
    %v2404 = vpop.permute.xlu0 %2403
    %v2405 = vlaneseq
    %v2406 = vshrl.u32 %v2405, 7
    %v2407 = vsub.s32 %v1926, %v2406
    %v2408 = vrot.slane %v2404, %v2407
    %v2409 = vsel %vm2014, %v2408, 0
    %2411 = vmatprep.subr.mxu0 0.0
    %2412 = vmatpush1.msra.mxu0 0.0
    %2413 = vmatprep.subr.mxu0 0.0
    %2414 = vmatpush1.msra.mxu0 0.0
    %2415 = vmatprep.subr.mxu0 0.0
    %2416 = vmatpush1.msra.mxu0 0.0
    %2417 = vmatprep.subr.mxu0 0.0
    %2418 = vmatpush1.msra.mxu0 0.0
    %2419 = vmatprep.subr.mxu0 0.0
    %2420 = vmatpush1.msra.mxu0 0.0
    %2421 = vmatprep.subr.mxu0 0.0
    %2422 = vmatpush1.msra.mxu0 0.0
    %2423 = vmatprep.subr.mxu0 0.0
    %2424 = vmatpush1.msra.mxu0 0.0
    %2425 = vmatprep.subr.mxu0 0.0
    %2426 = vmatpush1.msra.mxu0 0.0
    %2427 = vmatprep.subr.mxu0 0.0
    %2428 = vmatpush1.msra.mxu0 0.0
    %2429 = vmatprep.subr.mxu0 0.0
    %2430 = vmatpush1.msra.mxu0 0.0
    %2431 = vmatprep.subr.mxu0 0.0
    %2432 = vmatpush1.msra.mxu0 0.0
    %2433 = vmatprep.subr.mxu0 0.0
    %2434 = vmatpush1.msra.mxu0 0.0
    %2435 = vmatprep.subr.mxu0 0.0
    %2436 = vmatpush1.msra.mxu0 0.0
    %2437 = vmatprep.subr.mxu0 0.0
    %2438 = vmatpush1.msra.mxu0 0.0
    %2439 = vmatprep.subr.mxu0 0.0
    %2440 = vmatpush1.msra.mxu0 0.0
    %2441 = vmatprep.subr.mxu0 0.0
    %2442 = vmatpush1.msra.mxu0 %v1796
    %2443 = vmatprep.subr.mxu0 0.0
    %2444 = vmatpush2.msra.mxu0 0.0
    %2445 = vmatprep.subr.mxu0 0.0
    %2446 = vmatpush2.msra.mxu0 0.0
    %2447 = vmatprep.subr.mxu0 0.0
    %2448 = vmatpush2.msra.mxu0 0.0
    %2449 = vmatprep.subr.mxu0 0.0
    %2450 = vmatpush2.msra.mxu0 0.0
    %2451 = vmatprep.subr.mxu0 0.0
    %2452 = vmatpush2.msra.mxu0 0.0
    %2453 = vmatprep.subr.mxu0 0.0
    %2454 = vmatpush2.msra.mxu0 0.0
    %2455 = vmatprep.subr.mxu0 0.0
    %2456 = vmatpush2.msra.mxu0 0.0
    %2457 = vmatprep.subr.mxu0 0.0
    %2458 = vmatpush2.msra.mxu0 0.0
    %2459 = vmatprep.subr.mxu0 0.0
    %2460 = vmatpush2.msra.mxu0 0.0
    %2461 = vmatprep.subr.mxu0 0.0
    %2462 = vmatpush2.msra.mxu0 0.0
    %2463 = vmatprep.subr.mxu0 0.0
    %2464 = vmatpush2.msra.mxu0 0.0
    %2465 = vmatprep.subr.mxu0 0.0
    %2466 = vmatpush2.msra.mxu0 0.0
    %2467 = vmatprep.subr.mxu0 0.0
    %2468 = vmatpush2.msra.mxu0 0.0
    %2469 = vmatprep.subr.mxu0 0.0
    %2470 = vmatpush2.msra.mxu0 0.0
    %2471 = vmatprep.subr.mxu0 0.0
    %2472 = vmatpush2.msra.mxu0 0.0
    %2473 = vmatprep.subr.mxu0 0.0
    %2474 = vmatpush2.msra.mxu0 0.0
    %2475 = vmatprep.mubr.f32.mxu0 0.0
    %2476 = vmatmul.mubr.f32.gmra.mxu0 %v2409
    %v2477 = vpop.f32.mrf.mxu0
    %v2478 = vadd.f32 0.0, %v2477
    %v2479 = vpop.f32.mrf.mxu0
    %2480 = vdwg.mxu0
    %2482 = vset.pattern.permute.xlu0 0
    %2483 = vperm.xlu0 %2482, %v2386
    %v2484 = vpop.permute.xlu0 %2483
    %v2485 = vlaneseq
    %v2486 = vshrl.u32 %v2485, 7
    %v2487 = vsub.s32 %v1926, %v2486
    %v2488 = vrot.slane %v2484, %v2487
    %v2489 = vsel %vm2014, %v2488, 0
    %2491 = vmatprep.subr.mxu0 0.0
    %2492 = vmatpush1.msra.mxu0 0.0
    %2493 = vmatprep.subr.mxu0 0.0
    %2494 = vmatpush1.msra.mxu0 0.0
    %2495 = vmatprep.subr.mxu0 0.0
    %2496 = vmatpush1.msra.mxu0 0.0
    %2497 = vmatprep.subr.mxu0 0.0
    %2498 = vmatpush1.msra.mxu0 0.0
    %2499 = vmatprep.subr.mxu0 0.0
    %2500 = vmatpush1.msra.mxu0 0.0
    %2501 = vmatprep.subr.mxu0 0.0
    %2502 = vmatpush1.msra.mxu0 0.0
    %2503 = vmatprep.subr.mxu0 0.0
    %2504 = vmatpush1.msra.mxu0 0.0
    %2505 = vmatprep.subr.mxu0 0.0
    %2506 = vmatpush1.msra.mxu0 0.0
    %2507 = vmatprep.subr.mxu0 0.0
    %2508 = vmatpush1.msra.mxu0 0.0
    %2509 = vmatprep.subr.mxu0 0.0
    %2510 = vmatpush1.msra.mxu0 0.0
    %2511 = vmatprep.subr.mxu0 0.0
    %2512 = vmatpush1.msra.mxu0 0.0
    %2513 = vmatprep.subr.mxu0 0.0
    %2514 = vmatpush1.msra.mxu0 0.0
    %2515 = vmatprep.subr.mxu0 0.0
    %2516 = vmatpush1.msra.mxu0 0.0
    %2517 = vmatprep.subr.mxu0 0.0
    %2518 = vmatpush1.msra.mxu0 0.0
    %2519 = vmatprep.subr.mxu0 0.0
    %2520 = vmatpush1.msra.mxu0 0.0
    %2521 = vmatprep.subr.mxu0 0.0
    %2522 = vmatpush1.msra.mxu0 %v1797
    %2523 = vmatprep.subr.mxu0 0.0
    %2524 = vmatpush2.msra.mxu0 0.0
    %2525 = vmatprep.subr.mxu0 0.0
    %2526 = vmatpush2.msra.mxu0 0.0
    %2527 = vmatprep.subr.mxu0 0.0
    %2528 = vmatpush2.msra.mxu0 0.0
    %2529 = vmatprep.subr.mxu0 0.0
    %2530 = vmatpush2.msra.mxu0 0.0
    %2531 = vmatprep.subr.mxu0 0.0
    %2532 = vmatpush2.msra.mxu0 0.0
    %2533 = vmatprep.subr.mxu0 0.0
    %2534 = vmatpush2.msra.mxu0 0.0
    %2535 = vmatprep.subr.mxu0 0.0
    %2536 = vmatpush2.msra.mxu0 0.0
    %2537 = vmatprep.subr.mxu0 0.0
    %2538 = vmatpush2.msra.mxu0 0.0
    %2539 = vmatprep.subr.mxu0 0.0
    %2540 = vmatpush2.msra.mxu0 0.0
    %2541 = vmatprep.subr.mxu0 0.0
    %2542 = vmatpush2.msra.mxu0 0.0
    %2543 = vmatprep.subr.mxu0 0.0
    %2544 = vmatpush2.msra.mxu0 0.0
    %2545 = vmatprep.subr.mxu0 0.0
    %2546 = vmatpush2.msra.mxu0 0.0
    %2547 = vmatprep.subr.mxu0 0.0
    %2548 = vmatpush2.msra.mxu0 0.0
    %2549 = vmatprep.subr.mxu0 0.0
    %2550 = vmatpush2.msra.mxu0 0.0
    %2551 = vmatprep.subr.mxu0 0.0
    %2552 = vmatpush2.msra.mxu0 0.0
    %2553 = vmatprep.subr.mxu0 0.0
    %2554 = vmatpush2.msra.mxu0 0.0
    %2555 = vmatprep.mubr.f32.mxu0 0.0
    %2556 = vmatmul.mubr.f32.gmra.mxu0 %v2489
    %v2557 = vpop.f32.mrf.mxu0
    %v2558 = vadd.f32 0.0, %v2557
    %v2559 = vpop.f32.mrf.mxu0
    %2560 = vdwg.mxu0
    %2562 = vset.pattern.permute.xlu0 0
    %2563 = vperm.xlu0 %2562, %v2387
    %v2564 = vpop.permute.xlu0 %2563
    %v2565 = vlaneseq
    %v2566 = vshrl.u32 %v2565, 7
    %v2567 = vsub.s32 %v1926, %v2566
    %v2568 = vrot.slane %v2564, %v2567
    %v2569 = vsel %vm2014, %v2568, 0
    %2571 = vmatprep.subr.mxu0 0.0
    %2572 = vmatpush1.msra.mxu0 0.0
    %2573 = vmatprep.subr.mxu0 0.0
    %2574 = vmatpush1.msra.mxu0 0.0
    %2575 = vmatprep.subr.mxu0 0.0
    %2576 = vmatpush1.msra.mxu0 0.0
    %2577 = vmatprep.subr.mxu0 0.0
    %2578 = vmatpush1.msra.mxu0 0.0
    %2579 = vmatprep.subr.mxu0 0.0
    %2580 = vmatpush1.msra.mxu0 0.0
    %2581 = vmatprep.subr.mxu0 0.0
    %2582 = vmatpush1.msra.mxu0 0.0
    %2583 = vmatprep.subr.mxu0 0.0
    %2584 = vmatpush1.msra.mxu0 0.0
    %2585 = vmatprep.subr.mxu0 0.0
    %2586 = vmatpush1.msra.mxu0 0.0
    %2587 = vmatprep.subr.mxu0 0.0
    %2588 = vmatpush1.msra.mxu0 0.0
    %2589 = vmatprep.subr.mxu0 0.0
    %2590 = vmatpush1.msra.mxu0 0.0
    %2591 = vmatprep.subr.mxu0 0.0
    %2592 = vmatpush1.msra.mxu0 0.0
    %2593 = vmatprep.subr.mxu0 0.0
    %2594 = vmatpush1.msra.mxu0 0.0
    %2595 = vmatprep.subr.mxu0 0.0
    %2596 = vmatpush1.msra.mxu0 0.0
    %2597 = vmatprep.subr.mxu0 0.0
    %2598 = vmatpush1.msra.mxu0 0.0
    %2599 = vmatprep.subr.mxu0 0.0
    %2600 = vmatpush1.msra.mxu0 0.0
    %2601 = vmatprep.subr.mxu0 0.0
    %2602 = vmatpush1.msra.mxu0 %v1798
    %2603 = vmatprep.subr.mxu0 0.0
    %2604 = vmatpush2.msra.mxu0 0.0
    %2605 = vmatprep.subr.mxu0 0.0
    %2606 = vmatpush2.msra.mxu0 0.0
    %2607 = vmatprep.subr.mxu0 0.0
    %2608 = vmatpush2.msra.mxu0 0.0
    %2609 = vmatprep.subr.mxu0 0.0
    %2610 = vmatpush2.msra.mxu0 0.0
    %2611 = vmatprep.subr.mxu0 0.0
    %2612 = vmatpush2.msra.mxu0 0.0
    %2613 = vmatprep.subr.mxu0 0.0
    %2614 = vmatpush2.msra.mxu0 0.0
    %2615 = vmatprep.subr.mxu0 0.0
    %2616 = vmatpush2.msra.mxu0 0.0
    %2617 = vmatprep.subr.mxu0 0.0
    %2618 = vmatpush2.msra.mxu0 0.0
    %2619 = vmatprep.subr.mxu0 0.0
    %2620 = vmatpush2.msra.mxu0 0.0
    %2621 = vmatprep.subr.mxu0 0.0
    %2622 = vmatpush2.msra.mxu0 0.0
    %2623 = vmatprep.subr.mxu0 0.0
    %2624 = vmatpush2.msra.mxu0 0.0
    %2625 = vmatprep.subr.mxu0 0.0
    %2626 = vmatpush2.msra.mxu0 0.0
    %2627 = vmatprep.subr.mxu0 0.0
    %2628 = vmatpush2.msra.mxu0 0.0
    %2629 = vmatprep.subr.mxu0 0.0
    %2630 = vmatpush2.msra.mxu0 0.0
    %2631 = vmatprep.subr.mxu0 0.0
    %2632 = vmatpush2.msra.mxu0 0.0
    %2633 = vmatprep.subr.mxu0 0.0
    %2634 = vmatpush2.msra.mxu0 0.0
    %2635 = vmatprep.mubr.f32.mxu0 0.0
    %2636 = vmatmul.mubr.f32.gmra.mxu0 %v2569
    %v2637 = vpop.f32.mrf.mxu0
    %v2638 = vadd.f32 0.0, %v2637
    %v2639 = vpop.f32.mrf.mxu0
    %2640 = vdwg.mxu0
    %2642 = vset.pattern.permute.xlu0 0
    %2643 = vperm.xlu0 %2642, %v2388
    %v2644 = vpop.permute.xlu0 %2643
    %v2645 = vlaneseq
    %v2646 = vshrl.u32 %v2645, 7
    %v2647 = vsub.s32 %v1926, %v2646
    %v2648 = vrot.slane %v2644, %v2647
    %v2649 = vsel %vm2014, %v2648, 0
    %2651 = vmatprep.subr.mxu0 0.0
    %2652 = vmatpush1.msra.mxu0 0.0
    %2653 = vmatprep.subr.mxu0 0.0
    %2654 = vmatpush1.msra.mxu0 0.0
    %2655 = vmatprep.subr.mxu0 0.0
    %2656 = vmatpush1.msra.mxu0 0.0
    %2657 = vmatprep.subr.mxu0 0.0
    %2658 = vmatpush1.msra.mxu0 0.0
    %2659 = vmatprep.subr.mxu0 0.0
    %2660 = vmatpush1.msra.mxu0 0.0
    %2661 = vmatprep.subr.mxu0 0.0
    %2662 = vmatpush1.msra.mxu0 0.0
    %2663 = vmatprep.subr.mxu0 0.0
    %2664 = vmatpush1.msra.mxu0 0.0
    %2665 = vmatprep.subr.mxu0 0.0
    %2666 = vmatpush1.msra.mxu0 0.0
    %2667 = vmatprep.subr.mxu0 0.0
    %2668 = vmatpush1.msra.mxu0 0.0
    %2669 = vmatprep.subr.mxu0 0.0
    %2670 = vmatpush1.msra.mxu0 0.0
    %2671 = vmatprep.subr.mxu0 0.0
    %2672 = vmatpush1.msra.mxu0 0.0
    %2673 = vmatprep.subr.mxu0 0.0
    %2674 = vmatpush1.msra.mxu0 0.0
    %2675 = vmatprep.subr.mxu0 0.0
    %2676 = vmatpush1.msra.mxu0 0.0
    %2677 = vmatprep.subr.mxu0 0.0
    %2678 = vmatpush1.msra.mxu0 0.0
    %2679 = vmatprep.subr.mxu0 0.0
    %2680 = vmatpush1.msra.mxu0 0.0
    %2681 = vmatprep.subr.mxu0 0.0
    %2682 = vmatpush1.msra.mxu0 %v1799
    %2683 = vmatprep.subr.mxu0 0.0
    %2684 = vmatpush2.msra.mxu0 0.0
    %2685 = vmatprep.subr.mxu0 0.0
    %2686 = vmatpush2.msra.mxu0 0.0
    %2687 = vmatprep.subr.mxu0 0.0
    %2688 = vmatpush2.msra.mxu0 0.0
    %2689 = vmatprep.subr.mxu0 0.0
    %2690 = vmatpush2.msra.mxu0 0.0
    %2691 = vmatprep.subr.mxu0 0.0
    %2692 = vmatpush2.msra.mxu0 0.0
    %2693 = vmatprep.subr.mxu0 0.0
    %2694 = vmatpush2.msra.mxu0 0.0
    %2695 = vmatprep.subr.mxu0 0.0
    %2696 = vmatpush2.msra.mxu0 0.0
    %2697 = vmatprep.subr.mxu0 0.0
    %2698 = vmatpush2.msra.mxu0 0.0
    %2699 = vmatprep.subr.mxu0 0.0
    %2700 = vmatpush2.msra.mxu0 0.0
    %2701 = vmatprep.subr.mxu0 0.0
    %2702 = vmatpush2.msra.mxu0 0.0
    %2703 = vmatprep.subr.mxu0 0.0
    %2704 = vmatpush2.msra.mxu0 0.0
    %2705 = vmatprep.subr.mxu0 0.0
    %2706 = vmatpush2.msra.mxu0 0.0
    %2707 = vmatprep.subr.mxu0 0.0
    %2708 = vmatpush2.msra.mxu0 0.0
    %2709 = vmatprep.subr.mxu0 0.0
    %2710 = vmatpush2.msra.mxu0 0.0
    %2711 = vmatprep.subr.mxu0 0.0
    %2712 = vmatpush2.msra.mxu0 0.0
    %2713 = vmatprep.subr.mxu0 0.0
    %2714 = vmatpush2.msra.mxu0 0.0
    %2715 = vmatprep.mubr.f32.mxu0 0.0
    %2716 = vmatmul.mubr.f32.gmra.mxu0 %v2649
    %v2717 = vpop.f32.mrf.mxu0
    %v2718 = vadd.f32 0.0, %v2717
    %v2719 = vpop.f32.mrf.mxu0
    %2720 = vdwg.mxu0
    %2722 = vset.pattern.permute.xlu0 0
    %2723 = vperm.xlu0 %2722, %v2389
    %v2724 = vpop.permute.xlu0 %2723
    %v2725 = vlaneseq
    %v2726 = vshrl.u32 %v2725, 7
    %v2727 = vsub.s32 %v1926, %v2726
    %v2728 = vrot.slane %v2724, %v2727
    %v2729 = vsel %vm2014, %v2728, 0
    %2731 = vmatprep.subr.mxu0 0.0
    %2732 = vmatpush1.msra.mxu0 0.0
    %2733 = vmatprep.subr.mxu0 0.0
    %2734 = vmatpush1.msra.mxu0 0.0
    %2735 = vmatprep.subr.mxu0 0.0
    %2736 = vmatpush1.msra.mxu0 0.0
    %2737 = vmatprep.subr.mxu0 0.0
    %2738 = vmatpush1.msra.mxu0 0.0
    %2739 = vmatprep.subr.mxu0 0.0
    %2740 = vmatpush1.msra.mxu0 0.0
    %2741 = vmatprep.subr.mxu0 0.0
    %2742 = vmatpush1.msra.mxu0 0.0
    %2743 = vmatprep.subr.mxu0 0.0
    %2744 = vmatpush1.msra.mxu0 0.0
    %2745 = vmatprep.subr.mxu0 0.0
    %2746 = vmatpush1.msra.mxu0 0.0
    %2747 = vmatprep.subr.mxu0 0.0
    %2748 = vmatpush1.msra.mxu0 0.0
    %2749 = vmatprep.subr.mxu0 0.0
    %2750 = vmatpush1.msra.mxu0 0.0
    %2751 = vmatprep.subr.mxu0 0.0
    %2752 = vmatpush1.msra.mxu0 0.0
    %2753 = vmatprep.subr.mxu0 0.0
    %2754 = vmatpush1.msra.mxu0 0.0
    %2755 = vmatprep.subr.mxu0 0.0
    %2756 = vmatpush1.msra.mxu0 0.0
    %2757 = vmatprep.subr.mxu0 0.0
    %2758 = vmatpush1.msra.mxu0 0.0
    %2759 = vmatprep.subr.mxu0 0.0
    %2760 = vmatpush1.msra.mxu0 0.0
    %2761 = vmatprep.subr.mxu0 0.0
    %2762 = vmatpush1.msra.mxu0 %v1800
    %2763 = vmatprep.subr.mxu0 0.0
    %2764 = vmatpush2.msra.mxu0 0.0
    %2765 = vmatprep.subr.mxu0 0.0
    %2766 = vmatpush2.msra.mxu0 0.0
    %2767 = vmatprep.subr.mxu0 0.0
    %2768 = vmatpush2.msra.mxu0 0.0
    %2769 = vmatprep.subr.mxu0 0.0
    %2770 = vmatpush2.msra.mxu0 0.0
    %2771 = vmatprep.subr.mxu0 0.0
    %2772 = vmatpush2.msra.mxu0 0.0
    %2773 = vmatprep.subr.mxu0 0.0
    %2774 = vmatpush2.msra.mxu0 0.0
    %2775 = vmatprep.subr.mxu0 0.0
    %2776 = vmatpush2.msra.mxu0 0.0
    %2777 = vmatprep.subr.mxu0 0.0
    %2778 = vmatpush2.msra.mxu0 0.0
    %2779 = vmatprep.subr.mxu0 0.0
    %2780 = vmatpush2.msra.mxu0 0.0
    %2781 = vmatprep.subr.mxu0 0.0
    %2782 = vmatpush2.msra.mxu0 0.0
    %2783 = vmatprep.subr.mxu0 0.0
    %2784 = vmatpush2.msra.mxu0 0.0
    %2785 = vmatprep.subr.mxu0 0.0
    %2786 = vmatpush2.msra.mxu0 0.0
    %2787 = vmatprep.subr.mxu0 0.0
    %2788 = vmatpush2.msra.mxu0 0.0
    %2789 = vmatprep.subr.mxu0 0.0
    %2790 = vmatpush2.msra.mxu0 0.0
    %2791 = vmatprep.subr.mxu0 0.0
    %2792 = vmatpush2.msra.mxu0 0.0
    %2793 = vmatprep.subr.mxu0 0.0
    %2794 = vmatpush2.msra.mxu0 0.0
    %2795 = vmatprep.mubr.f32.mxu0 0.0
    %2796 = vmatmul.mubr.f32.gmra.mxu0 %v2729
    %v2797 = vpop.f32.mrf.mxu0
    %v2798 = vadd.f32 0.0, %v2797
    %v2799 = vpop.f32.mrf.mxu0
    %2800 = vdwg.mxu0
    %2802 = vset.pattern.permute.xlu0 0
    %2803 = vperm.xlu0 %2802, %v2390
    %v2804 = vpop.permute.xlu0 %2803
    %v2805 = vlaneseq
    %v2806 = vshrl.u32 %v2805, 7
    %v2807 = vsub.s32 %v1926, %v2806
    %v2808 = vrot.slane %v2804, %v2807
    %v2809 = vsel %vm2014, %v2808, 0
    %2811 = vmatprep.subr.mxu0 0.0
    %2812 = vmatpush1.msra.mxu0 0.0
    %2813 = vmatprep.subr.mxu0 0.0
    %2814 = vmatpush1.msra.mxu0 0.0
    %2815 = vmatprep.subr.mxu0 0.0
    %2816 = vmatpush1.msra.mxu0 0.0
    %2817 = vmatprep.subr.mxu0 0.0
    %2818 = vmatpush1.msra.mxu0 0.0
    %2819 = vmatprep.subr.mxu0 0.0
    %2820 = vmatpush1.msra.mxu0 0.0
    %2821 = vmatprep.subr.mxu0 0.0
    %2822 = vmatpush1.msra.mxu0 0.0
    %2823 = vmatprep.subr.mxu0 0.0
    %2824 = vmatpush1.msra.mxu0 0.0
    %2825 = vmatprep.subr.mxu0 0.0
    %2826 = vmatpush1.msra.mxu0 0.0
    %2827 = vmatprep.subr.mxu0 0.0
    %2828 = vmatpush1.msra.mxu0 0.0
    %2829 = vmatprep.subr.mxu0 0.0
    %2830 = vmatpush1.msra.mxu0 0.0
    %2831 = vmatprep.subr.mxu0 0.0
    %2832 = vmatpush1.msra.mxu0 0.0
    %2833 = vmatprep.subr.mxu0 0.0
    %2834 = vmatpush1.msra.mxu0 0.0
    %2835 = vmatprep.subr.mxu0 0.0
    %2836 = vmatpush1.msra.mxu0 0.0
    %2837 = vmatprep.subr.mxu0 0.0
    %2838 = vmatpush1.msra.mxu0 0.0
    %2839 = vmatprep.subr.mxu0 0.0
    %2840 = vmatpush1.msra.mxu0 0.0
    %2841 = vmatprep.subr.mxu0 0.0
    %2842 = vmatpush1.msra.mxu0 %v1801
    %2843 = vmatprep.subr.mxu0 0.0
    %2844 = vmatpush2.msra.mxu0 0.0
    %2845 = vmatprep.subr.mxu0 0.0
    %2846 = vmatpush2.msra.mxu0 0.0
    %2847 = vmatprep.subr.mxu0 0.0
    %2848 = vmatpush2.msra.mxu0 0.0
    %2849 = vmatprep.subr.mxu0 0.0
    %2850 = vmatpush2.msra.mxu0 0.0
    %2851 = vmatprep.subr.mxu0 0.0
    %2852 = vmatpush2.msra.mxu0 0.0
    %2853 = vmatprep.subr.mxu0 0.0
    %2854 = vmatpush2.msra.mxu0 0.0
    %2855 = vmatprep.subr.mxu0 0.0
    %2856 = vmatpush2.msra.mxu0 0.0
    %2857 = vmatprep.subr.mxu0 0.0
    %2858 = vmatpush2.msra.mxu0 0.0
    %2859 = vmatprep.subr.mxu0 0.0
    %2860 = vmatpush2.msra.mxu0 0.0
    %2861 = vmatprep.subr.mxu0 0.0
    %2862 = vmatpush2.msra.mxu0 0.0
    %2863 = vmatprep.subr.mxu0 0.0
    %2864 = vmatpush2.msra.mxu0 0.0
    %2865 = vmatprep.subr.mxu0 0.0
    %2866 = vmatpush2.msra.mxu0 0.0
    %2867 = vmatprep.subr.mxu0 0.0
    %2868 = vmatpush2.msra.mxu0 0.0
    %2869 = vmatprep.subr.mxu0 0.0
    %2870 = vmatpush2.msra.mxu0 0.0
    %2871 = vmatprep.subr.mxu0 0.0
    %2872 = vmatpush2.msra.mxu0 0.0
    %2873 = vmatprep.subr.mxu0 0.0
    %2874 = vmatpush2.msra.mxu0 0.0
    %2875 = vmatprep.mubr.f32.mxu0 0.0
    %2876 = vmatmul.mubr.f32.gmra.mxu0 %v2809
    %v2877 = vpop.f32.mrf.mxu0
    %v2878 = vadd.f32 0.0, %v2877
    %v2879 = vpop.f32.mrf.mxu0
    %2880 = vdwg.mxu0
    %2882 = vset.pattern.permute.xlu0 0
    %2883 = vperm.xlu0 %2882, %v2391
    %v2884 = vpop.permute.xlu0 %2883
    %v2885 = vlaneseq
    %v2886 = vshrl.u32 %v2885, 7
    %v2887 = vsub.s32 %v1926, %v2886
    %v2888 = vrot.slane %v2884, %v2887
    %v2889 = vsel %vm2014, %v2888, 0
    %2891 = vmatprep.subr.mxu0 0.0
    %2892 = vmatpush1.msra.mxu0 0.0
    %2893 = vmatprep.subr.mxu0 0.0
    %2894 = vmatpush1.msra.mxu0 0.0
    %2895 = vmatprep.subr.mxu0 0.0
    %2896 = vmatpush1.msra.mxu0 0.0
    %2897 = vmatprep.subr.mxu0 0.0
    %2898 = vmatpush1.msra.mxu0 0.0
    %2899 = vmatprep.subr.mxu0 0.0
    %2900 = vmatpush1.msra.mxu0 0.0
    %2901 = vmatprep.subr.mxu0 0.0
    %2902 = vmatpush1.msra.mxu0 0.0
    %2903 = vmatprep.subr.mxu0 0.0
    %2904 = vmatpush1.msra.mxu0 0.0
    %2905 = vmatprep.subr.mxu0 0.0
    %2906 = vmatpush1.msra.mxu0 0.0
    %2907 = vmatprep.subr.mxu0 0.0
    %2908 = vmatpush1.msra.mxu0 0.0
    %2909 = vmatprep.subr.mxu0 0.0
    %2910 = vmatpush1.msra.mxu0 0.0
    %2911 = vmatprep.subr.mxu0 0.0
    %2912 = vmatpush1.msra.mxu0 0.0
    %2913 = vmatprep.subr.mxu0 0.0
    %2914 = vmatpush1.msra.mxu0 0.0
    %2915 = vmatprep.subr.mxu0 0.0
    %2916 = vmatpush1.msra.mxu0 0.0
    %2917 = vmatprep.subr.mxu0 0.0
    %2918 = vmatpush1.msra.mxu0 0.0
    %2919 = vmatprep.subr.mxu0 0.0
    %2920 = vmatpush1.msra.mxu0 0.0
    %2921 = vmatprep.subr.mxu0 0.0
    %2922 = vmatpush1.msra.mxu0 %v1802
    %2923 = vmatprep.subr.mxu0 0.0
    %2924 = vmatpush2.msra.mxu0 0.0
    %2925 = vmatprep.subr.mxu0 0.0
    %2926 = vmatpush2.msra.mxu0 0.0
    %2927 = vmatprep.subr.mxu0 0.0
    %2928 = vmatpush2.msra.mxu0 0.0
    %2929 = vmatprep.subr.mxu0 0.0
    %2930 = vmatpush2.msra.mxu0 0.0
    %2931 = vmatprep.subr.mxu0 0.0
    %2932 = vmatpush2.msra.mxu0 0.0
    %2933 = vmatprep.subr.mxu0 0.0
    %2934 = vmatpush2.msra.mxu0 0.0
    %2935 = vmatprep.subr.mxu0 0.0
    %2936 = vmatpush2.msra.mxu0 0.0
    %2937 = vmatprep.subr.mxu0 0.0
    %2938 = vmatpush2.msra.mxu0 0.0
    %2939 = vmatprep.subr.mxu0 0.0
    %2940 = vmatpush2.msra.mxu0 0.0
    %2941 = vmatprep.subr.mxu0 0.0
    %2942 = vmatpush2.msra.mxu0 0.0
    %2943 = vmatprep.subr.mxu0 0.0
    %2944 = vmatpush2.msra.mxu0 0.0
    %2945 = vmatprep.subr.mxu0 0.0
    %2946 = vmatpush2.msra.mxu0 0.0
    %2947 = vmatprep.subr.mxu0 0.0
    %2948 = vmatpush2.msra.mxu0 0.0
    %2949 = vmatprep.subr.mxu0 0.0
    %2950 = vmatpush2.msra.mxu0 0.0
    %2951 = vmatprep.subr.mxu0 0.0
    %2952 = vmatpush2.msra.mxu0 0.0
    %2953 = vmatprep.subr.mxu0 0.0
    %2954 = vmatpush2.msra.mxu0 0.0
    %2955 = vmatprep.mubr.f32.mxu0 0.0
    %2956 = vmatmul.mubr.f32.gmra.mxu0 %v2889
    %v2957 = vpop.f32.mrf.mxu0
    %v2958 = vadd.f32 0.0, %v2957
    %v2959 = vpop.f32.mrf.mxu0
    %2960 = vdwg.mxu0
    %2962 = vset.pattern.permute.xlu0 0
    %2963 = vperm.xlu0 %2962, %v2392
    %v2964 = vpop.permute.xlu0 %2963
    %v2965 = vlaneseq
    %v2966 = vshrl.u32 %v2965, 7
    %v2967 = vsub.s32 %v1926, %v2966
    %v2968 = vrot.slane %v2964, %v2967
    %v2969 = vsel %vm2014, %v2968, 0
    %2971 = vmatprep.subr.mxu0 0.0
    %2972 = vmatpush1.msra.mxu0 0.0
    %2973 = vmatprep.subr.mxu0 0.0
    %2974 = vmatpush1.msra.mxu0 0.0
    %2975 = vmatprep.subr.mxu0 0.0
    %2976 = vmatpush1.msra.mxu0 0.0
    %2977 = vmatprep.subr.mxu0 0.0
    %2978 = vmatpush1.msra.mxu0 0.0
    %2979 = vmatprep.subr.mxu0 0.0
    %2980 = vmatpush1.msra.mxu0 0.0
    %2981 = vmatprep.subr.mxu0 0.0
    %2982 = vmatpush1.msra.mxu0 0.0
    %2983 = vmatprep.subr.mxu0 0.0
    %2984 = vmatpush1.msra.mxu0 0.0
    %2985 = vmatprep.subr.mxu0 0.0
    %2986 = vmatpush1.msra.mxu0 0.0
    %2987 = vmatprep.subr.mxu0 0.0
    %2988 = vmatpush1.msra.mxu0 0.0
    %2989 = vmatprep.subr.mxu0 0.0
    %2990 = vmatpush1.msra.mxu0 0.0
    %2991 = vmatprep.subr.mxu0 0.0
    %2992 = vmatpush1.msra.mxu0 0.0
    %2993 = vmatprep.subr.mxu0 0.0
    %2994 = vmatpush1.msra.mxu0 0.0
    %2995 = vmatprep.subr.mxu0 0.0
    %2996 = vmatpush1.msra.mxu0 0.0
    %2997 = vmatprep.subr.mxu0 0.0
    %2998 = vmatpush1.msra.mxu0 0.0
    %2999 = vmatprep.subr.mxu0 0.0
    %3000 = vmatpush1.msra.mxu0 0.0
    %3001 = vmatprep.subr.mxu0 0.0
    %3002 = vmatpush1.msra.mxu0 %v1803
    %3003 = vmatprep.subr.mxu0 0.0
    %3004 = vmatpush2.msra.mxu0 0.0
    %3005 = vmatprep.subr.mxu0 0.0
    %3006 = vmatpush2.msra.mxu0 0.0
    %3007 = vmatprep.subr.mxu0 0.0
    %3008 = vmatpush2.msra.mxu0 0.0
    %3009 = vmatprep.subr.mxu0 0.0
    %3010 = vmatpush2.msra.mxu0 0.0
    %3011 = vmatprep.subr.mxu0 0.0
    %3012 = vmatpush2.msra.mxu0 0.0
    %3013 = vmatprep.subr.mxu0 0.0
    %3014 = vmatpush2.msra.mxu0 0.0
    %3015 = vmatprep.subr.mxu0 0.0
    %3016 = vmatpush2.msra.mxu0 0.0
    %3017 = vmatprep.subr.mxu0 0.0
    %3018 = vmatpush2.msra.mxu0 0.0
    %3019 = vmatprep.subr.mxu0 0.0
    %3020 = vmatpush2.msra.mxu0 0.0
    %3021 = vmatprep.subr.mxu0 0.0
    %3022 = vmatpush2.msra.mxu0 0.0
    %3023 = vmatprep.subr.mxu0 0.0
    %3024 = vmatpush2.msra.mxu0 0.0
    %3025 = vmatprep.subr.mxu0 0.0
    %3026 = vmatpush2.msra.mxu0 0.0
    %3027 = vmatprep.subr.mxu0 0.0
    %3028 = vmatpush2.msra.mxu0 0.0
    %3029 = vmatprep.subr.mxu0 0.0
    %3030 = vmatpush2.msra.mxu0 0.0
    %3031 = vmatprep.subr.mxu0 0.0
    %3032 = vmatpush2.msra.mxu0 0.0
    %3033 = vmatprep.subr.mxu0 0.0
    %3034 = vmatpush2.msra.mxu0 0.0
    %3035 = vmatprep.mubr.f32.mxu0 0.0
    %3036 = vmatmul.mubr.f32.gmra.mxu0 %v2969
    %v3037 = vpop.f32.mrf.mxu0
    %v3038 = vadd.f32 0.0, %v3037
    %v3039 = vpop.f32.mrf.mxu0
    %3040 = vdwg.mxu0
    %3042 = vset.pattern.permute.xlu0 0
    %3043 = vperm.xlu0 %3042, %v2393
    %v3044 = vpop.permute.xlu0 %3043
    %v3045 = vlaneseq
    %v3046 = vshrl.u32 %v3045, 7
    %v3047 = vsub.s32 %v1926, %v3046
    %v3048 = vrot.slane %v3044, %v3047
    %v3049 = vsel %vm2014, %v3048, 0
    %3051 = vmatprep.subr.mxu0 0.0
    %3052 = vmatpush1.msra.mxu0 0.0
    %3053 = vmatprep.subr.mxu0 0.0
    %3054 = vmatpush1.msra.mxu0 0.0
    %3055 = vmatprep.subr.mxu0 0.0
    %3056 = vmatpush1.msra.mxu0 0.0
    %3057 = vmatprep.subr.mxu0 0.0
    %3058 = vmatpush1.msra.mxu0 0.0
    %3059 = vmatprep.subr.mxu0 0.0
    %3060 = vmatpush1.msra.mxu0 0.0
    %3061 = vmatprep.subr.mxu0 0.0
    %3062 = vmatpush1.msra.mxu0 0.0
    %3063 = vmatprep.subr.mxu0 0.0
    %3064 = vmatpush1.msra.mxu0 0.0
    %3065 = vmatprep.subr.mxu0 0.0
    %3066 = vmatpush1.msra.mxu0 0.0
    %3067 = vmatprep.subr.mxu0 0.0
    %3068 = vmatpush1.msra.mxu0 0.0
    %3069 = vmatprep.subr.mxu0 0.0
    %3070 = vmatpush1.msra.mxu0 0.0
    %3071 = vmatprep.subr.mxu0 0.0
    %3072 = vmatpush1.msra.mxu0 0.0
    %3073 = vmatprep.subr.mxu0 0.0
    %3074 = vmatpush1.msra.mxu0 0.0
    %3075 = vmatprep.subr.mxu0 0.0
    %3076 = vmatpush1.msra.mxu0 0.0
    %3077 = vmatprep.subr.mxu0 0.0
    %3078 = vmatpush1.msra.mxu0 0.0
    %3079 = vmatprep.subr.mxu0 0.0
    %3080 = vmatpush1.msra.mxu0 0.0
    %3081 = vmatprep.subr.mxu0 0.0
    %3082 = vmatpush1.msra.mxu0 %v1804
    %3083 = vmatprep.subr.mxu0 0.0
    %3084 = vmatpush2.msra.mxu0 0.0
    %3085 = vmatprep.subr.mxu0 0.0
    %3086 = vmatpush2.msra.mxu0 0.0
    %3087 = vmatprep.subr.mxu0 0.0
    %3088 = vmatpush2.msra.mxu0 0.0
    %3089 = vmatprep.subr.mxu0 0.0
    %3090 = vmatpush2.msra.mxu0 0.0
    %3091 = vmatprep.subr.mxu0 0.0
    %3092 = vmatpush2.msra.mxu0 0.0
    %3093 = vmatprep.subr.mxu0 0.0
    %3094 = vmatpush2.msra.mxu0 0.0
    %3095 = vmatprep.subr.mxu0 0.0
    %3096 = vmatpush2.msra.mxu0 0.0
    %3097 = vmatprep.subr.mxu0 0.0
    %3098 = vmatpush2.msra.mxu0 0.0
    %3099 = vmatprep.subr.mxu0 0.0
    %3100 = vmatpush2.msra.mxu0 0.0
    %3101 = vmatprep.subr.mxu0 0.0
    %3102 = vmatpush2.msra.mxu0 0.0
    %3103 = vmatprep.subr.mxu0 0.0
    %3104 = vmatpush2.msra.mxu0 0.0
    %3105 = vmatprep.subr.mxu0 0.0
    %3106 = vmatpush2.msra.mxu0 0.0
    %3107 = vmatprep.subr.mxu0 0.0
    %3108 = vmatpush2.msra.mxu0 0.0
    %3109 = vmatprep.subr.mxu0 0.0
    %3110 = vmatpush2.msra.mxu0 0.0
    %3111 = vmatprep.subr.mxu0 0.0
    %3112 = vmatpush2.msra.mxu0 0.0
    %3113 = vmatprep.subr.mxu0 0.0
    %3114 = vmatpush2.msra.mxu0 0.0
    %3115 = vmatprep.mubr.f32.mxu0 0.0
    %3116 = vmatmul.mubr.f32.gmra.mxu0 %v3049
    %v3117 = vpop.f32.mrf.mxu0
    %v3118 = vadd.f32 0.0, %v3117
    %v3119 = vpop.f32.mrf.mxu0
    %3120 = vdwg.mxu0
    %3122 = vset.pattern.permute.xlu0 0
    %3123 = vperm.xlu0 %3122, %v2394
    %v3124 = vpop.permute.xlu0 %3123
    %v3125 = vlaneseq
    %v3126 = vshrl.u32 %v3125, 7
    %v3127 = vsub.s32 %v1926, %v3126
    %v3128 = vrot.slane %v3124, %v3127
    %v3129 = vsel %vm2014, %v3128, 0
    %3131 = vmatprep.subr.mxu0 0.0
    %3132 = vmatpush1.msra.mxu0 0.0
    %3133 = vmatprep.subr.mxu0 0.0
    %3134 = vmatpush1.msra.mxu0 0.0
    %3135 = vmatprep.subr.mxu0 0.0
    %3136 = vmatpush1.msra.mxu0 0.0
    %3137 = vmatprep.subr.mxu0 0.0
    %3138 = vmatpush1.msra.mxu0 0.0
    %3139 = vmatprep.subr.mxu0 0.0
    %3140 = vmatpush1.msra.mxu0 0.0
    %3141 = vmatprep.subr.mxu0 0.0
    %3142 = vmatpush1.msra.mxu0 0.0
    %3143 = vmatprep.subr.mxu0 0.0
    %3144 = vmatpush1.msra.mxu0 0.0
    %3145 = vmatprep.subr.mxu0 0.0
    %3146 = vmatpush1.msra.mxu0 0.0
    %3147 = vmatprep.subr.mxu0 0.0
    %3148 = vmatpush1.msra.mxu0 0.0
    %3149 = vmatprep.subr.mxu0 0.0
    %3150 = vmatpush1.msra.mxu0 0.0
    %3151 = vmatprep.subr.mxu0 0.0
    %3152 = vmatpush1.msra.mxu0 0.0
    %3153 = vmatprep.subr.mxu0 0.0
    %3154 = vmatpush1.msra.mxu0 0.0
    %3155 = vmatprep.subr.mxu0 0.0
    %3156 = vmatpush1.msra.mxu0 0.0
    %3157 = vmatprep.subr.mxu0 0.0
    %3158 = vmatpush1.msra.mxu0 0.0
    %3159 = vmatprep.subr.mxu0 0.0
    %3160 = vmatpush1.msra.mxu0 0.0
    %3161 = vmatprep.subr.mxu0 0.0
    %3162 = vmatpush1.msra.mxu0 %v1805
    %3163 = vmatprep.subr.mxu0 0.0
    %3164 = vmatpush2.msra.mxu0 0.0
    %3165 = vmatprep.subr.mxu0 0.0
    %3166 = vmatpush2.msra.mxu0 0.0
    %3167 = vmatprep.subr.mxu0 0.0
    %3168 = vmatpush2.msra.mxu0 0.0
    %3169 = vmatprep.subr.mxu0 0.0
    %3170 = vmatpush2.msra.mxu0 0.0
    %3171 = vmatprep.subr.mxu0 0.0
    %3172 = vmatpush2.msra.mxu0 0.0
    %3173 = vmatprep.subr.mxu0 0.0
    %3174 = vmatpush2.msra.mxu0 0.0
    %3175 = vmatprep.subr.mxu0 0.0
    %3176 = vmatpush2.msra.mxu0 0.0
    %3177 = vmatprep.subr.mxu0 0.0
    %3178 = vmatpush2.msra.mxu0 0.0
    %3179 = vmatprep.subr.mxu0 0.0
    %3180 = vmatpush2.msra.mxu0 0.0
    %3181 = vmatprep.subr.mxu0 0.0
    %3182 = vmatpush2.msra.mxu0 0.0
    %3183 = vmatprep.subr.mxu0 0.0
    %3184 = vmatpush2.msra.mxu0 0.0
    %3185 = vmatprep.subr.mxu0 0.0
    %3186 = vmatpush2.msra.mxu0 0.0
    %3187 = vmatprep.subr.mxu0 0.0
    %3188 = vmatpush2.msra.mxu0 0.0
    %3189 = vmatprep.subr.mxu0 0.0
    %3190 = vmatpush2.msra.mxu0 0.0
    %3191 = vmatprep.subr.mxu0 0.0
    %3192 = vmatpush2.msra.mxu0 0.0
    %3193 = vmatprep.subr.mxu0 0.0
    %3194 = vmatpush2.msra.mxu0 0.0
    %3195 = vmatprep.mubr.f32.mxu0 0.0
    %3196 = vmatmul.mubr.f32.gmra.mxu0 %v3129
    %v3197 = vpop.f32.mrf.mxu0
    %v3198 = vadd.f32 0.0, %v3197
    %v3199 = vpop.f32.mrf.mxu0
    %3200 = vdwg.mxu0
    %3202 = vset.pattern.permute.xlu0 0
    %3203 = vperm.xlu0 %3202, %v2395
    %v3204 = vpop.permute.xlu0 %3203
    %v3205 = vlaneseq
    %v3206 = vshrl.u32 %v3205, 7
    %v3207 = vsub.s32 %v1926, %v3206
    %v3208 = vrot.slane %v3204, %v3207
    %v3209 = vsel %vm2014, %v3208, 0
    %3211 = vmatprep.subr.mxu0 0.0
    %3212 = vmatpush1.msra.mxu0 0.0
    %3213 = vmatprep.subr.mxu0 0.0
    %3214 = vmatpush1.msra.mxu0 0.0
    %3215 = vmatprep.subr.mxu0 0.0
    %3216 = vmatpush1.msra.mxu0 0.0
    %3217 = vmatprep.subr.mxu0 0.0
    %3218 = vmatpush1.msra.mxu0 0.0
    %3219 = vmatprep.subr.mxu0 0.0
    %3220 = vmatpush1.msra.mxu0 0.0
    %3221 = vmatprep.subr.mxu0 0.0
    %3222 = vmatpush1.msra.mxu0 0.0
    %3223 = vmatprep.subr.mxu0 0.0
    %3224 = vmatpush1.msra.mxu0 0.0
    %3225 = vmatprep.subr.mxu0 0.0
    %3226 = vmatpush1.msra.mxu0 0.0
    %3227 = vmatprep.subr.mxu0 0.0
    %3228 = vmatpush1.msra.mxu0 0.0
    %3229 = vmatprep.subr.mxu0 0.0
    %3230 = vmatpush1.msra.mxu0 0.0
    %3231 = vmatprep.subr.mxu0 0.0
    %3232 = vmatpush1.msra.mxu0 0.0
    %3233 = vmatprep.subr.mxu0 0.0
    %3234 = vmatpush1.msra.mxu0 0.0
    %3235 = vmatprep.subr.mxu0 0.0
    %3236 = vmatpush1.msra.mxu0 0.0
    %3237 = vmatprep.subr.mxu0 0.0
    %3238 = vmatpush1.msra.mxu0 0.0
    %3239 = vmatprep.subr.mxu0 0.0
    %3240 = vmatpush1.msra.mxu0 0.0
    %3241 = vmatprep.subr.mxu0 0.0
    %3242 = vmatpush1.msra.mxu0 %v1806
    %3243 = vmatprep.subr.mxu0 0.0
    %3244 = vmatpush2.msra.mxu0 0.0
    %3245 = vmatprep.subr.mxu0 0.0
    %3246 = vmatpush2.msra.mxu0 0.0
    %3247 = vmatprep.subr.mxu0 0.0
    %3248 = vmatpush2.msra.mxu0 0.0
    %3249 = vmatprep.subr.mxu0 0.0
    %3250 = vmatpush2.msra.mxu0 0.0
    %3251 = vmatprep.subr.mxu0 0.0
    %3252 = vmatpush2.msra.mxu0 0.0
    %3253 = vmatprep.subr.mxu0 0.0
    %3254 = vmatpush2.msra.mxu0 0.0
    %3255 = vmatprep.subr.mxu0 0.0
    %3256 = vmatpush2.msra.mxu0 0.0
    %3257 = vmatprep.subr.mxu0 0.0
    %3258 = vmatpush2.msra.mxu0 0.0
    %3259 = vmatprep.subr.mxu0 0.0
    %3260 = vmatpush2.msra.mxu0 0.0
    %3261 = vmatprep.subr.mxu0 0.0
    %3262 = vmatpush2.msra.mxu0 0.0
    %3263 = vmatprep.subr.mxu0 0.0
    %3264 = vmatpush2.msra.mxu0 0.0
    %3265 = vmatprep.subr.mxu0 0.0
    %3266 = vmatpush2.msra.mxu0 0.0
    %3267 = vmatprep.subr.mxu0 0.0
    %3268 = vmatpush2.msra.mxu0 0.0
    %3269 = vmatprep.subr.mxu0 0.0
    %3270 = vmatpush2.msra.mxu0 0.0
    %3271 = vmatprep.subr.mxu0 0.0
    %3272 = vmatpush2.msra.mxu0 0.0
    %3273 = vmatprep.subr.mxu0 0.0
    %3274 = vmatpush2.msra.mxu0 0.0
    %3275 = vmatprep.mubr.f32.mxu0 0.0
    %3276 = vmatmul.mubr.f32.gmra.mxu0 %v3209
    %v3277 = vpop.f32.mrf.mxu0
    %v3278 = vadd.f32 0.0, %v3277
    %v3279 = vpop.f32.mrf.mxu0
    %3280 = vdwg.mxu0
    %3282 = vset.pattern.permute.xlu0 0
    %3283 = vperm.xlu0 %3282, %v2396
    %v3284 = vpop.permute.xlu0 %3283
    %v3285 = vlaneseq
    %v3286 = vshrl.u32 %v3285, 7
    %v3287 = vsub.s32 %v1926, %v3286
    %v3288 = vrot.slane %v3284, %v3287
    %v3289 = vsel %vm2014, %v3288, 0
    %3291 = vmatprep.subr.mxu0 0.0
    %3292 = vmatpush1.msra.mxu0 0.0
    %3293 = vmatprep.subr.mxu0 0.0
    %3294 = vmatpush1.msra.mxu0 0.0
    %3295 = vmatprep.subr.mxu0 0.0
    %3296 = vmatpush1.msra.mxu0 0.0
    %3297 = vmatprep.subr.mxu0 0.0
    %3298 = vmatpush1.msra.mxu0 0.0
    %3299 = vmatprep.subr.mxu0 0.0
    %3300 = vmatpush1.msra.mxu0 0.0
    %3301 = vmatprep.subr.mxu0 0.0
    %3302 = vmatpush1.msra.mxu0 0.0
    %3303 = vmatprep.subr.mxu0 0.0
    %3304 = vmatpush1.msra.mxu0 0.0
    %3305 = vmatprep.subr.mxu0 0.0
    %3306 = vmatpush1.msra.mxu0 0.0
    %3307 = vmatprep.subr.mxu0 0.0
    %3308 = vmatpush1.msra.mxu0 0.0
    %3309 = vmatprep.subr.mxu0 0.0
    %3310 = vmatpush1.msra.mxu0 0.0
    %3311 = vmatprep.subr.mxu0 0.0
    %3312 = vmatpush1.msra.mxu0 0.0
    %3313 = vmatprep.subr.mxu0 0.0
    %3314 = vmatpush1.msra.mxu0 0.0
    %3315 = vmatprep.subr.mxu0 0.0
    %3316 = vmatpush1.msra.mxu0 0.0
    %3317 = vmatprep.subr.mxu0 0.0
    %3318 = vmatpush1.msra.mxu0 0.0
    %3319 = vmatprep.subr.mxu0 0.0
    %3320 = vmatpush1.msra.mxu0 0.0
    %3321 = vmatprep.subr.mxu0 0.0
    %3322 = vmatpush1.msra.mxu0 %v1807
    %3323 = vmatprep.subr.mxu0 0.0
    %3324 = vmatpush2.msra.mxu0 0.0
    %3325 = vmatprep.subr.mxu0 0.0
    %3326 = vmatpush2.msra.mxu0 0.0
    %3327 = vmatprep.subr.mxu0 0.0
    %3328 = vmatpush2.msra.mxu0 0.0
    %3329 = vmatprep.subr.mxu0 0.0
    %3330 = vmatpush2.msra.mxu0 0.0
    %3331 = vmatprep.subr.mxu0 0.0
    %3332 = vmatpush2.msra.mxu0 0.0
    %3333 = vmatprep.subr.mxu0 0.0
    %3334 = vmatpush2.msra.mxu0 0.0
    %3335 = vmatprep.subr.mxu0 0.0
    %3336 = vmatpush2.msra.mxu0 0.0
    %3337 = vmatprep.subr.mxu0 0.0
    %3338 = vmatpush2.msra.mxu0 0.0
    %3339 = vmatprep.subr.mxu0 0.0
    %3340 = vmatpush2.msra.mxu0 0.0
    %3341 = vmatprep.subr.mxu0 0.0
    %3342 = vmatpush2.msra.mxu0 0.0
    %3343 = vmatprep.subr.mxu0 0.0
    %3344 = vmatpush2.msra.mxu0 0.0
    %3345 = vmatprep.subr.mxu0 0.0
    %3346 = vmatpush2.msra.mxu0 0.0
    %3347 = vmatprep.subr.mxu0 0.0
    %3348 = vmatpush2.msra.mxu0 0.0
    %3349 = vmatprep.subr.mxu0 0.0
    %3350 = vmatpush2.msra.mxu0 0.0
    %3351 = vmatprep.subr.mxu0 0.0
    %3352 = vmatpush2.msra.mxu0 0.0
    %3353 = vmatprep.subr.mxu0 0.0
    %3354 = vmatpush2.msra.mxu0 0.0
    %3355 = vmatprep.mubr.f32.mxu0 0.0
    %3356 = vmatmul.mubr.f32.gmra.mxu0 %v3289
    %v3357 = vpop.f32.mrf.mxu0
    %v3358 = vadd.f32 0.0, %v3357
    %v3359 = vpop.f32.mrf.mxu0
    %3360 = vdwg.mxu0
    %3362 = vset.pattern.permute.xlu0 0
    %3363 = vperm.xlu0 %3362, %v2397
    %v3364 = vpop.permute.xlu0 %3363
    %v3365 = vlaneseq
    %v3366 = vshrl.u32 %v3365, 7
    %v3367 = vsub.s32 %v1926, %v3366
    %v3368 = vrot.slane %v3364, %v3367
    %v3369 = vsel %vm2014, %v3368, 0
    %3371 = vmatprep.subr.mxu0 0.0
    %3372 = vmatpush1.msra.mxu0 0.0
    %3373 = vmatprep.subr.mxu0 0.0
    %3374 = vmatpush1.msra.mxu0 0.0
    %3375 = vmatprep.subr.mxu0 0.0
    %3376 = vmatpush1.msra.mxu0 0.0
    %3377 = vmatprep.subr.mxu0 0.0
    %3378 = vmatpush1.msra.mxu0 0.0
    %3379 = vmatprep.subr.mxu0 0.0
    %3380 = vmatpush1.msra.mxu0 0.0
    %3381 = vmatprep.subr.mxu0 0.0
    %3382 = vmatpush1.msra.mxu0 0.0
    %3383 = vmatprep.subr.mxu0 0.0
    %3384 = vmatpush1.msra.mxu0 0.0
    %3385 = vmatprep.subr.mxu0 0.0
    %3386 = vmatpush1.msra.mxu0 0.0
    %3387 = vmatprep.subr.mxu0 0.0
    %3388 = vmatpush1.msra.mxu0 0.0
    %3389 = vmatprep.subr.mxu0 0.0
    %3390 = vmatpush1.msra.mxu0 0.0
    %3391 = vmatprep.subr.mxu0 0.0
    %3392 = vmatpush1.msra.mxu0 0.0
    %3393 = vmatprep.subr.mxu0 0.0
    %3394 = vmatpush1.msra.mxu0 0.0
    %3395 = vmatprep.subr.mxu0 0.0
    %3396 = vmatpush1.msra.mxu0 0.0
    %3397 = vmatprep.subr.mxu0 0.0
    %3398 = vmatpush1.msra.mxu0 0.0
    %3399 = vmatprep.subr.mxu0 0.0
    %3400 = vmatpush1.msra.mxu0 0.0
    %3401 = vmatprep.subr.mxu0 0.0
    %3402 = vmatpush1.msra.mxu0 %v1808
    %3403 = vmatprep.subr.mxu0 0.0
    %3404 = vmatpush2.msra.mxu0 0.0
    %3405 = vmatprep.subr.mxu0 0.0
    %3406 = vmatpush2.msra.mxu0 0.0
    %3407 = vmatprep.subr.mxu0 0.0
    %3408 = vmatpush2.msra.mxu0 0.0
    %3409 = vmatprep.subr.mxu0 0.0
    %3410 = vmatpush2.msra.mxu0 0.0
    %3411 = vmatprep.subr.mxu0 0.0
    %3412 = vmatpush2.msra.mxu0 0.0
    %3413 = vmatprep.subr.mxu0 0.0
    %3414 = vmatpush2.msra.mxu0 0.0
    %3415 = vmatprep.subr.mxu0 0.0
    %3416 = vmatpush2.msra.mxu0 0.0
    %3417 = vmatprep.subr.mxu0 0.0
    %3418 = vmatpush2.msra.mxu0 0.0
    %3419 = vmatprep.subr.mxu0 0.0
    %3420 = vmatpush2.msra.mxu0 0.0
    %3421 = vmatprep.subr.mxu0 0.0
    %3422 = vmatpush2.msra.mxu0 0.0
    %3423 = vmatprep.subr.mxu0 0.0
    %3424 = vmatpush2.msra.mxu0 0.0
    %3425 = vmatprep.subr.mxu0 0.0
    %3426 = vmatpush2.msra.mxu0 0.0
    %3427 = vmatprep.subr.mxu0 0.0
    %3428 = vmatpush2.msra.mxu0 0.0
    %3429 = vmatprep.subr.mxu0 0.0
    %3430 = vmatpush2.msra.mxu0 0.0
    %3431 = vmatprep.subr.mxu0 0.0
    %3432 = vmatpush2.msra.mxu0 0.0
    %3433 = vmatprep.subr.mxu0 0.0
    %3434 = vmatpush2.msra.mxu0 0.0
    %3435 = vmatprep.mubr.f32.mxu0 0.0
    %3436 = vmatmul.mubr.f32.gmra.mxu0 %v3369
    %v3437 = vpop.f32.mrf.mxu0
    %v3438 = vadd.f32 0.0, %v3437
    %v3439 = vpop.f32.mrf.mxu0
    %3440 = vdwg.mxu0
    %3442 = vset.pattern.permute.xlu0 0
    %3443 = vperm.xlu0 %3442, %v2398
    %v3444 = vpop.permute.xlu0 %3443
    %v3445 = vlaneseq
    %v3446 = vshrl.u32 %v3445, 7
    %v3447 = vsub.s32 %v1926, %v3446
    %v3448 = vrot.slane %v3444, %v3447
    %v3449 = vsel %vm2014, %v3448, 0
    %3451 = vmatprep.subr.mxu0 0.0
    %3452 = vmatpush1.msra.mxu0 0.0
    %3453 = vmatprep.subr.mxu0 0.0
    %3454 = vmatpush1.msra.mxu0 0.0
    %3455 = vmatprep.subr.mxu0 0.0
    %3456 = vmatpush1.msra.mxu0 0.0
    %3457 = vmatprep.subr.mxu0 0.0
    %3458 = vmatpush1.msra.mxu0 0.0
    %3459 = vmatprep.subr.mxu0 0.0
    %3460 = vmatpush1.msra.mxu0 0.0
    %3461 = vmatprep.subr.mxu0 0.0
    %3462 = vmatpush1.msra.mxu0 0.0
    %3463 = vmatprep.subr.mxu0 0.0
    %3464 = vmatpush1.msra.mxu0 0.0
    %3465 = vmatprep.subr.mxu0 0.0
    %3466 = vmatpush1.msra.mxu0 0.0
    %3467 = vmatprep.subr.mxu0 0.0
    %3468 = vmatpush1.msra.mxu0 0.0
    %3469 = vmatprep.subr.mxu0 0.0
    %3470 = vmatpush1.msra.mxu0 0.0
    %3471 = vmatprep.subr.mxu0 0.0
    %3472 = vmatpush1.msra.mxu0 0.0
    %3473 = vmatprep.subr.mxu0 0.0
    %3474 = vmatpush1.msra.mxu0 0.0
    %3475 = vmatprep.subr.mxu0 0.0
    %3476 = vmatpush1.msra.mxu0 0.0
    %3477 = vmatprep.subr.mxu0 0.0
    %3478 = vmatpush1.msra.mxu0 0.0
    %3479 = vmatprep.subr.mxu0 0.0
    %3480 = vmatpush1.msra.mxu0 0.0
    %3481 = vmatprep.subr.mxu0 0.0
    %3482 = vmatpush1.msra.mxu0 %v1809
    %3483 = vmatprep.subr.mxu0 0.0
    %3484 = vmatpush2.msra.mxu0 0.0
    %3485 = vmatprep.subr.mxu0 0.0
    %3486 = vmatpush2.msra.mxu0 0.0
    %3487 = vmatprep.subr.mxu0 0.0
    %3488 = vmatpush2.msra.mxu0 0.0
    %3489 = vmatprep.subr.mxu0 0.0
    %3490 = vmatpush2.msra.mxu0 0.0
    %3491 = vmatprep.subr.mxu0 0.0
    %3492 = vmatpush2.msra.mxu0 0.0
    %3493 = vmatprep.subr.mxu0 0.0
    %3494 = vmatpush2.msra.mxu0 0.0
    %3495 = vmatprep.subr.mxu0 0.0
    %3496 = vmatpush2.msra.mxu0 0.0
    %3497 = vmatprep.subr.mxu0 0.0
    %3498 = vmatpush2.msra.mxu0 0.0
    %3499 = vmatprep.subr.mxu0 0.0
    %3500 = vmatpush2.msra.mxu0 0.0
    %3501 = vmatprep.subr.mxu0 0.0
    %3502 = vmatpush2.msra.mxu0 0.0
    %3503 = vmatprep.subr.mxu0 0.0
    %3504 = vmatpush2.msra.mxu0 0.0
    %3505 = vmatprep.subr.mxu0 0.0
    %3506 = vmatpush2.msra.mxu0 0.0
    %3507 = vmatprep.subr.mxu0 0.0
    %3508 = vmatpush2.msra.mxu0 0.0
    %3509 = vmatprep.subr.mxu0 0.0
    %3510 = vmatpush2.msra.mxu0 0.0
    %3511 = vmatprep.subr.mxu0 0.0
    %3512 = vmatpush2.msra.mxu0 0.0
    %3513 = vmatprep.subr.mxu0 0.0
    %3514 = vmatpush2.msra.mxu0 0.0
    %3515 = vmatprep.mubr.f32.mxu0 0.0
    %3516 = vmatmul.mubr.f32.gmra.mxu0 %v3449
    %v3517 = vpop.f32.mrf.mxu0
    %v3518 = vadd.f32 0.0, %v3517
    %v3519 = vpop.f32.mrf.mxu0
    %3520 = vdwg.mxu0
    %3522 = vset.pattern.permute.xlu0 0
    %3523 = vperm.xlu0 %3522, %v2399
    %v3524 = vpop.permute.xlu0 %3523
    %v3525 = vlaneseq
    %v3526 = vshrl.u32 %v3525, 7
    %v3527 = vsub.s32 %v1926, %v3526
    %v3528 = vrot.slane %v3524, %v3527
    %v3529 = vsel %vm2014, %v3528, 0
    %3531 = vmatprep.subr.mxu0 0.0
    %3532 = vmatpush1.msra.mxu0 0.0
    %3533 = vmatprep.subr.mxu0 0.0
    %3534 = vmatpush1.msra.mxu0 0.0
    %3535 = vmatprep.subr.mxu0 0.0
    %3536 = vmatpush1.msra.mxu0 0.0
    %3537 = vmatprep.subr.mxu0 0.0
    %3538 = vmatpush1.msra.mxu0 0.0
    %3539 = vmatprep.subr.mxu0 0.0
    %3540 = vmatpush1.msra.mxu0 0.0
    %3541 = vmatprep.subr.mxu0 0.0
    %3542 = vmatpush1.msra.mxu0 0.0
    %3543 = vmatprep.subr.mxu0 0.0
    %3544 = vmatpush1.msra.mxu0 0.0
    %3545 = vmatprep.subr.mxu0 0.0
    %3546 = vmatpush1.msra.mxu0 0.0
    %3547 = vmatprep.subr.mxu0 0.0
    %3548 = vmatpush1.msra.mxu0 0.0
    %3549 = vmatprep.subr.mxu0 0.0
    %3550 = vmatpush1.msra.mxu0 0.0
    %3551 = vmatprep.subr.mxu0 0.0
    %3552 = vmatpush1.msra.mxu0 0.0
    %3553 = vmatprep.subr.mxu0 0.0
    %3554 = vmatpush1.msra.mxu0 0.0
    %3555 = vmatprep.subr.mxu0 0.0
    %3556 = vmatpush1.msra.mxu0 0.0
    %3557 = vmatprep.subr.mxu0 0.0
    %3558 = vmatpush1.msra.mxu0 0.0
    %3559 = vmatprep.subr.mxu0 0.0
    %3560 = vmatpush1.msra.mxu0 0.0
    %3561 = vmatprep.subr.mxu0 0.0
    %3562 = vmatpush1.msra.mxu0 %v1810
    %3563 = vmatprep.subr.mxu0 0.0
    %3564 = vmatpush2.msra.mxu0 0.0
    %3565 = vmatprep.subr.mxu0 0.0
    %3566 = vmatpush2.msra.mxu0 0.0
    %3567 = vmatprep.subr.mxu0 0.0
    %3568 = vmatpush2.msra.mxu0 0.0
    %3569 = vmatprep.subr.mxu0 0.0
    %3570 = vmatpush2.msra.mxu0 0.0
    %3571 = vmatprep.subr.mxu0 0.0
    %3572 = vmatpush2.msra.mxu0 0.0
    %3573 = vmatprep.subr.mxu0 0.0
    %3574 = vmatpush2.msra.mxu0 0.0
    %3575 = vmatprep.subr.mxu0 0.0
    %3576 = vmatpush2.msra.mxu0 0.0
    %3577 = vmatprep.subr.mxu0 0.0
    %3578 = vmatpush2.msra.mxu0 0.0
    %3579 = vmatprep.subr.mxu0 0.0
    %3580 = vmatpush2.msra.mxu0 0.0
    %3581 = vmatprep.subr.mxu0 0.0
    %3582 = vmatpush2.msra.mxu0 0.0
    %3583 = vmatprep.subr.mxu0 0.0
    %3584 = vmatpush2.msra.mxu0 0.0
    %3585 = vmatprep.subr.mxu0 0.0
    %3586 = vmatpush2.msra.mxu0 0.0
    %3587 = vmatprep.subr.mxu0 0.0
    %3588 = vmatpush2.msra.mxu0 0.0
    %3589 = vmatprep.subr.mxu0 0.0
    %3590 = vmatpush2.msra.mxu0 0.0
    %3591 = vmatprep.subr.mxu0 0.0
    %3592 = vmatpush2.msra.mxu0 0.0
    %3593 = vmatprep.subr.mxu0 0.0
    %3594 = vmatpush2.msra.mxu0 0.0
    %3595 = vmatprep.mubr.f32.mxu0 0.0
    %3596 = vmatmul.mubr.f32.gmra.mxu0 %v3529
    %v3597 = vpop.f32.mrf.mxu0
    %v3598 = vadd.f32 0.0, %v3597
    %v3599 = vpop.f32.mrf.mxu0
    %3600 = vdwg.mxu0
    %3602 = vset.pattern.permute.xlu0 0
    %3603 = vperm.xlu0 %3602, %v2400
    %v3604 = vpop.permute.xlu0 %3603
    %v3605 = vlaneseq
    %v3606 = vshrl.u32 %v3605, 7
    %v3607 = vsub.s32 %v1926, %v3606
    %v3608 = vrot.slane %v3604, %v3607
    %v3609 = vsel %vm2014, %v3608, 0
    %3611 = vmatprep.subr.mxu0 0.0
    %3612 = vmatpush1.msra.mxu0 0.0
    %3613 = vmatprep.subr.mxu0 0.0
    %3614 = vmatpush1.msra.mxu0 0.0
    %3615 = vmatprep.subr.mxu0 0.0
    %3616 = vmatpush1.msra.mxu0 0.0
    %3617 = vmatprep.subr.mxu0 0.0
    %3618 = vmatpush1.msra.mxu0 0.0
    %3619 = vmatprep.subr.mxu0 0.0
    %3620 = vmatpush1.msra.mxu0 0.0
    %3621 = vmatprep.subr.mxu0 0.0
    %3622 = vmatpush1.msra.mxu0 0.0
    %3623 = vmatprep.subr.mxu0 0.0
    %3624 = vmatpush1.msra.mxu0 0.0
    %3625 = vmatprep.subr.mxu0 0.0
    %3626 = vmatpush1.msra.mxu0 0.0
    %3627 = vmatprep.subr.mxu0 0.0
    %3628 = vmatpush1.msra.mxu0 0.0
    %3629 = vmatprep.subr.mxu0 0.0
    %3630 = vmatpush1.msra.mxu0 0.0
    %3631 = vmatprep.subr.mxu0 0.0
    %3632 = vmatpush1.msra.mxu0 0.0
    %3633 = vmatprep.subr.mxu0 0.0
    %3634 = vmatpush1.msra.mxu0 0.0
    %3635 = vmatprep.subr.mxu0 0.0
    %3636 = vmatpush1.msra.mxu0 0.0
    %3637 = vmatprep.subr.mxu0 0.0
    %3638 = vmatpush1.msra.mxu0 0.0
    %3639 = vmatprep.subr.mxu0 0.0
    %3640 = vmatpush1.msra.mxu0 0.0
    %3641 = vmatprep.subr.mxu0 0.0
    %3642 = vmatpush1.msra.mxu0 %v1811
    %3643 = vmatprep.subr.mxu0 0.0
    %3644 = vmatpush2.msra.mxu0 0.0
    %3645 = vmatprep.subr.mxu0 0.0
    %3646 = vmatpush2.msra.mxu0 0.0
    %3647 = vmatprep.subr.mxu0 0.0
    %3648 = vmatpush2.msra.mxu0 0.0
    %3649 = vmatprep.subr.mxu0 0.0
    %3650 = vmatpush2.msra.mxu0 0.0
    %3651 = vmatprep.subr.mxu0 0.0
    %3652 = vmatpush2.msra.mxu0 0.0
    %3653 = vmatprep.subr.mxu0 0.0
    %3654 = vmatpush2.msra.mxu0 0.0
    %3655 = vmatprep.subr.mxu0 0.0
    %3656 = vmatpush2.msra.mxu0 0.0
    %3657 = vmatprep.subr.mxu0 0.0
    %3658 = vmatpush2.msra.mxu0 0.0
    %3659 = vmatprep.subr.mxu0 0.0
    %3660 = vmatpush2.msra.mxu0 0.0
    %3661 = vmatprep.subr.mxu0 0.0
    %3662 = vmatpush2.msra.mxu0 0.0
    %3663 = vmatprep.subr.mxu0 0.0
    %3664 = vmatpush2.msra.mxu0 0.0
    %3665 = vmatprep.subr.mxu0 0.0
    %3666 = vmatpush2.msra.mxu0 0.0
    %3667 = vmatprep.subr.mxu0 0.0
    %3668 = vmatpush2.msra.mxu0 0.0
    %3669 = vmatprep.subr.mxu0 0.0
    %3670 = vmatpush2.msra.mxu0 0.0
    %3671 = vmatprep.subr.mxu0 0.0
    %3672 = vmatpush2.msra.mxu0 0.0
    %3673 = vmatprep.subr.mxu0 0.0
    %3674 = vmatpush2.msra.mxu0 0.0
    %3675 = vmatprep.mubr.f32.mxu0 0.0
    %3676 = vmatmul.mubr.f32.gmra.mxu0 %v3609
    %v3677 = vpop.f32.mrf.mxu0
    %v3678 = vadd.f32 0.0, %v3677
    %v3679 = vpop.f32.mrf.mxu0
    %3680 = vdwg.mxu0
    %v3681 = vld [vmem:[%s10] sm:$0xff]
    %v3682 = vld [vmem:[%s10 + $0x8] sm:$0xff]
    %v3683 = vld [vmem:[%s10 + $0x10] sm:$0xff]
    %v3684 = vld [vmem:[%s10 + $0x18] sm:$0xff]
    %v3685 = vld [vmem:[%s11] sm:$0x1]
    %v3687 = vlaneseq
    %v3688 = vshrl.u32 %v3687, 7
    %v3689 = vsub.s32 0, %v3688
    %v3690 = vrot.slane %v3685, %v3689
    %v3708 = vrot.slane %v2558, 7
    %v3709 = vsel %vm1991, %v3708, %v2478
    %v3710 = vrot.slane %v2638, 6
    %v3711 = vsel %vm1993, %v3710, %v3709
    %v3712 = vrot.slane %v2718, 5
    %v3713 = vsel %vm1995, %v3712, %v3711
    %v3714 = vrot.slane %v2798, 4
    %v3715 = vsel %vm1997, %v3714, %v3713
    %v3716 = vrot.slane %v2878, 3
    %v3717 = vsel %vm1999, %v3716, %v3715
    %v3718 = vrot.slane %v2958, 2
    %v3719 = vsel %vm2001, %v3718, %v3717
    %v3720 = vrot.slane %v3038, 1
    %v3721 = vsel %vm2003, %v3720, %v3719
    %v3722 = vrot.slane %v3198, 7
    %v3723 = vsel %vm1991, %v3722, %v3118
    %v3724 = vrot.slane %v3278, 6
    %v3725 = vsel %vm1993, %v3724, %v3723
    %v3726 = vrot.slane %v3358, 5
    %v3727 = vsel %vm1995, %v3726, %v3725
    %v3728 = vrot.slane %v3438, 4
    %v3729 = vsel %vm1997, %v3728, %v3727
    %v3730 = vrot.slane %v3518, 3
    %v3731 = vsel %vm1999, %v3730, %v3729
    %v3732 = vrot.slane %v3598, 2
    %v3733 = vsel %vm2001, %v3732, %v3731
    %v3734 = vrot.slane %v3678, 1
    %v3735 = vsel %vm2003, %v3734, %v3733
    %v3736 = vsel %vm607, %v3721, 0
    %v3738 = vsel %vm607, %v3735, 0
    %3740 = vmatprep.subr.mxu0 0.0
    %3741 = vmatpush1.msra.mxu0 0.0
    %3742 = vmatprep.subr.mxu0 0.0
    %3743 = vmatpush1.msra.mxu0 0.0
    %3744 = vmatprep.subr.mxu0 0.0
    %3745 = vmatpush1.msra.mxu0 0.0
    %3746 = vmatprep.subr.mxu0 0.0
    %3747 = vmatpush1.msra.mxu0 0.0
    %3748 = vmatprep.subr.mxu0 0.0
    %3749 = vmatpush1.msra.mxu0 0.0
    %3750 = vmatprep.subr.mxu0 0.0
    %3751 = vmatpush1.msra.mxu0 0.0
    %3752 = vmatprep.subr.mxu0 0.0
    %3753 = vmatpush1.msra.mxu0 0.0
    %3754 = vmatprep.subr.mxu0 0.0
    %3755 = vmatpush1.msra.mxu0 0.0
    %3756 = vmatprep.subr.mxu0 0.0
    %3757 = vmatpush1.msra.mxu0 0.0
    %3758 = vmatprep.subr.mxu0 0.0
    %3759 = vmatpush1.msra.mxu0 0.0
    %3760 = vmatprep.subr.mxu0 0.0
    %3761 = vmatpush1.msra.mxu0 0.0
    %3762 = vmatprep.subr.mxu0 0.0
    %3763 = vmatpush1.msra.mxu0 0.0
    %3764 = vmatprep.subr.mxu0 0.0
    %3765 = vmatpush1.msra.mxu0 %v3684
    %3766 = vmatprep.subr.mxu0 0.0
    %3767 = vmatpush1.msra.mxu0 %v3683
    %3768 = vmatprep.subr.mxu0 0.0
    %3769 = vmatpush1.msra.mxu0 %v3682
    %3770 = vmatprep.subr.mxu0 0.0
    %3771 = vmatpush1.msra.mxu0 %v3681
    %3772 = vmatprep.subr.mxu0 0.0
    %3773 = vmatpush2.msra.mxu0 0.0
    %3774 = vmatprep.subr.mxu0 0.0
    %3775 = vmatpush2.msra.mxu0 0.0
    %3776 = vmatprep.subr.mxu0 0.0
    %3777 = vmatpush2.msra.mxu0 0.0
    %3778 = vmatprep.subr.mxu0 0.0
    %3779 = vmatpush2.msra.mxu0 0.0
    %3780 = vmatprep.subr.mxu0 0.0
    %3781 = vmatpush2.msra.mxu0 0.0
    %3782 = vmatprep.subr.mxu0 0.0
    %3783 = vmatpush2.msra.mxu0 0.0
    %3784 = vmatprep.subr.mxu0 0.0
    %3785 = vmatpush2.msra.mxu0 0.0
    %3786 = vmatprep.subr.mxu0 0.0
    %3787 = vmatpush2.msra.mxu0 0.0
    %3788 = vmatprep.subr.mxu0 0.0
    %3789 = vmatpush2.msra.mxu0 0.0
    %3790 = vmatprep.subr.mxu0 0.0
    %3791 = vmatpush2.msra.mxu0 0.0
    %3792 = vmatprep.subr.mxu0 0.0
    %3793 = vmatpush2.msra.mxu0 0.0
    %3794 = vmatprep.subr.mxu0 0.0
    %3795 = vmatpush2.msra.mxu0 0.0
    %3796 = vmatprep.subr.mxu0 0.0
    %3797 = vmatpush2.msra.mxu0 0.0
    %3798 = vmatprep.subr.mxu0 0.0
    %3799 = vmatpush2.msra.mxu0 0.0
    %3800 = vmatprep.subr.mxu0 0.0
    %3801 = vmatpush2.msra.mxu0 0.0
    %3802 = vmatprep.subr.mxu0 0.0
    %3803 = vmatpush2.msra.mxu0 0.0
    %3804 = vmatprep.mubr.f32.mxu0 0.0
    %3805 = vmatmul.mubr.f32.gmra.mxu0 %v3736
    %v3806 = vpop.f32.mrf.mxu0
    %v3807 = vadd.f32 %v3690, %v3806
    %v3808 = vpop.f32.mrf.mxu0
    %3809 = vmatprep.mubr.f32.mxu0 0.0
    %3810 = vmatmul.mubr.f32.gmra.mxu0 %v3738
    %v3811 = vpop.f32.mrf.mxu0
    %v3812 = vadd.f32 %v3690, %v3811
    %v3813 = vpop.f32.mrf.mxu0
    %3814 = vdwg.mxu0
    %3817 = vrot.lane.b32.xlu0 %v3807, 120
    %v3818 = vpop.permute.xlu0 %3817
    %3819 = vrot.lane.b32.xlu0 %v3812, 120
    %v3820 = vpop.permute.xlu0 %3819
    %3821 = vrot.lane.b32.xlu0 %v3807, 112
    %v3822 = vpop.permute.xlu0 %3821
    %3823 = vrot.lane.b32.xlu0 %v3812, 112
    %v3824 = vpop.permute.xlu0 %3823
    %3825 = vrot.lane.b32.xlu0 %v3807, 104
    %v3826 = vpop.permute.xlu0 %3825
    %3827 = vrot.lane.b32.xlu0 %v3812, 104
    %v3828 = vpop.permute.xlu0 %3827
    %3829 = vrot.lane.b32.xlu0 %v3807, 96
    %v3830 = vpop.permute.xlu0 %3829
    %v3831 = vsel %vm2014, %v3807, 0
    %v3833 = vsel %vm2014, %v3830, 0
    %3835 = vmatprep.subr.mxu0 0.0
    %3836 = vmatpush1.xpose.msra.mxu0 0.0
    %3837 = vmatprep.subr.mxu0 0.0
    %3838 = vmatpush1.xpose.msra.mxu0 0.0
    %3839 = vmatprep.subr.mxu0 0.0
    %3840 = vmatpush1.xpose.msra.mxu0 0.0
    %3841 = vmatprep.subr.mxu0 0.0
    %3842 = vmatpush1.xpose.msra.mxu0 0.0
    %3843 = vmatprep.subr.mxu0 0.0
    %3844 = vmatpush1.xpose.msra.mxu0 0.0
    %3845 = vmatprep.subr.mxu0 0.0
    %3846 = vmatpush1.xpose.msra.mxu0 0.0
    %3847 = vmatprep.subr.mxu0 0.0
    %3848 = vmatpush1.xpose.msra.mxu0 0.0
    %3849 = vmatprep.subr.mxu0 0.0
    %3850 = vmatpush1.xpose.msra.mxu0 0.0
    %3851 = vmatprep.subr.mxu0 0.0
    %3852 = vmatpush1.xpose.msra.mxu0 0.0
    %3853 = vmatprep.subr.mxu0 0.0
    %3854 = vmatpush1.xpose.msra.mxu0 0.0
    %3855 = vmatprep.subr.mxu0 0.0
    %3856 = vmatpush1.xpose.msra.mxu0 0.0
    %3857 = vmatprep.subr.mxu0 0.0
    %3858 = vmatpush1.xpose.msra.mxu0 0.0
    %3859 = vmatprep.subr.mxu0 0.0
    %3860 = vmatpush1.xpose.msra.mxu0 0.0
    %3861 = vmatprep.subr.mxu0 0.0
    %3862 = vmatpush1.xpose.msra.mxu0 0.0
    %3863 = vmatprep.subr.mxu0 0.0
    %3864 = vmatpush1.xpose.msra.mxu0 0.0
    %3865 = vmatprep.subr.mxu0 0.0
    %3866 = vmatpush1.xpose.msra.mxu0 %v3833
    %3867 = vmatprep.subr.mxu0 0.0
    %3868 = vmatpush2.xpose.msra.mxu0 0.0
    %3869 = vmatprep.subr.mxu0 0.0
    %3870 = vmatpush2.xpose.msra.mxu0 0.0
    %3871 = vmatprep.subr.mxu0 0.0
    %3872 = vmatpush2.xpose.msra.mxu0 0.0
    %3873 = vmatprep.subr.mxu0 0.0
    %3874 = vmatpush2.xpose.msra.mxu0 0.0
    %3875 = vmatprep.subr.mxu0 0.0
    %3876 = vmatpush2.xpose.msra.mxu0 0.0
    %3877 = vmatprep.subr.mxu0 0.0
    %3878 = vmatpush2.xpose.msra.mxu0 0.0
    %3879 = vmatprep.subr.mxu0 0.0
    %3880 = vmatpush2.xpose.msra.mxu0 0.0
    %3881 = vmatprep.subr.mxu0 0.0
    %3882 = vmatpush2.xpose.msra.mxu0 0.0
    %3883 = vmatprep.subr.mxu0 0.0
    %3884 = vmatpush2.xpose.msra.mxu0 0.0
    %3885 = vmatprep.subr.mxu0 0.0
    %3886 = vmatpush2.xpose.msra.mxu0 0.0
    %3887 = vmatprep.subr.mxu0 0.0
    %3888 = vmatpush2.xpose.msra.mxu0 0.0
    %3889 = vmatprep.subr.mxu0 0.0
    %3890 = vmatpush2.xpose.msra.mxu0 0.0
    %3891 = vmatprep.subr.mxu0 0.0
    %3892 = vmatpush2.xpose.msra.mxu0 0.0
    %3893 = vmatprep.subr.mxu0 0.0
    %3894 = vmatpush2.xpose.msra.mxu0 0.0
    %3895 = vmatprep.subr.mxu0 0.0
    %3896 = vmatpush2.xpose.msra.mxu0 0.0
    %3897 = vmatprep.subr.mxu0 0.0
    %3898 = vmatpush2.xpose.msra.mxu0 0.0
    %3899 = vmatprep.mubr.f32.mxu0 0.0
    %3900 = vmatmul.mubr.f32.gmra.mxu0 %v3831
    %v3901 = vpop.f32.mrf.mxu0
    %v3902 = vadd.f32 0.0, %v3901
    %v3903 = vpop.f32.mrf.mxu0
    %3904 = vdwg.mxu0
    %3905 = vrot.lane.b32.xlu0 %v3812, 96
    %v3906 = vpop.permute.xlu0 %3905
    %v3907 = vsel %vm2014, %v3812, 0
    %v3909 = vsel %vm2014, %v3906, 0
    %3911 = vmatprep.subr.mxu0 0.0
    %3912 = vmatpush1.xpose.msra.mxu0 0.0
    %3913 = vmatprep.subr.mxu0 0.0
    %3914 = vmatpush1.xpose.msra.mxu0 0.0
    %3915 = vmatprep.subr.mxu0 0.0
    %3916 = vmatpush1.xpose.msra.mxu0 0.0
    %3917 = vmatprep.subr.mxu0 0.0
    %3918 = vmatpush1.xpose.msra.mxu0 0.0
    %3919 = vmatprep.subr.mxu0 0.0
    %3920 = vmatpush1.xpose.msra.mxu0 0.0
    %3921 = vmatprep.subr.mxu0 0.0
    %3922 = vmatpush1.xpose.msra.mxu0 0.0
    %3923 = vmatprep.subr.mxu0 0.0
    %3924 = vmatpush1.xpose.msra.mxu0 0.0
    %3925 = vmatprep.subr.mxu0 0.0
    %3926 = vmatpush1.xpose.msra.mxu0 0.0
    %3927 = vmatprep.subr.mxu0 0.0
    %3928 = vmatpush1.xpose.msra.mxu0 0.0
    %3929 = vmatprep.subr.mxu0 0.0
    %3930 = vmatpush1.xpose.msra.mxu0 0.0
    %3931 = vmatprep.subr.mxu0 0.0
    %3932 = vmatpush1.xpose.msra.mxu0 0.0
    %3933 = vmatprep.subr.mxu0 0.0
    %3934 = vmatpush1.xpose.msra.mxu0 0.0
    %3935 = vmatprep.subr.mxu0 0.0
    %3936 = vmatpush1.xpose.msra.mxu0 0.0
    %3937 = vmatprep.subr.mxu0 0.0
    %3938 = vmatpush1.xpose.msra.mxu0 0.0
    %3939 = vmatprep.subr.mxu0 0.0
    %3940 = vmatpush1.xpose.msra.mxu0 0.0
    %3941 = vmatprep.subr.mxu0 0.0
    %3942 = vmatpush1.xpose.msra.mxu0 %v3909
    %3943 = vmatprep.subr.mxu0 0.0
    %3944 = vmatpush2.xpose.msra.mxu0 0.0
    %3945 = vmatprep.subr.mxu0 0.0
    %3946 = vmatpush2.xpose.msra.mxu0 0.0
    %3947 = vmatprep.subr.mxu0 0.0
    %3948 = vmatpush2.xpose.msra.mxu0 0.0
    %3949 = vmatprep.subr.mxu0 0.0
    %3950 = vmatpush2.xpose.msra.mxu0 0.0
    %3951 = vmatprep.subr.mxu0 0.0
    %3952 = vmatpush2.xpose.msra.mxu0 0.0
    %3953 = vmatprep.subr.mxu0 0.0
    %3954 = vmatpush2.xpose.msra.mxu0 0.0
    %3955 = vmatprep.subr.mxu0 0.0
    %3956 = vmatpush2.xpose.msra.mxu0 0.0
    %3957 = vmatprep.subr.mxu0 0.0
    %3958 = vmatpush2.xpose.msra.mxu0 0.0
    %3959 = vmatprep.subr.mxu0 0.0
    %3960 = vmatpush2.xpose.msra.mxu0 0.0
    %3961 = vmatprep.subr.mxu0 0.0
    %3962 = vmatpush2.xpose.msra.mxu0 0.0
    %3963 = vmatprep.subr.mxu0 0.0
    %3964 = vmatpush2.xpose.msra.mxu0 0.0
    %3965 = vmatprep.subr.mxu0 0.0
    %3966 = vmatpush2.xpose.msra.mxu0 0.0
    %3967 = vmatprep.subr.mxu0 0.0
    %3968 = vmatpush2.xpose.msra.mxu0 0.0
    %3969 = vmatprep.subr.mxu0 0.0
    %3970 = vmatpush2.xpose.msra.mxu0 0.0
    %3971 = vmatprep.subr.mxu0 0.0
    %3972 = vmatpush2.xpose.msra.mxu0 0.0
    %3973 = vmatprep.subr.mxu0 0.0
    %3974 = vmatpush2.xpose.msra.mxu0 0.0
    %3975 = vmatprep.mubr.f32.mxu0 0.0
    %3976 = vmatmul.mubr.f32.gmra.mxu0 %v3907
    %v3977 = vpop.f32.mrf.mxu0
    %v3978 = vadd.f32 0.0, %v3977
    %v3979 = vpop.f32.mrf.mxu0
    %3980 = vdwg.mxu0
    %3981 = vrot.lane.b32.xlu0 %v3818, 96
    %v3982 = vpop.permute.xlu0 %3981
    %v3983 = vsel %vm2014, %v3818, 0
    %v3985 = vsel %vm2014, %v3982, 0
    %3987 = vmatprep.subr.mxu0 0.0
    %3988 = vmatpush1.xpose.msra.mxu0 0.0
    %3989 = vmatprep.subr.mxu0 0.0
    %3990 = vmatpush1.xpose.msra.mxu0 0.0
    %3991 = vmatprep.subr.mxu0 0.0
    %3992 = vmatpush1.xpose.msra.mxu0 0.0
    %3993 = vmatprep.subr.mxu0 0.0
    %3994 = vmatpush1.xpose.msra.mxu0 0.0
    %3995 = vmatprep.subr.mxu0 0.0
    %3996 = vmatpush1.xpose.msra.mxu0 0.0
    %3997 = vmatprep.subr.mxu0 0.0
    %3998 = vmatpush1.xpose.msra.mxu0 0.0
    %3999 = vmatprep.subr.mxu0 0.0
    %4000 = vmatpush1.xpose.msra.mxu0 0.0
    %4001 = vmatprep.subr.mxu0 0.0
    %4002 = vmatpush1.xpose.msra.mxu0 0.0
    %4003 = vmatprep.subr.mxu0 0.0
    %4004 = vmatpush1.xpose.msra.mxu0 0.0
    %4005 = vmatprep.subr.mxu0 0.0
    %4006 = vmatpush1.xpose.msra.mxu0 0.0
    %4007 = vmatprep.subr.mxu0 0.0
    %4008 = vmatpush1.xpose.msra.mxu0 0.0
    %4009 = vmatprep.subr.mxu0 0.0
    %4010 = vmatpush1.xpose.msra.mxu0 0.0
    %4011 = vmatprep.subr.mxu0 0.0
    %4012 = vmatpush1.xpose.msra.mxu0 0.0
    %4013 = vmatprep.subr.mxu0 0.0
    %4014 = vmatpush1.xpose.msra.mxu0 0.0
    %4015 = vmatprep.subr.mxu0 0.0
    %4016 = vmatpush1.xpose.msra.mxu0 0.0
    %4017 = vmatprep.subr.mxu0 0.0
    %4018 = vmatpush1.xpose.msra.mxu0 %v3985
    %4019 = vmatprep.subr.mxu0 0.0
    %4020 = vmatpush2.xpose.msra.mxu0 0.0
    %4021 = vmatprep.subr.mxu0 0.0
    %4022 = vmatpush2.xpose.msra.mxu0 0.0
    %4023 = vmatprep.subr.mxu0 0.0
    %4024 = vmatpush2.xpose.msra.mxu0 0.0
    %4025 = vmatprep.subr.mxu0 0.0
    %4026 = vmatpush2.xpose.msra.mxu0 0.0
    %4027 = vmatprep.subr.mxu0 0.0
    %4028 = vmatpush2.xpose.msra.mxu0 0.0
    %4029 = vmatprep.subr.mxu0 0.0
    %4030 = vmatpush2.xpose.msra.mxu0 0.0
    %4031 = vmatprep.subr.mxu0 0.0
    %4032 = vmatpush2.xpose.msra.mxu0 0.0
    %4033 = vmatprep.subr.mxu0 0.0
    %4034 = vmatpush2.xpose.msra.mxu0 0.0
    %4035 = vmatprep.subr.mxu0 0.0
    %4036 = vmatpush2.xpose.msra.mxu0 0.0
    %4037 = vmatprep.subr.mxu0 0.0
    %4038 = vmatpush2.xpose.msra.mxu0 0.0
    %4039 = vmatprep.subr.mxu0 0.0
    %4040 = vmatpush2.xpose.msra.mxu0 0.0
    %4041 = vmatprep.subr.mxu0 0.0
    %4042 = vmatpush2.xpose.msra.mxu0 0.0
    %4043 = vmatprep.subr.mxu0 0.0
    %4044 = vmatpush2.xpose.msra.mxu0 0.0
    %4045 = vmatprep.subr.mxu0 0.0
    %4046 = vmatpush2.xpose.msra.mxu0 0.0
    %4047 = vmatprep.subr.mxu0 0.0
    %4048 = vmatpush2.xpose.msra.mxu0 0.0
    %4049 = vmatprep.subr.mxu0 0.0
    %4050 = vmatpush2.xpose.msra.mxu0 0.0
    %4051 = vmatprep.mubr.f32.mxu0 0.0
    %4052 = vmatmul.mubr.f32.gmra.mxu0 %v3983
    %v4053 = vpop.f32.mrf.mxu0
    %v4054 = vadd.f32 0.0, %v4053
    %v4055 = vpop.f32.mrf.mxu0
    %4056 = vdwg.mxu0
    %4057 = vrot.lane.b32.xlu0 %v3820, 96
    %v4058 = vpop.permute.xlu0 %4057
    %v4059 = vsel %vm2014, %v3820, 0
    %v4061 = vsel %vm2014, %v4058, 0
    %4063 = vmatprep.subr.mxu0 0.0
    %4064 = vmatpush1.xpose.msra.mxu0 0.0
    %4065 = vmatprep.subr.mxu0 0.0
    %4066 = vmatpush1.xpose.msra.mxu0 0.0
    %4067 = vmatprep.subr.mxu0 0.0
    %4068 = vmatpush1.xpose.msra.mxu0 0.0
    %4069 = vmatprep.subr.mxu0 0.0
    %4070 = vmatpush1.xpose.msra.mxu0 0.0
    %4071 = vmatprep.subr.mxu0 0.0
    %4072 = vmatpush1.xpose.msra.mxu0 0.0
    %4073 = vmatprep.subr.mxu0 0.0
    %4074 = vmatpush1.xpose.msra.mxu0 0.0
    %4075 = vmatprep.subr.mxu0 0.0
    %4076 = vmatpush1.xpose.msra.mxu0 0.0
    %4077 = vmatprep.subr.mxu0 0.0
    %4078 = vmatpush1.xpose.msra.mxu0 0.0
    %4079 = vmatprep.subr.mxu0 0.0
    %4080 = vmatpush1.xpose.msra.mxu0 0.0
    %4081 = vmatprep.subr.mxu0 0.0
    %4082 = vmatpush1.xpose.msra.mxu0 0.0
    %4083 = vmatprep.subr.mxu0 0.0
    %4084 = vmatpush1.xpose.msra.mxu0 0.0
    %4085 = vmatprep.subr.mxu0 0.0
    %4086 = vmatpush1.xpose.msra.mxu0 0.0
    %4087 = vmatprep.subr.mxu0 0.0
    %4088 = vmatpush1.xpose.msra.mxu0 0.0
    %4089 = vmatprep.subr.mxu0 0.0
    %4090 = vmatpush1.xpose.msra.mxu0 0.0
    %4091 = vmatprep.subr.mxu0 0.0
    %4092 = vmatpush1.xpose.msra.mxu0 0.0
    %4093 = vmatprep.subr.mxu0 0.0
    %4094 = vmatpush1.xpose.msra.mxu0 %v4061
    %4095 = vmatprep.subr.mxu0 0.0
    %4096 = vmatpush2.xpose.msra.mxu0 0.0
    %4097 = vmatprep.subr.mxu0 0.0
    %4098 = vmatpush2.xpose.msra.mxu0 0.0
    %4099 = vmatprep.subr.mxu0 0.0
    %4100 = vmatpush2.xpose.msra.mxu0 0.0
    %4101 = vmatprep.subr.mxu0 0.0
    %4102 = vmatpush2.xpose.msra.mxu0 0.0
    %4103 = vmatprep.subr.mxu0 0.0
    %4104 = vmatpush2.xpose.msra.mxu0 0.0
    %4105 = vmatprep.subr.mxu0 0.0
    %4106 = vmatpush2.xpose.msra.mxu0 0.0
    %4107 = vmatprep.subr.mxu0 0.0
    %4108 = vmatpush2.xpose.msra.mxu0 0.0
    %4109 = vmatprep.subr.mxu0 0.0
    %4110 = vmatpush2.xpose.msra.mxu0 0.0
    %4111 = vmatprep.subr.mxu0 0.0
    %4112 = vmatpush2.xpose.msra.mxu0 0.0
    %4113 = vmatprep.subr.mxu0 0.0
    %4114 = vmatpush2.xpose.msra.mxu0 0.0
    %4115 = vmatprep.subr.mxu0 0.0
    %4116 = vmatpush2.xpose.msra.mxu0 0.0
    %4117 = vmatprep.subr.mxu0 0.0
    %4118 = vmatpush2.xpose.msra.mxu0 0.0
    %4119 = vmatprep.subr.mxu0 0.0
    %4120 = vmatpush2.xpose.msra.mxu0 0.0
    %4121 = vmatprep.subr.mxu0 0.0
    %4122 = vmatpush2.xpose.msra.mxu0 0.0
    %4123 = vmatprep.subr.mxu0 0.0
    %4124 = vmatpush2.xpose.msra.mxu0 0.0
    %4125 = vmatprep.subr.mxu0 0.0
    %4126 = vmatpush2.xpose.msra.mxu0 0.0
    %4127 = vmatprep.mubr.f32.mxu0 0.0
    %4128 = vmatmul.mubr.f32.gmra.mxu0 %v4059
    %v4129 = vpop.f32.mrf.mxu0
    %v4130 = vadd.f32 0.0, %v4129
    %v4131 = vpop.f32.mrf.mxu0
    %4132 = vdwg.mxu0
    %4133 = vrot.lane.b32.xlu0 %v3822, 96
    %v4134 = vpop.permute.xlu0 %4133
    %v4135 = vsel %vm2014, %v3822, 0
    %v4137 = vsel %vm2014, %v4134, 0
    %4139 = vmatprep.subr.mxu0 0.0
    %4140 = vmatpush1.xpose.msra.mxu0 0.0
    %4141 = vmatprep.subr.mxu0 0.0
    %4142 = vmatpush1.xpose.msra.mxu0 0.0
    %4143 = vmatprep.subr.mxu0 0.0
    %4144 = vmatpush1.xpose.msra.mxu0 0.0
    %4145 = vmatprep.subr.mxu0 0.0
    %4146 = vmatpush1.xpose.msra.mxu0 0.0
    %4147 = vmatprep.subr.mxu0 0.0
    %4148 = vmatpush1.xpose.msra.mxu0 0.0
    %4149 = vmatprep.subr.mxu0 0.0
    %4150 = vmatpush1.xpose.msra.mxu0 0.0
    %4151 = vmatprep.subr.mxu0 0.0
    %4152 = vmatpush1.xpose.msra.mxu0 0.0
    %4153 = vmatprep.subr.mxu0 0.0
    %4154 = vmatpush1.xpose.msra.mxu0 0.0
    %4155 = vmatprep.subr.mxu0 0.0
    %4156 = vmatpush1.xpose.msra.mxu0 0.0
    %4157 = vmatprep.subr.mxu0 0.0
    %4158 = vmatpush1.xpose.msra.mxu0 0.0
    %4159 = vmatprep.subr.mxu0 0.0
    %4160 = vmatpush1.xpose.msra.mxu0 0.0
    %4161 = vmatprep.subr.mxu0 0.0
    %4162 = vmatpush1.xpose.msra.mxu0 0.0
    %4163 = vmatprep.subr.mxu0 0.0
    %4164 = vmatpush1.xpose.msra.mxu0 0.0
    %4165 = vmatprep.subr.mxu0 0.0
    %4166 = vmatpush1.xpose.msra.mxu0 0.0
    %4167 = vmatprep.subr.mxu0 0.0
    %4168 = vmatpush1.xpose.msra.mxu0 0.0
    %4169 = vmatprep.subr.mxu0 0.0
    %4170 = vmatpush1.xpose.msra.mxu0 %v4137
    %4171 = vmatprep.subr.mxu0 0.0
    %4172 = vmatpush2.xpose.msra.mxu0 0.0
    %4173 = vmatprep.subr.mxu0 0.0
    %4174 = vmatpush2.xpose.msra.mxu0 0.0
    %4175 = vmatprep.subr.mxu0 0.0
    %4176 = vmatpush2.xpose.msra.mxu0 0.0
    %4177 = vmatprep.subr.mxu0 0.0
    %4178 = vmatpush2.xpose.msra.mxu0 0.0
    %4179 = vmatprep.subr.mxu0 0.0
    %4180 = vmatpush2.xpose.msra.mxu0 0.0
    %4181 = vmatprep.subr.mxu0 0.0
    %4182 = vmatpush2.xpose.msra.mxu0 0.0
    %4183 = vmatprep.subr.mxu0 0.0
    %4184 = vmatpush2.xpose.msra.mxu0 0.0
    %4185 = vmatprep.subr.mxu0 0.0
    %4186 = vmatpush2.xpose.msra.mxu0 0.0
    %4187 = vmatprep.subr.mxu0 0.0
    %4188 = vmatpush2.xpose.msra.mxu0 0.0
    %4189 = vmatprep.subr.mxu0 0.0
    %4190 = vmatpush2.xpose.msra.mxu0 0.0
    %4191 = vmatprep.subr.mxu0 0.0
    %4192 = vmatpush2.xpose.msra.mxu0 0.0
    %4193 = vmatprep.subr.mxu0 0.0
    %4194 = vmatpush2.xpose.msra.mxu0 0.0
    %4195 = vmatprep.subr.mxu0 0.0
    %4196 = vmatpush2.xpose.msra.mxu0 0.0
    %4197 = vmatprep.subr.mxu0 0.0
    %4198 = vmatpush2.xpose.msra.mxu0 0.0
    %4199 = vmatprep.subr.mxu0 0.0
    %4200 = vmatpush2.xpose.msra.mxu0 0.0
    %4201 = vmatprep.subr.mxu0 0.0
    %4202 = vmatpush2.xpose.msra.mxu0 0.0
    %4203 = vmatprep.mubr.f32.mxu0 0.0
    %4204 = vmatmul.mubr.f32.gmra.mxu0 %v4135
    %v4205 = vpop.f32.mrf.mxu0
    %v4206 = vadd.f32 0.0, %v4205
    %v4207 = vpop.f32.mrf.mxu0
    %4208 = vdwg.mxu0
    %4209 = vrot.lane.b32.xlu0 %v3824, 96
    %v4210 = vpop.permute.xlu0 %4209
    %v4211 = vsel %vm2014, %v3824, 0
    %v4213 = vsel %vm2014, %v4210, 0
    %4215 = vmatprep.subr.mxu0 0.0
    %4216 = vmatpush1.xpose.msra.mxu0 0.0
    %4217 = vmatprep.subr.mxu0 0.0
    %4218 = vmatpush1.xpose.msra.mxu0 0.0
    %4219 = vmatprep.subr.mxu0 0.0
    %4220 = vmatpush1.xpose.msra.mxu0 0.0
    %4221 = vmatprep.subr.mxu0 0.0
    %4222 = vmatpush1.xpose.msra.mxu0 0.0
    %4223 = vmatprep.subr.mxu0 0.0
    %4224 = vmatpush1.xpose.msra.mxu0 0.0
    %4225 = vmatprep.subr.mxu0 0.0
    %4226 = vmatpush1.xpose.msra.mxu0 0.0
    %4227 = vmatprep.subr.mxu0 0.0
    %4228 = vmatpush1.xpose.msra.mxu0 0.0
    %4229 = vmatprep.subr.mxu0 0.0
    %4230 = vmatpush1.xpose.msra.mxu0 0.0
    %4231 = vmatprep.subr.mxu0 0.0
    %4232 = vmatpush1.xpose.msra.mxu0 0.0
    %4233 = vmatprep.subr.mxu0 0.0
    %4234 = vmatpush1.xpose.msra.mxu0 0.0
    %4235 = vmatprep.subr.mxu0 0.0
    %4236 = vmatpush1.xpose.msra.mxu0 0.0
    %4237 = vmatprep.subr.mxu0 0.0
    %4238 = vmatpush1.xpose.msra.mxu0 0.0
    %4239 = vmatprep.subr.mxu0 0.0
    %4240 = vmatpush1.xpose.msra.mxu0 0.0
    %4241 = vmatprep.subr.mxu0 0.0
    %4242 = vmatpush1.xpose.msra.mxu0 0.0
    %4243 = vmatprep.subr.mxu0 0.0
    %4244 = vmatpush1.xpose.msra.mxu0 0.0
    %4245 = vmatprep.subr.mxu0 0.0
    %4246 = vmatpush1.xpose.msra.mxu0 %v4213
    %4247 = vmatprep.subr.mxu0 0.0
    %4248 = vmatpush2.xpose.msra.mxu0 0.0
    %4249 = vmatprep.subr.mxu0 0.0
    %4250 = vmatpush2.xpose.msra.mxu0 0.0
    %4251 = vmatprep.subr.mxu0 0.0
    %4252 = vmatpush2.xpose.msra.mxu0 0.0
    %4253 = vmatprep.subr.mxu0 0.0
    %4254 = vmatpush2.xpose.msra.mxu0 0.0
    %4255 = vmatprep.subr.mxu0 0.0
    %4256 = vmatpush2.xpose.msra.mxu0 0.0
    %4257 = vmatprep.subr.mxu0 0.0
    %4258 = vmatpush2.xpose.msra.mxu0 0.0
    %4259 = vmatprep.subr.mxu0 0.0
    %4260 = vmatpush2.xpose.msra.mxu0 0.0
    %4261 = vmatprep.subr.mxu0 0.0
    %4262 = vmatpush2.xpose.msra.mxu0 0.0
    %4263 = vmatprep.subr.mxu0 0.0
    %4264 = vmatpush2.xpose.msra.mxu0 0.0
    %4265 = vmatprep.subr.mxu0 0.0
    %4266 = vmatpush2.xpose.msra.mxu0 0.0
    %4267 = vmatprep.subr.mxu0 0.0
    %4268 = vmatpush2.xpose.msra.mxu0 0.0
    %4269 = vmatprep.subr.mxu0 0.0
    %4270 = vmatpush2.xpose.msra.mxu0 0.0
    %4271 = vmatprep.subr.mxu0 0.0
    %4272 = vmatpush2.xpose.msra.mxu0 0.0
    %4273 = vmatprep.subr.mxu0 0.0
    %4274 = vmatpush2.xpose.msra.mxu0 0.0
    %4275 = vmatprep.subr.mxu0 0.0
    %4276 = vmatpush2.xpose.msra.mxu0 0.0
    %4277 = vmatprep.subr.mxu0 0.0
    %4278 = vmatpush2.xpose.msra.mxu0 0.0
    %4279 = vmatprep.mubr.f32.mxu0 0.0
    %4280 = vmatmul.mubr.f32.gmra.mxu0 %v4211
    %v4281 = vpop.f32.mrf.mxu0
    %v4282 = vadd.f32 0.0, %v4281
    %v4283 = vpop.f32.mrf.mxu0
    %4284 = vdwg.mxu0
    %4285 = vrot.lane.b32.xlu0 %v3826, 96
    %v4286 = vpop.permute.xlu0 %4285
    %v4287 = vsel %vm2014, %v3826, 0
    %v4289 = vsel %vm2014, %v4286, 0
    %4291 = vmatprep.subr.mxu0 0.0
    %4292 = vmatpush1.xpose.msra.mxu0 0.0
    %4293 = vmatprep.subr.mxu0 0.0
    %4294 = vmatpush1.xpose.msra.mxu0 0.0
    %4295 = vmatprep.subr.mxu0 0.0
    %4296 = vmatpush1.xpose.msra.mxu0 0.0
    %4297 = vmatprep.subr.mxu0 0.0
    %4298 = vmatpush1.xpose.msra.mxu0 0.0
    %4299 = vmatprep.subr.mxu0 0.0
    %4300 = vmatpush1.xpose.msra.mxu0 0.0
    %4301 = vmatprep.subr.mxu0 0.0
    %4302 = vmatpush1.xpose.msra.mxu0 0.0
    %4303 = vmatprep.subr.mxu0 0.0
    %4304 = vmatpush1.xpose.msra.mxu0 0.0
    %4305 = vmatprep.subr.mxu0 0.0
    %4306 = vmatpush1.xpose.msra.mxu0 0.0
    %4307 = vmatprep.subr.mxu0 0.0
    %4308 = vmatpush1.xpose.msra.mxu0 0.0
    %4309 = vmatprep.subr.mxu0 0.0
    %4310 = vmatpush1.xpose.msra.mxu0 0.0
    %4311 = vmatprep.subr.mxu0 0.0
    %4312 = vmatpush1.xpose.msra.mxu0 0.0
    %4313 = vmatprep.subr.mxu0 0.0
    %4314 = vmatpush1.xpose.msra.mxu0 0.0
    %4315 = vmatprep.subr.mxu0 0.0
    %4316 = vmatpush1.xpose.msra.mxu0 0.0
    %4317 = vmatprep.subr.mxu0 0.0
    %4318 = vmatpush1.xpose.msra.mxu0 0.0
    %4319 = vmatprep.subr.mxu0 0.0
    %4320 = vmatpush1.xpose.msra.mxu0 0.0
    %4321 = vmatprep.subr.mxu0 0.0
    %4322 = vmatpush1.xpose.msra.mxu0 %v4289
    %4323 = vmatprep.subr.mxu0 0.0
    %4324 = vmatpush2.xpose.msra.mxu0 0.0
    %4325 = vmatprep.subr.mxu0 0.0
    %4326 = vmatpush2.xpose.msra.mxu0 0.0
    %4327 = vmatprep.subr.mxu0 0.0
    %4328 = vmatpush2.xpose.msra.mxu0 0.0
    %4329 = vmatprep.subr.mxu0 0.0
    %4330 = vmatpush2.xpose.msra.mxu0 0.0
    %4331 = vmatprep.subr.mxu0 0.0
    %4332 = vmatpush2.xpose.msra.mxu0 0.0
    %4333 = vmatprep.subr.mxu0 0.0
    %4334 = vmatpush2.xpose.msra.mxu0 0.0
    %4335 = vmatprep.subr.mxu0 0.0
    %4336 = vmatpush2.xpose.msra.mxu0 0.0
    %4337 = vmatprep.subr.mxu0 0.0
    %4338 = vmatpush2.xpose.msra.mxu0 0.0
    %4339 = vmatprep.subr.mxu0 0.0
    %4340 = vmatpush2.xpose.msra.mxu0 0.0
    %4341 = vmatprep.subr.mxu0 0.0
    %4342 = vmatpush2.xpose.msra.mxu0 0.0
    %4343 = vmatprep.subr.mxu0 0.0
    %4344 = vmatpush2.xpose.msra.mxu0 0.0
    %4345 = vmatprep.subr.mxu0 0.0
    %4346 = vmatpush2.xpose.msra.mxu0 0.0
    %4347 = vmatprep.subr.mxu0 0.0
    %4348 = vmatpush2.xpose.msra.mxu0 0.0
    %4349 = vmatprep.subr.mxu0 0.0
    %4350 = vmatpush2.xpose.msra.mxu0 0.0
    %4351 = vmatprep.subr.mxu0 0.0
    %4352 = vmatpush2.xpose.msra.mxu0 0.0
    %4353 = vmatprep.subr.mxu0 0.0
    %4354 = vmatpush2.xpose.msra.mxu0 0.0
    %4355 = vmatprep.mubr.f32.mxu0 0.0
    %4356 = vmatmul.mubr.f32.gmra.mxu0 %v4287
    %v4357 = vpop.f32.mrf.mxu0
    %v4358 = vadd.f32 0.0, %v4357
    %v4359 = vpop.f32.mrf.mxu0
    %4360 = vdwg.mxu0
    %4361 = vrot.lane.b32.xlu0 %v3828, 96
    %v4362 = vpop.permute.xlu0 %4361
    %v4363 = vsel %vm2014, %v3828, 0
    %v4365 = vsel %vm2014, %v4362, 0
    %4367 = vmatprep.subr.mxu0 0.0
    %4368 = vmatpush1.xpose.msra.mxu0 0.0
    %4369 = vmatprep.subr.mxu0 0.0
    %4370 = vmatpush1.xpose.msra.mxu0 0.0
    %4371 = vmatprep.subr.mxu0 0.0
    %4372 = vmatpush1.xpose.msra.mxu0 0.0
    %4373 = vmatprep.subr.mxu0 0.0
    %4374 = vmatpush1.xpose.msra.mxu0 0.0
    %4375 = vmatprep.subr.mxu0 0.0
    %4376 = vmatpush1.xpose.msra.mxu0 0.0
    %4377 = vmatprep.subr.mxu0 0.0
    %4378 = vmatpush1.xpose.msra.mxu0 0.0
    %4379 = vmatprep.subr.mxu0 0.0
    %4380 = vmatpush1.xpose.msra.mxu0 0.0
    %4381 = vmatprep.subr.mxu0 0.0
    %4382 = vmatpush1.xpose.msra.mxu0 0.0
    %4383 = vmatprep.subr.mxu0 0.0
    %4384 = vmatpush1.xpose.msra.mxu0 0.0
    %4385 = vmatprep.subr.mxu0 0.0
    %4386 = vmatpush1.xpose.msra.mxu0 0.0
    %4387 = vmatprep.subr.mxu0 0.0
    %4388 = vmatpush1.xpose.msra.mxu0 0.0
    %4389 = vmatprep.subr.mxu0 0.0
    %4390 = vmatpush1.xpose.msra.mxu0 0.0
    %4391 = vmatprep.subr.mxu0 0.0
    %4392 = vmatpush1.xpose.msra.mxu0 0.0
    %4393 = vmatprep.subr.mxu0 0.0
    %4394 = vmatpush1.xpose.msra.mxu0 0.0
    %4395 = vmatprep.subr.mxu0 0.0
    %4396 = vmatpush1.xpose.msra.mxu0 0.0
    %4397 = vmatprep.subr.mxu0 0.0
    %4398 = vmatpush1.xpose.msra.mxu0 %v4365
    %4399 = vmatprep.subr.mxu0 0.0
    %4400 = vmatpush2.xpose.msra.mxu0 0.0
    %4401 = vmatprep.subr.mxu0 0.0
    %4402 = vmatpush2.xpose.msra.mxu0 0.0
    %4403 = vmatprep.subr.mxu0 0.0
    %4404 = vmatpush2.xpose.msra.mxu0 0.0
    %4405 = vmatprep.subr.mxu0 0.0
    %4406 = vmatpush2.xpose.msra.mxu0 0.0
    %4407 = vmatprep.subr.mxu0 0.0
    %4408 = vmatpush2.xpose.msra.mxu0 0.0
    %4409 = vmatprep.subr.mxu0 0.0
    %4410 = vmatpush2.xpose.msra.mxu0 0.0
    %4411 = vmatprep.subr.mxu0 0.0
    %4412 = vmatpush2.xpose.msra.mxu0 0.0
    %4413 = vmatprep.subr.mxu0 0.0
    %4414 = vmatpush2.xpose.msra.mxu0 0.0
    %4415 = vmatprep.subr.mxu0 0.0
    %4416 = vmatpush2.xpose.msra.mxu0 0.0
    %4417 = vmatprep.subr.mxu0 0.0
    %4418 = vmatpush2.xpose.msra.mxu0 0.0
    %4419 = vmatprep.subr.mxu0 0.0
    %4420 = vmatpush2.xpose.msra.mxu0 0.0
    %4421 = vmatprep.subr.mxu0 0.0
    %4422 = vmatpush2.xpose.msra.mxu0 0.0
    %4423 = vmatprep.subr.mxu0 0.0
    %4424 = vmatpush2.xpose.msra.mxu0 0.0
    %4425 = vmatprep.subr.mxu0 0.0
    %4426 = vmatpush2.xpose.msra.mxu0 0.0
    %4427 = vmatprep.subr.mxu0 0.0
    %4428 = vmatpush2.xpose.msra.mxu0 0.0
    %4429 = vmatprep.subr.mxu0 0.0
    %4430 = vmatpush2.xpose.msra.mxu0 0.0
    %4431 = vmatprep.mubr.f32.mxu0 0.0
    %4432 = vmatmul.mubr.f32.gmra.mxu0 %v4363
    %v4433 = vpop.f32.mrf.mxu0
    %v4434 = vadd.f32 0.0, %v4433
    %v4435 = vpop.f32.mrf.mxu0
    %4436 = vdwg.mxu0
    %v4437 = vmul.f32 %v3902, 0.35355338
    %v4438 = vmul.f32 %v3978, 0.35355338
    %v4439 = vmul.f32 %v4054, 0.35355338
    %v4440 = vmul.f32 %v4130, 0.35355338
    %v4441 = vmul.f32 %v4206, 0.35355338
    %v4442 = vmul.f32 %v4282, 0.35355338
    %v4443 = vmul.f32 %v4358, 0.35355338
    %v4444 = vmul.f32 %v4434, 0.35355338
    %v4445 = vld [vmem:[%s3] sm:$0xff]
    %vm4446 = vcmp.gt.f32.partialorder %v4445, 0.5
    %v4447 = vsel %vm4446, 1, 0
    %vm4448 = vcmp.eq.s32.totalorder %v4447, 1
    %v4449 = vsel %vm4448, %v4437, -1e+09
    %v4450 = vsel %vm4448, %v4438, -1e+09
    %v4451 = vsel %vm4448, %v4439, -1e+09
    %v4452 = vsel %vm4448, %v4440, -1e+09
    %v4453 = vsel %vm4448, %v4441, -1e+09
    %v4454 = vsel %vm4448, %v4442, -1e+09
    %v4455 = vsel %vm4448, %v4443, -1e+09
    %v4456 = vsel %vm4448, %v4444, -1e+09
    %v4457 = vsel %vm2014, %v4449, -inf
    %4458 = vmax.xlane.f32.xlu0 %v4457
    %v4459 = vpop.xlane.xlu0 %4458
    %v4460 = vsel %vm2014, %v4450, -inf
    %4461 = vmax.xlane.f32.xlu0 %v4460
    %v4462 = vpop.xlane.xlu0 %4461
    %v4463 = vsel %vm2014, %v4451, -inf
    %4464 = vmax.xlane.f32.xlu0 %v4463
    %v4465 = vpop.xlane.xlu0 %4464
    %v4466 = vsel %vm2014, %v4452, -inf
    %4467 = vmax.xlane.f32.xlu0 %v4466
    %v4468 = vpop.xlane.xlu0 %4467
    %v4469 = vsel %vm2014, %v4453, -inf
    %4470 = vmax.xlane.f32.xlu0 %v4469
    %v4471 = vpop.xlane.xlu0 %4470
    %v4472 = vsel %vm2014, %v4454, -inf
    %4473 = vmax.xlane.f32.xlu0 %v4472
    %v4474 = vpop.xlane.xlu0 %4473
    %v4475 = vsel %vm2014, %v4455, -inf
    %4476 = vmax.xlane.f32.xlu0 %v4475
    %v4477 = vpop.xlane.xlu0 %4476
    %v4478 = vsel %vm2014, %v4456, -inf
    %4479 = vmax.xlane.f32.xlu0 %v4478
    %v4480 = vpop.xlane.xlu0 %4479
    %v4481 = vsub.f32 %v4449, %v4459
    %v4482 = vsub.f32 %v4450, %v4462
    %v4483 = vsub.f32 %v4451, %v4465
    %v4484 = vsub.f32 %v4452, %v4468
    %v4485 = vsub.f32 %v4453, %v4471
    %v4486 = vsub.f32 %v4454, %v4474
    %v4487 = vsub.f32 %v4455, %v4477
    %v4488 = vsub.f32 %v4456, %v4480
    %v4489 = vmul.f32 %v4481, 1.442695
    %v4490 = vpow.pop %v4489
    %v4491 = vmul.f32 %v4482, 1.442695
    %v4492 = vpow.pop %v4491
    %v4493 = vmul.f32 %v4483, 1.442695
    %v4494 = vpow.pop %v4493
    %v4495 = vmul.f32 %v4484, 1.442695
    %v4496 = vpow.pop %v4495
    %v4497 = vmul.f32 %v4485, 1.442695
    %v4498 = vpow.pop %v4497
    %v4499 = vmul.f32 %v4486, 1.442695
    %v4500 = vpow.pop %v4499
    %v4501 = vmul.f32 %v4487, 1.442695
    %v4502 = vpow.pop %v4501
    %v4503 = vmul.f32 %v4488, 1.442695
    %v4504 = vpow.pop %v4503
    %v4505 = vsel %vm2014, %v4490, 0.0
    %4506 = vadd.xlane.f32.xlu0 %v4505
    %v4507 = vpop.xlane.xlu0 %4506
    %v4508 = vsel %vm2014, %v4492, 0.0
    %4509 = vadd.xlane.f32.xlu0 %v4508
    %v4510 = vpop.xlane.xlu0 %4509
    %v4511 = vsel %vm2014, %v4494, 0.0
    %4512 = vadd.xlane.f32.xlu0 %v4511
    %v4513 = vpop.xlane.xlu0 %4512
    %v4514 = vsel %vm2014, %v4496, 0.0
    %4515 = vadd.xlane.f32.xlu0 %v4514
    %v4516 = vpop.xlane.xlu0 %4515
    %v4517 = vsel %vm2014, %v4498, 0.0
    %4518 = vadd.xlane.f32.xlu0 %v4517
    %v4519 = vpop.xlane.xlu0 %4518
    %v4520 = vsel %vm2014, %v4500, 0.0
    %4521 = vadd.xlane.f32.xlu0 %v4520
    %v4522 = vpop.xlane.xlu0 %4521
    %v4523 = vsel %vm2014, %v4502, 0.0
    %4524 = vadd.xlane.f32.xlu0 %v4523
    %v4525 = vpop.xlane.xlu0 %4524
    %v4526 = vsel %vm2014, %v4504, 0.0
    %4527 = vadd.xlane.f32.xlu0 %v4526
    %v4528 = vpop.xlane.xlu0 %4527
    %v4529 = vrcp.pop %v4507
    %v4530 = vrcp.pop %v4510
    %v4531 = vrcp.pop %v4513
    %v4532 = vrcp.pop %v4516
    %v4533 = vrcp.pop %v4519
    %v4534 = vrcp.pop %v4522
    %v4535 = vrcp.pop %v4525
    %v4536 = vrcp.pop %v4528
    %v4537 = vmul.f32 %v4490, %v4529
    %v4538 = vmul.f32 %v4492, %v4530
    %v4539 = vmul.f32 %v4494, %v4531
    %v4540 = vmul.f32 %v4496, %v4532
    %v4541 = vmul.f32 %v4498, %v4533
    %v4542 = vmul.f32 %v4500, %v4534
    %v4543 = vmul.f32 %v4502, %v4535
    %v4544 = vmul.f32 %v4504, %v4536
    %4545 = vrot.lane.b32.xlu0 %v3807, 64
    %v4546 = vpop.permute.xlu0 %4545
    %v4549 = vsel %vm2014, %v4537, 0
    %4551 = vmatprep.subr.mxu0 0.0
    %4552 = vmatpush1.msra.mxu0 0.0
    %4553 = vmatprep.subr.mxu0 0.0
    %4554 = vmatpush1.msra.mxu0 0.0
    %4555 = vmatprep.subr.mxu0 0.0
    %4556 = vmatpush1.msra.mxu0 0.0
    %4557 = vmatprep.subr.mxu0 0.0
    %4558 = vmatpush1.msra.mxu0 0.0
    %4559 = vmatprep.subr.mxu0 0.0
    %4560 = vmatpush1.msra.mxu0 0.0
    %4561 = vmatprep.subr.mxu0 0.0
    %4562 = vmatpush1.msra.mxu0 0.0
    %4563 = vmatprep.subr.mxu0 0.0
    %4564 = vmatpush1.msra.mxu0 0.0
    %4565 = vmatprep.subr.mxu0 0.0
    %4566 = vmatpush1.msra.mxu0 0.0
    %4567 = vmatprep.subr.mxu0 0.0
    %4568 = vmatpush1.msra.mxu0 0.0
    %4569 = vmatprep.subr.mxu0 0.0
    %4570 = vmatpush1.msra.mxu0 0.0
    %4571 = vmatprep.subr.mxu0 0.0
    %4572 = vmatpush1.msra.mxu0 0.0
    %4573 = vmatprep.subr.mxu0 0.0
    %4574 = vmatpush1.msra.mxu0 0.0
    %4575 = vmatprep.subr.mxu0 0.0
    %4576 = vmatpush1.msra.mxu0 0.0
    %4577 = vmatprep.subr.mxu0 0.0
    %4578 = vmatpush1.msra.mxu0 0.0
    %4579 = vmatprep.subr.mxu0 0.0
    %4580 = vmatpush1.msra.mxu0 0.0
    %4581 = vmatprep.subr.mxu0 0.0
    %4582 = vmatpush1.msra.mxu0 %v4546
    %4583 = vmatprep.subr.mxu0 0.0
    %4584 = vmatpush2.msra.mxu0 0.0
    %4585 = vmatprep.subr.mxu0 0.0
    %4586 = vmatpush2.msra.mxu0 0.0
    %4587 = vmatprep.subr.mxu0 0.0
    %4588 = vmatpush2.msra.mxu0 0.0
    %4589 = vmatprep.subr.mxu0 0.0
    %4590 = vmatpush2.msra.mxu0 0.0
    %4591 = vmatprep.subr.mxu0 0.0
    %4592 = vmatpush2.msra.mxu0 0.0
    %4593 = vmatprep.subr.mxu0 0.0
    %4594 = vmatpush2.msra.mxu0 0.0
    %4595 = vmatprep.subr.mxu0 0.0
    %4596 = vmatpush2.msra.mxu0 0.0
    %4597 = vmatprep.subr.mxu0 0.0
    %4598 = vmatpush2.msra.mxu0 0.0
    %4599 = vmatprep.subr.mxu0 0.0
    %4600 = vmatpush2.msra.mxu0 0.0
    %4601 = vmatprep.subr.mxu0 0.0
    %4602 = vmatpush2.msra.mxu0 0.0
    %4603 = vmatprep.subr.mxu0 0.0
    %4604 = vmatpush2.msra.mxu0 0.0
    %4605 = vmatprep.subr.mxu0 0.0
    %4606 = vmatpush2.msra.mxu0 0.0
    %4607 = vmatprep.subr.mxu0 0.0
    %4608 = vmatpush2.msra.mxu0 0.0
    %4609 = vmatprep.subr.mxu0 0.0
    %4610 = vmatpush2.msra.mxu0 0.0
    %4611 = vmatprep.subr.mxu0 0.0
    %4612 = vmatpush2.msra.mxu0 0.0
    %4613 = vmatprep.subr.mxu0 0.0
    %4614 = vmatpush2.msra.mxu0 0.0
    %4615 = vmatprep.mubr.f32.mxu0 0.0
    %4616 = vmatmul.mubr.f32.gmra.mxu0 %v4549
    %v4617 = vpop.f32.mrf.mxu0
    %v4618 = vadd.f32 0.0, %v4617
    %v4619 = vpop.f32.mrf.mxu0
    %4620 = vdwg.mxu0
    %4621 = vrot.lane.b32.xlu0 %v3812, 64
    %v4622 = vpop.permute.xlu0 %4621
    %v4625 = vsel %vm2014, %v4538, 0
    %4627 = vmatprep.subr.mxu0 0.0
    %4628 = vmatpush1.msra.mxu0 0.0
    %4629 = vmatprep.subr.mxu0 0.0
    %4630 = vmatpush1.msra.mxu0 0.0
    %4631 = vmatprep.subr.mxu0 0.0
    %4632 = vmatpush1.msra.mxu0 0.0
    %4633 = vmatprep.subr.mxu0 0.0
    %4634 = vmatpush1.msra.mxu0 0.0
    %4635 = vmatprep.subr.mxu0 0.0
    %4636 = vmatpush1.msra.mxu0 0.0
    %4637 = vmatprep.subr.mxu0 0.0
    %4638 = vmatpush1.msra.mxu0 0.0
    %4639 = vmatprep.subr.mxu0 0.0
    %4640 = vmatpush1.msra.mxu0 0.0
    %4641 = vmatprep.subr.mxu0 0.0
    %4642 = vmatpush1.msra.mxu0 0.0
    %4643 = vmatprep.subr.mxu0 0.0
    %4644 = vmatpush1.msra.mxu0 0.0
    %4645 = vmatprep.subr.mxu0 0.0
    %4646 = vmatpush1.msra.mxu0 0.0
    %4647 = vmatprep.subr.mxu0 0.0
    %4648 = vmatpush1.msra.mxu0 0.0
    %4649 = vmatprep.subr.mxu0 0.0
    %4650 = vmatpush1.msra.mxu0 0.0
    %4651 = vmatprep.subr.mxu0 0.0
    %4652 = vmatpush1.msra.mxu0 0.0
    %4653 = vmatprep.subr.mxu0 0.0
    %4654 = vmatpush1.msra.mxu0 0.0
    %4655 = vmatprep.subr.mxu0 0.0
    %4656 = vmatpush1.msra.mxu0 0.0
    %4657 = vmatprep.subr.mxu0 0.0
    %4658 = vmatpush1.msra.mxu0 %v4622
    %4659 = vmatprep.subr.mxu0 0.0
    %4660 = vmatpush2.msra.mxu0 0.0
    %4661 = vmatprep.subr.mxu0 0.0
    %4662 = vmatpush2.msra.mxu0 0.0
    %4663 = vmatprep.subr.mxu0 0.0
    %4664 = vmatpush2.msra.mxu0 0.0
    %4665 = vmatprep.subr.mxu0 0.0
    %4666 = vmatpush2.msra.mxu0 0.0
    %4667 = vmatprep.subr.mxu0 0.0
    %4668 = vmatpush2.msra.mxu0 0.0
    %4669 = vmatprep.subr.mxu0 0.0
    %4670 = vmatpush2.msra.mxu0 0.0
    %4671 = vmatprep.subr.mxu0 0.0
    %4672 = vmatpush2.msra.mxu0 0.0
    %4673 = vmatprep.subr.mxu0 0.0
    %4674 = vmatpush2.msra.mxu0 0.0
    %4675 = vmatprep.subr.mxu0 0.0
    %4676 = vmatpush2.msra.mxu0 0.0
    %4677 = vmatprep.subr.mxu0 0.0
    %4678 = vmatpush2.msra.mxu0 0.0
    %4679 = vmatprep.subr.mxu0 0.0
    %4680 = vmatpush2.msra.mxu0 0.0
    %4681 = vmatprep.subr.mxu0 0.0
    %4682 = vmatpush2.msra.mxu0 0.0
    %4683 = vmatprep.subr.mxu0 0.0
    %4684 = vmatpush2.msra.mxu0 0.0
    %4685 = vmatprep.subr.mxu0 0.0
    %4686 = vmatpush2.msra.mxu0 0.0
    %4687 = vmatprep.subr.mxu0 0.0
    %4688 = vmatpush2.msra.mxu0 0.0
    %4689 = vmatprep.subr.mxu0 0.0
    %4690 = vmatpush2.msra.mxu0 0.0
    %4691 = vmatprep.mubr.f32.mxu0 0.0
    %4692 = vmatmul.mubr.f32.gmra.mxu0 %v4625
    %v4693 = vpop.f32.mrf.mxu0
    %v4694 = vadd.f32 0.0, %v4693
    %v4695 = vpop.f32.mrf.mxu0
    %4696 = vdwg.mxu0
    %4697 = vrot.lane.b32.xlu0 %v3818, 64
    %v4698 = vpop.permute.xlu0 %4697
    %v4701 = vsel %vm2014, %v4539, 0
    %4703 = vmatprep.subr.mxu0 0.0
    %4704 = vmatpush1.msra.mxu0 0.0
    %4705 = vmatprep.subr.mxu0 0.0
    %4706 = vmatpush1.msra.mxu0 0.0
    %4707 = vmatprep.subr.mxu0 0.0
    %4708 = vmatpush1.msra.mxu0 0.0
    %4709 = vmatprep.subr.mxu0 0.0
    %4710 = vmatpush1.msra.mxu0 0.0
    %4711 = vmatprep.subr.mxu0 0.0
    %4712 = vmatpush1.msra.mxu0 0.0
    %4713 = vmatprep.subr.mxu0 0.0
    %4714 = vmatpush1.msra.mxu0 0.0
    %4715 = vmatprep.subr.mxu0 0.0
    %4716 = vmatpush1.msra.mxu0 0.0
    %4717 = vmatprep.subr.mxu0 0.0
    %4718 = vmatpush1.msra.mxu0 0.0
    %4719 = vmatprep.subr.mxu0 0.0
    %4720 = vmatpush1.msra.mxu0 0.0
    %4721 = vmatprep.subr.mxu0 0.0
    %4722 = vmatpush1.msra.mxu0 0.0
    %4723 = vmatprep.subr.mxu0 0.0
    %4724 = vmatpush1.msra.mxu0 0.0
    %4725 = vmatprep.subr.mxu0 0.0
    %4726 = vmatpush1.msra.mxu0 0.0
    %4727 = vmatprep.subr.mxu0 0.0
    %4728 = vmatpush1.msra.mxu0 0.0
    %4729 = vmatprep.subr.mxu0 0.0
    %4730 = vmatpush1.msra.mxu0 0.0
    %4731 = vmatprep.subr.mxu0 0.0
    %4732 = vmatpush1.msra.mxu0 0.0
    %4733 = vmatprep.subr.mxu0 0.0
    %4734 = vmatpush1.msra.mxu0 %v4698
    %4735 = vmatprep.subr.mxu0 0.0
    %4736 = vmatpush2.msra.mxu0 0.0
    %4737 = vmatprep.subr.mxu0 0.0
    %4738 = vmatpush2.msra.mxu0 0.0
    %4739 = vmatprep.subr.mxu0 0.0
    %4740 = vmatpush2.msra.mxu0 0.0
    %4741 = vmatprep.subr.mxu0 0.0
    %4742 = vmatpush2.msra.mxu0 0.0
    %4743 = vmatprep.subr.mxu0 0.0
    %4744 = vmatpush2.msra.mxu0 0.0
    %4745 = vmatprep.subr.mxu0 0.0
    %4746 = vmatpush2.msra.mxu0 0.0
    %4747 = vmatprep.subr.mxu0 0.0
    %4748 = vmatpush2.msra.mxu0 0.0
    %4749 = vmatprep.subr.mxu0 0.0
    %4750 = vmatpush2.msra.mxu0 0.0
    %4751 = vmatprep.subr.mxu0 0.0
    %4752 = vmatpush2.msra.mxu0 0.0
    %4753 = vmatprep.subr.mxu0 0.0
    %4754 = vmatpush2.msra.mxu0 0.0
    %4755 = vmatprep.subr.mxu0 0.0
    %4756 = vmatpush2.msra.mxu0 0.0
    %4757 = vmatprep.subr.mxu0 0.0
    %4758 = vmatpush2.msra.mxu0 0.0
    %4759 = vmatprep.subr.mxu0 0.0
    %4760 = vmatpush2.msra.mxu0 0.0
    %4761 = vmatprep.subr.mxu0 0.0
    %4762 = vmatpush2.msra.mxu0 0.0
    %4763 = vmatprep.subr.mxu0 0.0
    %4764 = vmatpush2.msra.mxu0 0.0
    %4765 = vmatprep.subr.mxu0 0.0
    %4766 = vmatpush2.msra.mxu0 0.0
    %4767 = vmatprep.mubr.f32.mxu0 0.0
    %4768 = vmatmul.mubr.f32.gmra.mxu0 %v4701
    %v4769 = vpop.f32.mrf.mxu0
    %v4770 = vadd.f32 0.0, %v4769
    %v4771 = vpop.f32.mrf.mxu0
    %4772 = vdwg.mxu0
    %4773 = vrot.lane.b32.xlu0 %v3820, 64
    %v4774 = vpop.permute.xlu0 %4773
    %v4777 = vsel %vm2014, %v4540, 0
    %4779 = vmatprep.subr.mxu0 0.0
    %4780 = vmatpush1.msra.mxu0 0.0
    %4781 = vmatprep.subr.mxu0 0.0
    %4782 = vmatpush1.msra.mxu0 0.0
    %4783 = vmatprep.subr.mxu0 0.0
    %4784 = vmatpush1.msra.mxu0 0.0
    %4785 = vmatprep.subr.mxu0 0.0
    %4786 = vmatpush1.msra.mxu0 0.0
    %4787 = vmatprep.subr.mxu0 0.0
    %4788 = vmatpush1.msra.mxu0 0.0
    %4789 = vmatprep.subr.mxu0 0.0
    %4790 = vmatpush1.msra.mxu0 0.0
    %4791 = vmatprep.subr.mxu0 0.0
    %4792 = vmatpush1.msra.mxu0 0.0
    %4793 = vmatprep.subr.mxu0 0.0
    %4794 = vmatpush1.msra.mxu0 0.0
    %4795 = vmatprep.subr.mxu0 0.0
    %4796 = vmatpush1.msra.mxu0 0.0
    %4797 = vmatprep.subr.mxu0 0.0
    %4798 = vmatpush1.msra.mxu0 0.0
    %4799 = vmatprep.subr.mxu0 0.0
    %4800 = vmatpush1.msra.mxu0 0.0
    %4801 = vmatprep.subr.mxu0 0.0
    %4802 = vmatpush1.msra.mxu0 0.0
    %4803 = vmatprep.subr.mxu0 0.0
    %4804 = vmatpush1.msra.mxu0 0.0
    %4805 = vmatprep.subr.mxu0 0.0
    %4806 = vmatpush1.msra.mxu0 0.0
    %4807 = vmatprep.subr.mxu0 0.0
    %4808 = vmatpush1.msra.mxu0 0.0
    %4809 = vmatprep.subr.mxu0 0.0
    %4810 = vmatpush1.msra.mxu0 %v4774
    %4811 = vmatprep.subr.mxu0 0.0
    %4812 = vmatpush2.msra.mxu0 0.0
    %4813 = vmatprep.subr.mxu0 0.0
    %4814 = vmatpush2.msra.mxu0 0.0
    %4815 = vmatprep.subr.mxu0 0.0
    %4816 = vmatpush2.msra.mxu0 0.0
    %4817 = vmatprep.subr.mxu0 0.0
    %4818 = vmatpush2.msra.mxu0 0.0
    %4819 = vmatprep.subr.mxu0 0.0
    %4820 = vmatpush2.msra.mxu0 0.0
    %4821 = vmatprep.subr.mxu0 0.0
    %4822 = vmatpush2.msra.mxu0 0.0
    %4823 = vmatprep.subr.mxu0 0.0
    %4824 = vmatpush2.msra.mxu0 0.0
    %4825 = vmatprep.subr.mxu0 0.0
    %4826 = vmatpush2.msra.mxu0 0.0
    %4827 = vmatprep.subr.mxu0 0.0
    %4828 = vmatpush2.msra.mxu0 0.0
    %4829 = vmatprep.subr.mxu0 0.0
    %4830 = vmatpush2.msra.mxu0 0.0
    %4831 = vmatprep.subr.mxu0 0.0
    %4832 = vmatpush2.msra.mxu0 0.0
    %4833 = vmatprep.subr.mxu0 0.0
    %4834 = vmatpush2.msra.mxu0 0.0
    %4835 = vmatprep.subr.mxu0 0.0
    %4836 = vmatpush2.msra.mxu0 0.0
    %4837 = vmatprep.subr.mxu0 0.0
    %4838 = vmatpush2.msra.mxu0 0.0
    %4839 = vmatprep.subr.mxu0 0.0
    %4840 = vmatpush2.msra.mxu0 0.0
    %4841 = vmatprep.subr.mxu0 0.0
    %4842 = vmatpush2.msra.mxu0 0.0
    %4843 = vmatprep.mubr.f32.mxu0 0.0
    %4844 = vmatmul.mubr.f32.gmra.mxu0 %v4777
    %v4845 = vpop.f32.mrf.mxu0
    %v4846 = vadd.f32 0.0, %v4845
    %v4847 = vpop.f32.mrf.mxu0
    %4848 = vdwg.mxu0
    %4849 = vrot.lane.b32.xlu0 %v3822, 64
    %v4850 = vpop.permute.xlu0 %4849
    %v4853 = vsel %vm2014, %v4541, 0
    %4855 = vmatprep.subr.mxu0 0.0
    %4856 = vmatpush1.msra.mxu0 0.0
    %4857 = vmatprep.subr.mxu0 0.0
    %4858 = vmatpush1.msra.mxu0 0.0
    %4859 = vmatprep.subr.mxu0 0.0
    %4860 = vmatpush1.msra.mxu0 0.0
    %4861 = vmatprep.subr.mxu0 0.0
    %4862 = vmatpush1.msra.mxu0 0.0
    %4863 = vmatprep.subr.mxu0 0.0
    %4864 = vmatpush1.msra.mxu0 0.0
    %4865 = vmatprep.subr.mxu0 0.0
    %4866 = vmatpush1.msra.mxu0 0.0
    %4867 = vmatprep.subr.mxu0 0.0
    %4868 = vmatpush1.msra.mxu0 0.0
    %4869 = vmatprep.subr.mxu0 0.0
    %4870 = vmatpush1.msra.mxu0 0.0
    %4871 = vmatprep.subr.mxu0 0.0
    %4872 = vmatpush1.msra.mxu0 0.0
    %4873 = vmatprep.subr.mxu0 0.0
    %4874 = vmatpush1.msra.mxu0 0.0
    %4875 = vmatprep.subr.mxu0 0.0
    %4876 = vmatpush1.msra.mxu0 0.0
    %4877 = vmatprep.subr.mxu0 0.0
    %4878 = vmatpush1.msra.mxu0 0.0
    %4879 = vmatprep.subr.mxu0 0.0
    %4880 = vmatpush1.msra.mxu0 0.0
    %4881 = vmatprep.subr.mxu0 0.0
    %4882 = vmatpush1.msra.mxu0 0.0
    %4883 = vmatprep.subr.mxu0 0.0
    %4884 = vmatpush1.msra.mxu0 0.0
    %4885 = vmatprep.subr.mxu0 0.0
    %4886 = vmatpush1.msra.mxu0 %v4850
    %4887 = vmatprep.subr.mxu0 0.0
    %4888 = vmatpush2.msra.mxu0 0.0
    %4889 = vmatprep.subr.mxu0 0.0
    %4890 = vmatpush2.msra.mxu0 0.0
    %4891 = vmatprep.subr.mxu0 0.0
    %4892 = vmatpush2.msra.mxu0 0.0
    %4893 = vmatprep.subr.mxu0 0.0
    %4894 = vmatpush2.msra.mxu0 0.0
    %4895 = vmatprep.subr.mxu0 0.0
    %4896 = vmatpush2.msra.mxu0 0.0
    %4897 = vmatprep.subr.mxu0 0.0
    %4898 = vmatpush2.msra.mxu0 0.0
    %4899 = vmatprep.subr.mxu0 0.0
    %4900 = vmatpush2.msra.mxu0 0.0
    %4901 = vmatprep.subr.mxu0 0.0
    %4902 = vmatpush2.msra.mxu0 0.0
    %4903 = vmatprep.subr.mxu0 0.0
    %4904 = vmatpush2.msra.mxu0 0.0
    %4905 = vmatprep.subr.mxu0 0.0
    %4906 = vmatpush2.msra.mxu0 0.0
    %4907 = vmatprep.subr.mxu0 0.0
    %4908 = vmatpush2.msra.mxu0 0.0
    %4909 = vmatprep.subr.mxu0 0.0
    %4910 = vmatpush2.msra.mxu0 0.0
    %4911 = vmatprep.subr.mxu0 0.0
    %4912 = vmatpush2.msra.mxu0 0.0
    %4913 = vmatprep.subr.mxu0 0.0
    %4914 = vmatpush2.msra.mxu0 0.0
    %4915 = vmatprep.subr.mxu0 0.0
    %4916 = vmatpush2.msra.mxu0 0.0
    %4917 = vmatprep.subr.mxu0 0.0
    %4918 = vmatpush2.msra.mxu0 0.0
    %4919 = vmatprep.mubr.f32.mxu0 0.0
    %4920 = vmatmul.mubr.f32.gmra.mxu0 %v4853
    %v4921 = vpop.f32.mrf.mxu0
    %v4922 = vadd.f32 0.0, %v4921
    %v4923 = vpop.f32.mrf.mxu0
    %4924 = vdwg.mxu0
    %4925 = vrot.lane.b32.xlu0 %v3824, 64
    %v4926 = vpop.permute.xlu0 %4925
    %v4929 = vsel %vm2014, %v4542, 0
    %4931 = vmatprep.subr.mxu0 0.0
    %4932 = vmatpush1.msra.mxu0 0.0
    %4933 = vmatprep.subr.mxu0 0.0
    %4934 = vmatpush1.msra.mxu0 0.0
    %4935 = vmatprep.subr.mxu0 0.0
    %4936 = vmatpush1.msra.mxu0 0.0
    %4937 = vmatprep.subr.mxu0 0.0
    %4938 = vmatpush1.msra.mxu0 0.0
    %4939 = vmatprep.subr.mxu0 0.0
    %4940 = vmatpush1.msra.mxu0 0.0
    %4941 = vmatprep.subr.mxu0 0.0
    %4942 = vmatpush1.msra.mxu0 0.0
    %4943 = vmatprep.subr.mxu0 0.0
    %4944 = vmatpush1.msra.mxu0 0.0
    %4945 = vmatprep.subr.mxu0 0.0
    %4946 = vmatpush1.msra.mxu0 0.0
    %4947 = vmatprep.subr.mxu0 0.0
    %4948 = vmatpush1.msra.mxu0 0.0
    %4949 = vmatprep.subr.mxu0 0.0
    %4950 = vmatpush1.msra.mxu0 0.0
    %4951 = vmatprep.subr.mxu0 0.0
    %4952 = vmatpush1.msra.mxu0 0.0
    %4953 = vmatprep.subr.mxu0 0.0
    %4954 = vmatpush1.msra.mxu0 0.0
    %4955 = vmatprep.subr.mxu0 0.0
    %4956 = vmatpush1.msra.mxu0 0.0
    %4957 = vmatprep.subr.mxu0 0.0
    %4958 = vmatpush1.msra.mxu0 0.0
    %4959 = vmatprep.subr.mxu0 0.0
    %4960 = vmatpush1.msra.mxu0 0.0
    %4961 = vmatprep.subr.mxu0 0.0
    %4962 = vmatpush1.msra.mxu0 %v4926
    %4963 = vmatprep.subr.mxu0 0.0
    %4964 = vmatpush2.msra.mxu0 0.0
    %4965 = vmatprep.subr.mxu0 0.0
    %4966 = vmatpush2.msra.mxu0 0.0
    %4967 = vmatprep.subr.mxu0 0.0
    %4968 = vmatpush2.msra.mxu0 0.0
    %4969 = vmatprep.subr.mxu0 0.0
    %4970 = vmatpush2.msra.mxu0 0.0
    %4971 = vmatprep.subr.mxu0 0.0
    %4972 = vmatpush2.msra.mxu0 0.0
    %4973 = vmatprep.subr.mxu0 0.0
    %4974 = vmatpush2.msra.mxu0 0.0
    %4975 = vmatprep.subr.mxu0 0.0
    %4976 = vmatpush2.msra.mxu0 0.0
    %4977 = vmatprep.subr.mxu0 0.0
    %4978 = vmatpush2.msra.mxu0 0.0
    %4979 = vmatprep.subr.mxu0 0.0
    %4980 = vmatpush2.msra.mxu0 0.0
    %4981 = vmatprep.subr.mxu0 0.0
    %4982 = vmatpush2.msra.mxu0 0.0
    %4983 = vmatprep.subr.mxu0 0.0
    %4984 = vmatpush2.msra.mxu0 0.0
    %4985 = vmatprep.subr.mxu0 0.0
    %4986 = vmatpush2.msra.mxu0 0.0
    %4987 = vmatprep.subr.mxu0 0.0
    %4988 = vmatpush2.msra.mxu0 0.0
    %4989 = vmatprep.subr.mxu0 0.0
    %4990 = vmatpush2.msra.mxu0 0.0
    %4991 = vmatprep.subr.mxu0 0.0
    %4992 = vmatpush2.msra.mxu0 0.0
    %4993 = vmatprep.subr.mxu0 0.0
    %4994 = vmatpush2.msra.mxu0 0.0
    %4995 = vmatprep.mubr.f32.mxu0 0.0
    %4996 = vmatmul.mubr.f32.gmra.mxu0 %v4929
    %v4997 = vpop.f32.mrf.mxu0
    %v4998 = vadd.f32 0.0, %v4997
    %v4999 = vpop.f32.mrf.mxu0
    %5000 = vdwg.mxu0
    %5001 = vrot.lane.b32.xlu0 %v3826, 64
    %v5002 = vpop.permute.xlu0 %5001
    %v5005 = vsel %vm2014, %v4543, 0
    %5007 = vmatprep.subr.mxu0 0.0
    %5008 = vmatpush1.msra.mxu0 0.0
    %5009 = vmatprep.subr.mxu0 0.0
    %5010 = vmatpush1.msra.mxu0 0.0
    %5011 = vmatprep.subr.mxu0 0.0
    %5012 = vmatpush1.msra.mxu0 0.0
    %5013 = vmatprep.subr.mxu0 0.0
    %5014 = vmatpush1.msra.mxu0 0.0
    %5015 = vmatprep.subr.mxu0 0.0
    %5016 = vmatpush1.msra.mxu0 0.0
    %5017 = vmatprep.subr.mxu0 0.0
    %5018 = vmatpush1.msra.mxu0 0.0
    %5019 = vmatprep.subr.mxu0 0.0
    %5020 = vmatpush1.msra.mxu0 0.0
    %5021 = vmatprep.subr.mxu0 0.0
    %5022 = vmatpush1.msra.mxu0 0.0
    %5023 = vmatprep.subr.mxu0 0.0
    %5024 = vmatpush1.msra.mxu0 0.0
    %5025 = vmatprep.subr.mxu0 0.0
    %5026 = vmatpush1.msra.mxu0 0.0
    %5027 = vmatprep.subr.mxu0 0.0
    %5028 = vmatpush1.msra.mxu0 0.0
    %5029 = vmatprep.subr.mxu0 0.0
    %5030 = vmatpush1.msra.mxu0 0.0
    %5031 = vmatprep.subr.mxu0 0.0
    %5032 = vmatpush1.msra.mxu0 0.0
    %5033 = vmatprep.subr.mxu0 0.0
    %5034 = vmatpush1.msra.mxu0 0.0
    %5035 = vmatprep.subr.mxu0 0.0
    %5036 = vmatpush1.msra.mxu0 0.0
    %5037 = vmatprep.subr.mxu0 0.0
    %5038 = vmatpush1.msra.mxu0 %v5002
    %5039 = vmatprep.subr.mxu0 0.0
    %5040 = vmatpush2.msra.mxu0 0.0
    %5041 = vmatprep.subr.mxu0 0.0
    %5042 = vmatpush2.msra.mxu0 0.0
    %5043 = vmatprep.subr.mxu0 0.0
    %5044 = vmatpush2.msra.mxu0 0.0
    %5045 = vmatprep.subr.mxu0 0.0
    %5046 = vmatpush2.msra.mxu0 0.0
    %5047 = vmatprep.subr.mxu0 0.0
    %5048 = vmatpush2.msra.mxu0 0.0
    %5049 = vmatprep.subr.mxu0 0.0
    %5050 = vmatpush2.msra.mxu0 0.0
    %5051 = vmatprep.subr.mxu0 0.0
    %5052 = vmatpush2.msra.mxu0 0.0
    %5053 = vmatprep.subr.mxu0 0.0
    %5054 = vmatpush2.msra.mxu0 0.0
    %5055 = vmatprep.subr.mxu0 0.0
    %5056 = vmatpush2.msra.mxu0 0.0
    %5057 = vmatprep.subr.mxu0 0.0
    %5058 = vmatpush2.msra.mxu0 0.0
    %5059 = vmatprep.subr.mxu0 0.0
    %5060 = vmatpush2.msra.mxu0 0.0
    %5061 = vmatprep.subr.mxu0 0.0
    %5062 = vmatpush2.msra.mxu0 0.0
    %5063 = vmatprep.subr.mxu0 0.0
    %5064 = vmatpush2.msra.mxu0 0.0
    %5065 = vmatprep.subr.mxu0 0.0
    %5066 = vmatpush2.msra.mxu0 0.0
    %5067 = vmatprep.subr.mxu0 0.0
    %5068 = vmatpush2.msra.mxu0 0.0
    %5069 = vmatprep.subr.mxu0 0.0
    %5070 = vmatpush2.msra.mxu0 0.0
    %5071 = vmatprep.mubr.f32.mxu0 0.0
    %5072 = vmatmul.mubr.f32.gmra.mxu0 %v5005
    %v5073 = vpop.f32.mrf.mxu0
    %v5074 = vadd.f32 0.0, %v5073
    %v5075 = vpop.f32.mrf.mxu0
    %5076 = vdwg.mxu0
    %5077 = vrot.lane.b32.xlu0 %v3828, 64
    %v5078 = vpop.permute.xlu0 %5077
    %v5081 = vsel %vm2014, %v4544, 0
    %5083 = vmatprep.subr.mxu0 0.0
    %5084 = vmatpush1.msra.mxu0 0.0
    %5085 = vmatprep.subr.mxu0 0.0
    %5086 = vmatpush1.msra.mxu0 0.0
    %5087 = vmatprep.subr.mxu0 0.0
    %5088 = vmatpush1.msra.mxu0 0.0
    %5089 = vmatprep.subr.mxu0 0.0
    %5090 = vmatpush1.msra.mxu0 0.0
    %5091 = vmatprep.subr.mxu0 0.0
    %5092 = vmatpush1.msra.mxu0 0.0
    %5093 = vmatprep.subr.mxu0 0.0
    %5094 = vmatpush1.msra.mxu0 0.0
    %5095 = vmatprep.subr.mxu0 0.0
    %5096 = vmatpush1.msra.mxu0 0.0
    %5097 = vmatprep.subr.mxu0 0.0
    %5098 = vmatpush1.msra.mxu0 0.0
    %5099 = vmatprep.subr.mxu0 0.0
    %5100 = vmatpush1.msra.mxu0 0.0
    %5101 = vmatprep.subr.mxu0 0.0
    %5102 = vmatpush1.msra.mxu0 0.0
    %5103 = vmatprep.subr.mxu0 0.0
    %5104 = vmatpush1.msra.mxu0 0.0
    %5105 = vmatprep.subr.mxu0 0.0
    %5106 = vmatpush1.msra.mxu0 0.0
    %5107 = vmatprep.subr.mxu0 0.0
    %5108 = vmatpush1.msra.mxu0 0.0
    %5109 = vmatprep.subr.mxu0 0.0
    %5110 = vmatpush1.msra.mxu0 0.0
    %5111 = vmatprep.subr.mxu0 0.0
    %5112 = vmatpush1.msra.mxu0 0.0
    %5113 = vmatprep.subr.mxu0 0.0
    %5114 = vmatpush1.msra.mxu0 %v5078
    %5115 = vmatprep.subr.mxu0 0.0
    %5116 = vmatpush2.msra.mxu0 0.0
    %5117 = vmatprep.subr.mxu0 0.0
    %5118 = vmatpush2.msra.mxu0 0.0
    %5119 = vmatprep.subr.mxu0 0.0
    %5120 = vmatpush2.msra.mxu0 0.0
    %5121 = vmatprep.subr.mxu0 0.0
    %5122 = vmatpush2.msra.mxu0 0.0
    %5123 = vmatprep.subr.mxu0 0.0
    %5124 = vmatpush2.msra.mxu0 0.0
    %5125 = vmatprep.subr.mxu0 0.0
    %5126 = vmatpush2.msra.mxu0 0.0
    %5127 = vmatprep.subr.mxu0 0.0
    %5128 = vmatpush2.msra.mxu0 0.0
    %5129 = vmatprep.subr.mxu0 0.0
    %5130 = vmatpush2.msra.mxu0 0.0
    %5131 = vmatprep.subr.mxu0 0.0
    %5132 = vmatpush2.msra.mxu0 0.0
    %5133 = vmatprep.subr.mxu0 0.0
    %5134 = vmatpush2.msra.mxu0 0.0
    %5135 = vmatprep.subr.mxu0 0.0
    %5136 = vmatpush2.msra.mxu0 0.0
    %5137 = vmatprep.subr.mxu0 0.0
    %5138 = vmatpush2.msra.mxu0 0.0
    %5139 = vmatprep.subr.mxu0 0.0
    %5140 = vmatpush2.msra.mxu0 0.0
    %5141 = vmatprep.subr.mxu0 0.0
    %5142 = vmatpush2.msra.mxu0 0.0
    %5143 = vmatprep.subr.mxu0 0.0
    %5144 = vmatpush2.msra.mxu0 0.0
    %5145 = vmatprep.subr.mxu0 0.0
    %5146 = vmatpush2.msra.mxu0 0.0
    %5147 = vmatprep.mubr.f32.mxu0 0.0
    %5148 = vmatmul.mubr.f32.gmra.mxu0 %v5081
    %v5149 = vpop.f32.mrf.mxu0
    %v5150 = vadd.f32 0.0, %v5149
    %v5151 = vpop.f32.mrf.mxu0
    %5152 = vdwg.mxu0
    %5155 = vrot.lane.b32.xlu0 %v4770, 8
    %v5156 = vpop.permute.xlu0 %5155
    %5157 = vrot.lane.b32.xlu0 %v4846, 8
    %v5158 = vpop.permute.xlu0 %5157
    %5163 = vrot.lane.b32.xlu0 %v4922, 16
    %v5164 = vpop.permute.xlu0 %5163
    %5165 = vrot.lane.b32.xlu0 %v4998, 16
    %v5166 = vpop.permute.xlu0 %5165
    %5171 = vrot.lane.b32.xlu0 %v5074, 24
    %v5172 = vpop.permute.xlu0 %5171
    %5173 = vrot.lane.b32.xlu0 %v5150, 24
    %v5174 = vpop.permute.xlu0 %5173
    %v5177 = vsel %vm2014, %v4618, %v5156
    %v5178 = vsel %vm2014, %v4694, %v5158
    %vm5179 = vcmask 130048
    %v5180 = vsel %vm5179, %v5177, %v5164
    %v5181 = vsel %vm5179, %v5178, %v5166
    %vm5182 = vcmask 195584
    %v5183 = vsel %vm5182, %v5180, %v5172
    %v5184 = vsel %vm5182, %v5181, %v5174
    %v5185 = vld [vmem:[%s12] sm:$0xff]
    %v5186 = vld [vmem:[%s12 + $0x8] sm:$0xff]
    %v5187 = vld [vmem:[%s12 + $0x10] sm:$0xff]
    %v5188 = vld [vmem:[%s12 + $0x18] sm:$0xff]
    %v5189 = vld [vmem:[%s13] sm:$0x1]
    %v5191 = vlaneseq
    %v5192 = vshrl.u32 %v5191, 7
    %v5193 = vsub.s32 0, %v5192
    %v5194 = vrot.slane %v5189, %v5193
    %v5197 = vsel %vm607, %v5183, 0
    %v5200 = vsel %vm607, %v5184, 0
    %5202 = vmatprep.subr.mxu0 0.0
    %5203 = vmatpush1.msra.mxu0 0.0
    %5204 = vmatprep.subr.mxu0 0.0
    %5205 = vmatpush1.msra.mxu0 0.0
    %5206 = vmatprep.subr.mxu0 0.0
    %5207 = vmatpush1.msra.mxu0 0.0
    %5208 = vmatprep.subr.mxu0 0.0
    %5209 = vmatpush1.msra.mxu0 0.0
    %5210 = vmatprep.subr.mxu0 0.0
    %5211 = vmatpush1.msra.mxu0 0.0
    %5212 = vmatprep.subr.mxu0 0.0
    %5213 = vmatpush1.msra.mxu0 0.0
    %5214 = vmatprep.subr.mxu0 0.0
    %5215 = vmatpush1.msra.mxu0 0.0
    %5216 = vmatprep.subr.mxu0 0.0
    %5217 = vmatpush1.msra.mxu0 0.0
    %5218 = vmatprep.subr.mxu0 0.0
    %5219 = vmatpush1.msra.mxu0 0.0
    %5220 = vmatprep.subr.mxu0 0.0
    %5221 = vmatpush1.msra.mxu0 0.0
    %5222 = vmatprep.subr.mxu0 0.0
    %5223 = vmatpush1.msra.mxu0 0.0
    %5224 = vmatprep.subr.mxu0 0.0
    %5225 = vmatpush1.msra.mxu0 0.0
    %5226 = vmatprep.subr.mxu0 0.0
    %5227 = vmatpush1.msra.mxu0 %v5188
    %5228 = vmatprep.subr.mxu0 0.0
    %5229 = vmatpush1.msra.mxu0 %v5187
    %5230 = vmatprep.subr.mxu0 0.0
    %5231 = vmatpush1.msra.mxu0 %v5186
    %5232 = vmatprep.subr.mxu0 0.0
    %5233 = vmatpush1.msra.mxu0 %v5185
    %5234 = vmatprep.subr.mxu0 0.0
    %5235 = vmatpush2.msra.mxu0 0.0
    %5236 = vmatprep.subr.mxu0 0.0
    %5237 = vmatpush2.msra.mxu0 0.0
    %5238 = vmatprep.subr.mxu0 0.0
    %5239 = vmatpush2.msra.mxu0 0.0
    %5240 = vmatprep.subr.mxu0 0.0
    %5241 = vmatpush2.msra.mxu0 0.0
    %5242 = vmatprep.subr.mxu0 0.0
    %5243 = vmatpush2.msra.mxu0 0.0
    %5244 = vmatprep.subr.mxu0 0.0
    %5245 = vmatpush2.msra.mxu0 0.0
    %5246 = vmatprep.subr.mxu0 0.0
    %5247 = vmatpush2.msra.mxu0 0.0
    %5248 = vmatprep.subr.mxu0 0.0
    %5249 = vmatpush2.msra.mxu0 0.0
    %5250 = vmatprep.subr.mxu0 0.0
    %5251 = vmatpush2.msra.mxu0 0.0
    %5252 = vmatprep.subr.mxu0 0.0
    %5253 = vmatpush2.msra.mxu0 0.0
    %5254 = vmatprep.subr.mxu0 0.0
    %5255 = vmatpush2.msra.mxu0 0.0
    %5256 = vmatprep.subr.mxu0 0.0
    %5257 = vmatpush2.msra.mxu0 0.0
    %5258 = vmatprep.subr.mxu0 0.0
    %5259 = vmatpush2.msra.mxu0 0.0
    %5260 = vmatprep.subr.mxu0 0.0
    %5261 = vmatpush2.msra.mxu0 0.0
    %5262 = vmatprep.subr.mxu0 0.0
    %5263 = vmatpush2.msra.mxu0 0.0
    %5264 = vmatprep.subr.mxu0 0.0
    %5265 = vmatpush2.msra.mxu0 0.0
    %5266 = vmatprep.mubr.f32.mxu0 0.0
    %5267 = vmatmul.mubr.f32.gmra.mxu0 %v5197
    %v5268 = vpop.f32.mrf.mxu0
    %v5269 = vadd.f32 %v5194, %v5268
    %v5270 = vpop.f32.mrf.mxu0
    %5271 = vmatprep.mubr.f32.mxu0 0.0
    %5272 = vmatmul.mubr.f32.gmra.mxu0 %v5200
    %v5273 = vpop.f32.mrf.mxu0
    %v5274 = vadd.f32 %v5194, %v5273
    %v5275 = vpop.f32.mrf.mxu0
    %5276 = vdwg.mxu0
    %v5279 = vrot.slane %v5269, 1
    %v5280 = vrot.slane %v5269, 2
    %v5281 = vrot.slane %v5269, 3
    %v5282 = vrot.slane %v5269, 4
    %v5283 = vrot.slane %v5269, 5
    %v5284 = vrot.slane %v5269, 6
    %v5285 = vrot.slane %v5269, 7
    %v5286 = vrot.slane %v5274, 1
    %v5287 = vrot.slane %v5274, 2
    %v5288 = vrot.slane %v5274, 3
    %v5289 = vrot.slane %v5274, 4
    %v5290 = vrot.slane %v5274, 5
    %v5291 = vrot.slane %v5274, 6
    %v5292 = vrot.slane %v5274, 7
    %v5309 = vadd.f32 %v2478, %v5269
    %v5310 = vadd.f32 %v2558, %v5279
    %v5311 = vadd.f32 %v2638, %v5280
    %v5312 = vadd.f32 %v2718, %v5281
    %v5313 = vadd.f32 %v2798, %v5282
    %v5314 = vadd.f32 %v2878, %v5283
    %v5315 = vadd.f32 %v2958, %v5284
    %v5316 = vadd.f32 %v3038, %v5285
    %v5317 = vadd.f32 %v3118, %v5274
    %v5318 = vadd.f32 %v3198, %v5286
    %v5319 = vadd.f32 %v3278, %v5287
    %v5320 = vadd.f32 %v3358, %v5288
    %v5321 = vadd.f32 %v3438, %v5289
    %v5322 = vadd.f32 %v3518, %v5290
    %v5323 = vadd.f32 %v3598, %v5291
    %v5324 = vadd.f32 %v3678, %v5292
    %v5341 = vrot.slane %v5310, 7
    %v5342 = vsel %vm1991, %v5341, %v5309
    %v5343 = vrot.slane %v5311, 6
    %v5344 = vsel %vm1993, %v5343, %v5342
    %v5345 = vrot.slane %v5312, 5
    %v5346 = vsel %vm1995, %v5345, %v5344
    %v5347 = vrot.slane %v5313, 4
    %v5348 = vsel %vm1997, %v5347, %v5346
    %v5349 = vrot.slane %v5314, 3
    %v5350 = vsel %vm1999, %v5349, %v5348
    %v5351 = vrot.slane %v5315, 2
    %v5352 = vsel %vm2001, %v5351, %v5350
    %v5353 = vrot.slane %v5316, 1
    %v5354 = vsel %vm2003, %v5353, %v5352
    %v5355 = vrot.slane %v5318, 7
    %v5356 = vsel %vm1991, %v5355, %v5317
    %v5357 = vrot.slane %v5319, 6
    %v5358 = vsel %vm1993, %v5357, %v5356
    %v5359 = vrot.slane %v5320, 5
    %v5360 = vsel %vm1995, %v5359, %v5358
    %v5361 = vrot.slane %v5321, 4
    %v5362 = vsel %vm1997, %v5361, %v5360
    %v5363 = vrot.slane %v5322, 3
    %v5364 = vsel %vm1999, %v5363, %v5362
    %v5365 = vrot.slane %v5323, 2
    %v5366 = vsel %vm2001, %v5365, %v5364
    %v5367 = vrot.slane %v5324, 1
    %v5368 = vsel %vm2003, %v5367, %v5366
    %v5371 = vsel %vm607, %v5354, 0.0
    %5372 = vadd.xlane.f32.xlu0 %v5371
    %v5373 = vpop.xlane.xlu0 %5372
    %v5374 = vsel %vm607, %v5368, 0.0
    %5375 = vadd.xlane.f32.xlu0 %v5374
    %v5376 = vpop.xlane.xlu0 %5375
    %v5377 = vrcp.pop 32.0
    %v5378 = vmul.f32 %v5373, %v5377
    %v5379 = vmul.f32 %v5376, %v5377
    %v5382 = vrot.slane %v5378, 1
    %v5383 = vrot.slane %v5378, 2
    %v5384 = vrot.slane %v5378, 3
    %v5385 = vrot.slane %v5378, 4
    %v5386 = vrot.slane %v5378, 5
    %v5387 = vrot.slane %v5378, 6
    %v5388 = vrot.slane %v5378, 7
    %v5389 = vrot.slane %v5379, 1
    %v5390 = vrot.slane %v5379, 2
    %v5391 = vrot.slane %v5379, 3
    %v5392 = vrot.slane %v5379, 4
    %v5393 = vrot.slane %v5379, 5
    %v5394 = vrot.slane %v5379, 6
    %v5395 = vrot.slane %v5379, 7
    %v5412 = vsub.f32 %v5309, %v5378
    %v5413 = vsub.f32 %v5310, %v5382
    %v5414 = vsub.f32 %v5311, %v5383
    %v5415 = vsub.f32 %v5312, %v5384
    %v5416 = vsub.f32 %v5313, %v5385
    %v5417 = vsub.f32 %v5314, %v5386
    %v5418 = vsub.f32 %v5315, %v5387
    %v5419 = vsub.f32 %v5316, %v5388
    %v5420 = vsub.f32 %v5317, %v5379
    %v5421 = vsub.f32 %v5318, %v5389
    %v5422 = vsub.f32 %v5319, %v5390
    %v5423 = vsub.f32 %v5320, %v5391
    %v5424 = vsub.f32 %v5321, %v5392
    %v5425 = vsub.f32 %v5322, %v5393
    %v5426 = vsub.f32 %v5323, %v5394
    %v5427 = vsub.f32 %v5324, %v5395
    %v5428 = vmul.f32 %v5412, %v5412
    %v5429 = vmul.f32 %v5413, %v5413
    %v5430 = vmul.f32 %v5414, %v5414
    %v5431 = vmul.f32 %v5415, %v5415
    %v5432 = vmul.f32 %v5416, %v5416
    %v5433 = vmul.f32 %v5417, %v5417
    %v5434 = vmul.f32 %v5418, %v5418
    %v5435 = vmul.f32 %v5419, %v5419
    %v5436 = vmul.f32 %v5420, %v5420
    %v5437 = vmul.f32 %v5421, %v5421
    %v5438 = vmul.f32 %v5422, %v5422
    %v5439 = vmul.f32 %v5423, %v5423
    %v5440 = vmul.f32 %v5424, %v5424
    %v5441 = vmul.f32 %v5425, %v5425
    %v5442 = vmul.f32 %v5426, %v5426
    %v5443 = vmul.f32 %v5427, %v5427
    %v5460 = vrot.slane %v5429, 7
    %v5461 = vsel %vm1991, %v5460, %v5428
    %v5462 = vrot.slane %v5430, 6
    %v5463 = vsel %vm1993, %v5462, %v5461
    %v5464 = vrot.slane %v5431, 5
    %v5465 = vsel %vm1995, %v5464, %v5463
    %v5466 = vrot.slane %v5432, 4
    %v5467 = vsel %vm1997, %v5466, %v5465
    %v5468 = vrot.slane %v5433, 3
    %v5469 = vsel %vm1999, %v5468, %v5467
    %v5470 = vrot.slane %v5434, 2
    %v5471 = vsel %vm2001, %v5470, %v5469
    %v5472 = vrot.slane %v5435, 1
    %v5473 = vsel %vm2003, %v5472, %v5471
    %v5474 = vrot.slane %v5437, 7
    %v5475 = vsel %vm1991, %v5474, %v5436
    %v5476 = vrot.slane %v5438, 6
    %v5477 = vsel %vm1993, %v5476, %v5475
    %v5478 = vrot.slane %v5439, 5
    %v5479 = vsel %vm1995, %v5478, %v5477
    %v5480 = vrot.slane %v5440, 4
    %v5481 = vsel %vm1997, %v5480, %v5479
    %v5482 = vrot.slane %v5441, 3
    %v5483 = vsel %vm1999, %v5482, %v5481
    %v5484 = vrot.slane %v5442, 2
    %v5485 = vsel %vm2001, %v5484, %v5483
    %v5486 = vrot.slane %v5443, 1
    %v5487 = vsel %vm2003, %v5486, %v5485
    %v5490 = vsel %vm607, %v5473, 0.0
    %5491 = vadd.xlane.f32.xlu0 %v5490
    %v5492 = vpop.xlane.xlu0 %5491
    %v5493 = vsel %vm607, %v5487, 0.0
    %5494 = vadd.xlane.f32.xlu0 %v5493
    %v5495 = vpop.xlane.xlu0 %5494
    %v5496 = vmul.f32 %v5492, %v5377
    %v5497 = vmul.f32 %v5495, %v5377
    %v5498 = vadd.f32 %v5496, 1e-05
    %v5499 = vadd.f32 %v5497, 1e-05
    %v5500 = vrsqrt.pop %v5498
    %v5501 = vrsqrt.pop %v5499
    %v5504 = vrot.slane %v5500, 1
    %v5505 = vrot.slane %v5500, 2
    %v5506 = vrot.slane %v5500, 3
    %v5507 = vrot.slane %v5500, 4
    %v5508 = vrot.slane %v5500, 5
    %v5509 = vrot.slane %v5500, 6
    %v5510 = vrot.slane %v5500, 7
    %v5511 = vrot.slane %v5501, 1
    %v5512 = vrot.slane %v5501, 2
    %v5513 = vrot.slane %v5501, 3
    %v5514 = vrot.slane %v5501, 4
    %v5515 = vrot.slane %v5501, 5
    %v5516 = vrot.slane %v5501, 6
    %v5517 = vrot.slane %v5501, 7
    %v5534 = vmul.f32 %v5412, %v5500
    %v5535 = vmul.f32 %v5413, %v5504
    %v5536 = vmul.f32 %v5414, %v5505
    %v5537 = vmul.f32 %v5415, %v5506
    %v5538 = vmul.f32 %v5416, %v5507
    %v5539 = vmul.f32 %v5417, %v5508
    %v5540 = vmul.f32 %v5418, %v5509
    %v5541 = vmul.f32 %v5419, %v5510
    %v5542 = vmul.f32 %v5420, %v5501
    %v5543 = vmul.f32 %v5421, %v5511
    %v5544 = vmul.f32 %v5422, %v5512
    %v5545 = vmul.f32 %v5423, %v5513
    %v5546 = vmul.f32 %v5424, %v5514
    %v5547 = vmul.f32 %v5425, %v5515
    %v5548 = vmul.f32 %v5426, %v5516
    %v5549 = vmul.f32 %v5427, %v5517
    %v5550 = vld [vmem:[%s14] sm:$0x1]
    %v5552 = vlaneseq
    %v5553 = vshrl.u32 %v5552, 7
    %v5554 = vsub.s32 0, %v5553
    %v5555 = vrot.slane %v5550, %v5554
    %v5557 = vmul.f32 %v5534, %v5555
    %v5558 = vmul.f32 %v5535, %v5555
    %v5559 = vmul.f32 %v5536, %v5555
    %v5560 = vmul.f32 %v5537, %v5555
    %v5561 = vmul.f32 %v5538, %v5555
    %v5562 = vmul.f32 %v5539, %v5555
    %v5563 = vmul.f32 %v5540, %v5555
    %v5564 = vmul.f32 %v5541, %v5555
    %v5565 = vmul.f32 %v5542, %v5555
    %v5566 = vmul.f32 %v5543, %v5555
    %v5567 = vmul.f32 %v5544, %v5555
    %v5568 = vmul.f32 %v5545, %v5555
    %v5569 = vmul.f32 %v5546, %v5555
    %v5570 = vmul.f32 %v5547, %v5555
    %v5571 = vmul.f32 %v5548, %v5555
    %v5572 = vmul.f32 %v5549, %v5555
    %v5573 = vld [vmem:[%s15] sm:$0x1]
    %v5575 = vlaneseq
    %v5576 = vshrl.u32 %v5575, 7
    %v5577 = vsub.s32 0, %v5576
    %v5578 = vrot.slane %v5573, %v5577
    %v5580 = vadd.f32 %v5557, %v5578
    %v5581 = vadd.f32 %v5558, %v5578
    %v5582 = vadd.f32 %v5559, %v5578
    %v5583 = vadd.f32 %v5560, %v5578
    %v5584 = vadd.f32 %v5561, %v5578
    %v5585 = vadd.f32 %v5562, %v5578
    %v5586 = vadd.f32 %v5563, %v5578
    %v5587 = vadd.f32 %v5564, %v5578
    %v5588 = vadd.f32 %v5565, %v5578
    %v5589 = vadd.f32 %v5566, %v5578
    %v5590 = vadd.f32 %v5567, %v5578
    %v5591 = vadd.f32 %v5568, %v5578
    %v5592 = vadd.f32 %v5569, %v5578
    %v5593 = vadd.f32 %v5570, %v5578
    %v5594 = vadd.f32 %v5571, %v5578
    %v5595 = vadd.f32 %v5572, %v5578
    %v5596 = vld [vmem:[%s16] sm:$0xff]
    %v5597 = vld [vmem:[%s16 + $0x8] sm:$0xff]
    %v5598 = vld [vmem:[%s16 + $0x10] sm:$0xff]
    %v5599 = vld [vmem:[%s16 + $0x18] sm:$0xff]
    %v5600 = vld [vmem:[%s17] sm:$0x1]
    %v5602 = vlaneseq
    %v5603 = vshrl.u32 %v5602, 7
    %v5604 = vsub.s32 0, %v5603
    %v5605 = vrot.slane %v5600, %v5604
    %v5623 = vrot.slane %v5581, 7
    %v5624 = vsel %vm1991, %v5623, %v5580
    %v5625 = vrot.slane %v5582, 6
    %v5626 = vsel %vm1993, %v5625, %v5624
    %v5627 = vrot.slane %v5583, 5
    %v5628 = vsel %vm1995, %v5627, %v5626
    %v5629 = vrot.slane %v5584, 4
    %v5630 = vsel %vm1997, %v5629, %v5628
    %v5631 = vrot.slane %v5585, 3
    %v5632 = vsel %vm1999, %v5631, %v5630
    %v5633 = vrot.slane %v5586, 2
    %v5634 = vsel %vm2001, %v5633, %v5632
    %v5635 = vrot.slane %v5587, 1
    %v5636 = vsel %vm2003, %v5635, %v5634
    %v5637 = vrot.slane %v5589, 7
    %v5638 = vsel %vm1991, %v5637, %v5588
    %v5639 = vrot.slane %v5590, 6
    %v5640 = vsel %vm1993, %v5639, %v5638
    %v5641 = vrot.slane %v5591, 5
    %v5642 = vsel %vm1995, %v5641, %v5640
    %v5643 = vrot.slane %v5592, 4
    %v5644 = vsel %vm1997, %v5643, %v5642
    %v5645 = vrot.slane %v5593, 3
    %v5646 = vsel %vm1999, %v5645, %v5644
    %v5647 = vrot.slane %v5594, 2
    %v5648 = vsel %vm2001, %v5647, %v5646
    %v5649 = vrot.slane %v5595, 1
    %v5650 = vsel %vm2003, %v5649, %v5648
    %v5651 = vsel %vm607, %v5636, 0
    %v5653 = vsel %vm607, %v5650, 0
    %5655 = vmatprep.subr.mxu0 0.0
    %5656 = vmatpush1.msra.mxu0 0.0
    %5657 = vmatprep.subr.mxu0 0.0
    %5658 = vmatpush1.msra.mxu0 0.0
    %5659 = vmatprep.subr.mxu0 0.0
    %5660 = vmatpush1.msra.mxu0 0.0
    %5661 = vmatprep.subr.mxu0 0.0
    %5662 = vmatpush1.msra.mxu0 0.0
    %5663 = vmatprep.subr.mxu0 0.0
    %5664 = vmatpush1.msra.mxu0 0.0
    %5665 = vmatprep.subr.mxu0 0.0
    %5666 = vmatpush1.msra.mxu0 0.0
    %5667 = vmatprep.subr.mxu0 0.0
    %5668 = vmatpush1.msra.mxu0 0.0
    %5669 = vmatprep.subr.mxu0 0.0
    %5670 = vmatpush1.msra.mxu0 0.0
    %5671 = vmatprep.subr.mxu0 0.0
    %5672 = vmatpush1.msra.mxu0 0.0
    %5673 = vmatprep.subr.mxu0 0.0
    %5674 = vmatpush1.msra.mxu0 0.0
    %5675 = vmatprep.subr.mxu0 0.0
    %5676 = vmatpush1.msra.mxu0 0.0
    %5677 = vmatprep.subr.mxu0 0.0
    %5678 = vmatpush1.msra.mxu0 0.0
    %5679 = vmatprep.subr.mxu0 0.0
    %5680 = vmatpush1.msra.mxu0 %v5599
    %5681 = vmatprep.subr.mxu0 0.0
    %5682 = vmatpush1.msra.mxu0 %v5598
    %5683 = vmatprep.subr.mxu0 0.0
    %5684 = vmatpush1.msra.mxu0 %v5597
    %5685 = vmatprep.subr.mxu0 0.0
    %5686 = vmatpush1.msra.mxu0 %v5596
    %5687 = vmatprep.subr.mxu0 0.0
    %5688 = vmatpush2.msra.mxu0 0.0
    %5689 = vmatprep.subr.mxu0 0.0
    %5690 = vmatpush2.msra.mxu0 0.0
    %5691 = vmatprep.subr.mxu0 0.0
    %5692 = vmatpush2.msra.mxu0 0.0
    %5693 = vmatprep.subr.mxu0 0.0
    %5694 = vmatpush2.msra.mxu0 0.0
    %5695 = vmatprep.subr.mxu0 0.0
    %5696 = vmatpush2.msra.mxu0 0.0
    %5697 = vmatprep.subr.mxu0 0.0
    %5698 = vmatpush2.msra.mxu0 0.0
    %5699 = vmatprep.subr.mxu0 0.0
    %5700 = vmatpush2.msra.mxu0 0.0
    %5701 = vmatprep.subr.mxu0 0.0
    %5702 = vmatpush2.msra.mxu0 0.0
    %5703 = vmatprep.subr.mxu0 0.0
    %5704 = vmatpush2.msra.mxu0 0.0
    %5705 = vmatprep.subr.mxu0 0.0
    %5706 = vmatpush2.msra.mxu0 0.0
    %5707 = vmatprep.subr.mxu0 0.0
    %5708 = vmatpush2.msra.mxu0 0.0
    %5709 = vmatprep.subr.mxu0 0.0
    %5710 = vmatpush2.msra.mxu0 0.0
    %5711 = vmatprep.subr.mxu0 0.0
    %5712 = vmatpush2.msra.mxu0 0.0
    %5713 = vmatprep.subr.mxu0 0.0
    %5714 = vmatpush2.msra.mxu0 0.0
    %5715 = vmatprep.subr.mxu0 0.0
    %5716 = vmatpush2.msra.mxu0 0.0
    %5717 = vmatprep.subr.mxu0 0.0
    %5718 = vmatpush2.msra.mxu0 0.0
    %5719 = vmatprep.mubr.f32.mxu0 0.0
    %5720 = vmatmul.mubr.f32.gmra.mxu0 %v5651
    %v5721 = vpop.f32.mrf.mxu0
    %v5722 = vadd.f32 %v5605, %v5721
    %v5723 = vpop.f32.mrf.mxu0
    %5724 = vmatprep.mubr.f32.mxu0 0.0
    %5725 = vmatmul.mubr.f32.gmra.mxu0 %v5653
    %v5726 = vpop.f32.mrf.mxu0
    %v5727 = vadd.f32 %v5605, %v5726
    %v5728 = vpop.f32.mrf.mxu0
    %5729 = vdwg.mxu0
    %v5730 = vmax.f32 %v5722, 0.0
    %v5731 = vmax.f32 %v5727, 0.0
    %v5732 = vld [vmem:[%s18] sm:$0xff]
    %v5733 = vld [vmem:[%s18 + $0x8] sm:$0xff]
    %v5734 = vld [vmem:[%s18 + $0x10] sm:$0xff]
    %v5735 = vld [vmem:[%s18 + $0x18] sm:$0xff]
    %v5736 = vld [vmem:[%s19] sm:$0x1]
    %v5738 = vlaneseq
    %v5739 = vshrl.u32 %v5738, 7
    %v5740 = vsub.s32 0, %v5739
    %v5741 = vrot.slane %v5736, %v5740
    %v5744 = vsel %vm607, %v5730, 0
    %v5747 = vsel %vm607, %v5731, 0
    %5749 = vmatprep.subr.mxu0 0.0
    %5750 = vmatpush1.msra.mxu0 0.0
    %5751 = vmatprep.subr.mxu0 0.0
    %5752 = vmatpush1.msra.mxu0 0.0
    %5753 = vmatprep.subr.mxu0 0.0
    %5754 = vmatpush1.msra.mxu0 0.0
    %5755 = vmatprep.subr.mxu0 0.0
    %5756 = vmatpush1.msra.mxu0 0.0
    %5757 = vmatprep.subr.mxu0 0.0
    %5758 = vmatpush1.msra.mxu0 0.0
    %5759 = vmatprep.subr.mxu0 0.0
    %5760 = vmatpush1.msra.mxu0 0.0
    %5761 = vmatprep.subr.mxu0 0.0
    %5762 = vmatpush1.msra.mxu0 0.0
    %5763 = vmatprep.subr.mxu0 0.0
    %5764 = vmatpush1.msra.mxu0 0.0
    %5765 = vmatprep.subr.mxu0 0.0
    %5766 = vmatpush1.msra.mxu0 0.0
    %5767 = vmatprep.subr.mxu0 0.0
    %5768 = vmatpush1.msra.mxu0 0.0
    %5769 = vmatprep.subr.mxu0 0.0
    %5770 = vmatpush1.msra.mxu0 0.0
    %5771 = vmatprep.subr.mxu0 0.0
    %5772 = vmatpush1.msra.mxu0 0.0
    %5773 = vmatprep.subr.mxu0 0.0
    %5774 = vmatpush1.msra.mxu0 %v5735
    %5775 = vmatprep.subr.mxu0 0.0
    %5776 = vmatpush1.msra.mxu0 %v5734
    %5777 = vmatprep.subr.mxu0 0.0
    %5778 = vmatpush1.msra.mxu0 %v5733
    %5779 = vmatprep.subr.mxu0 0.0
    %5780 = vmatpush1.msra.mxu0 %v5732
    %5781 = vmatprep.subr.mxu0 0.0
    %5782 = vmatpush2.msra.mxu0 0.0
    %5783 = vmatprep.subr.mxu0 0.0
    %5784 = vmatpush2.msra.mxu0 0.0
    %5785 = vmatprep.subr.mxu0 0.0
    %5786 = vmatpush2.msra.mxu0 0.0
    %5787 = vmatprep.subr.mxu0 0.0
    %5788 = vmatpush2.msra.mxu0 0.0
    %5789 = vmatprep.subr.mxu0 0.0
    %5790 = vmatpush2.msra.mxu0 0.0
    %5791 = vmatprep.subr.mxu0 0.0
    %5792 = vmatpush2.msra.mxu0 0.0
    %5793 = vmatprep.subr.mxu0 0.0
    %5794 = vmatpush2.msra.mxu0 0.0
    %5795 = vmatprep.subr.mxu0 0.0
    %5796 = vmatpush2.msra.mxu0 0.0
    %5797 = vmatprep.subr.mxu0 0.0
    %5798 = vmatpush2.msra.mxu0 0.0
    %5799 = vmatprep.subr.mxu0 0.0
    %5800 = vmatpush2.msra.mxu0 0.0
    %5801 = vmatprep.subr.mxu0 0.0
    %5802 = vmatpush2.msra.mxu0 0.0
    %5803 = vmatprep.subr.mxu0 0.0
    %5804 = vmatpush2.msra.mxu0 0.0
    %5805 = vmatprep.subr.mxu0 0.0
    %5806 = vmatpush2.msra.mxu0 0.0
    %5807 = vmatprep.subr.mxu0 0.0
    %5808 = vmatpush2.msra.mxu0 0.0
    %5809 = vmatprep.subr.mxu0 0.0
    %5810 = vmatpush2.msra.mxu0 0.0
    %5811 = vmatprep.subr.mxu0 0.0
    %5812 = vmatpush2.msra.mxu0 0.0
    %5813 = vmatprep.mubr.f32.mxu0 0.0
    %5814 = vmatmul.mubr.f32.gmra.mxu0 %v5744
    %v5815 = vpop.f32.mrf.mxu0
    %v5816 = vadd.f32 %v5741, %v5815
    %v5817 = vpop.f32.mrf.mxu0
    %5818 = vmatprep.mubr.f32.mxu0 0.0
    %5819 = vmatmul.mubr.f32.gmra.mxu0 %v5747
    %v5820 = vpop.f32.mrf.mxu0
    %v5821 = vadd.f32 %v5741, %v5820
    %v5822 = vpop.f32.mrf.mxu0
    %5823 = vdwg.mxu0
    %v5826 = vrot.slane %v5816, 1
    %v5827 = vrot.slane %v5816, 2
    %v5828 = vrot.slane %v5816, 3
    %v5829 = vrot.slane %v5816, 4
    %v5830 = vrot.slane %v5816, 5
    %v5831 = vrot.slane %v5816, 6
    %v5832 = vrot.slane %v5816, 7
    %v5833 = vrot.slane %v5821, 1
    %v5834 = vrot.slane %v5821, 2
    %v5835 = vrot.slane %v5821, 3
    %v5836 = vrot.slane %v5821, 4
    %v5837 = vrot.slane %v5821, 5
    %v5838 = vrot.slane %v5821, 6
    %v5839 = vrot.slane %v5821, 7
    %v5856 = vadd.f32 %v5580, %v5816
    %v5857 = vadd.f32 %v5581, %v5826
    %v5858 = vadd.f32 %v5582, %v5827
    %v5859 = vadd.f32 %v5583, %v5828
    %v5860 = vadd.f32 %v5584, %v5829
    %v5861 = vadd.f32 %v5585, %v5830
    %v5862 = vadd.f32 %v5586, %v5831
    %v5863 = vadd.f32 %v5587, %v5832
    %v5864 = vadd.f32 %v5588, %v5821
    %v5865 = vadd.f32 %v5589, %v5833
    %v5866 = vadd.f32 %v5590, %v5834
    %v5867 = vadd.f32 %v5591, %v5835
    %v5868 = vadd.f32 %v5592, %v5836
    %v5869 = vadd.f32 %v5593, %v5837
    %v5870 = vadd.f32 %v5594, %v5838
    %v5871 = vadd.f32 %v5595, %v5839
    %v5888 = vrot.slane %v5857, 7
    %v5889 = vsel %vm1991, %v5888, %v5856
    %v5890 = vrot.slane %v5858, 6
    %v5891 = vsel %vm1993, %v5890, %v5889
    %v5892 = vrot.slane %v5859, 5
    %v5893 = vsel %vm1995, %v5892, %v5891
    %v5894 = vrot.slane %v5860, 4
    %v5895 = vsel %vm1997, %v5894, %v5893
    %v5896 = vrot.slane %v5861, 3
    %v5897 = vsel %vm1999, %v5896, %v5895
    %v5898 = vrot.slane %v5862, 2
    %v5899 = vsel %vm2001, %v5898, %v5897
    %v5900 = vrot.slane %v5863, 1
    %v5901 = vsel %vm2003, %v5900, %v5899
    %v5902 = vrot.slane %v5865, 7
    %v5903 = vsel %vm1991, %v5902, %v5864
    %v5904 = vrot.slane %v5866, 6
    %v5905 = vsel %vm1993, %v5904, %v5903
    %v5906 = vrot.slane %v5867, 5
    %v5907 = vsel %vm1995, %v5906, %v5905
    %v5908 = vrot.slane %v5868, 4
    %v5909 = vsel %vm1997, %v5908, %v5907
    %v5910 = vrot.slane %v5869, 3
    %v5911 = vsel %vm1999, %v5910, %v5909
    %v5912 = vrot.slane %v5870, 2
    %v5913 = vsel %vm2001, %v5912, %v5911
    %v5914 = vrot.slane %v5871, 1
    %v5915 = vsel %vm2003, %v5914, %v5913
    %v5918 = vsel %vm607, %v5901, 0.0
    %5919 = vadd.xlane.f32.xlu0 %v5918
    %v5920 = vpop.xlane.xlu0 %5919
    %v5921 = vsel %vm607, %v5915, 0.0
    %5922 = vadd.xlane.f32.xlu0 %v5921
    %v5923 = vpop.xlane.xlu0 %5922
    %v5924 = vmul.f32 %v5920, %v5377
    %v5925 = vmul.f32 %v5923, %v5377
    %v5928 = vrot.slane %v5924, 1
    %v5929 = vrot.slane %v5924, 2
    %v5930 = vrot.slane %v5924, 3
    %v5931 = vrot.slane %v5924, 4
    %v5932 = vrot.slane %v5924, 5
    %v5933 = vrot.slane %v5924, 6
    %v5934 = vrot.slane %v5924, 7
    %v5935 = vrot.slane %v5925, 1
    %v5936 = vrot.slane %v5925, 2
    %v5937 = vrot.slane %v5925, 3
    %v5938 = vrot.slane %v5925, 4
    %v5939 = vrot.slane %v5925, 5
    %v5940 = vrot.slane %v5925, 6
    %v5941 = vrot.slane %v5925, 7
    %v5958 = vsub.f32 %v5856, %v5924
    %v5959 = vsub.f32 %v5857, %v5928
    %v5960 = vsub.f32 %v5858, %v5929
    %v5961 = vsub.f32 %v5859, %v5930
    %v5962 = vsub.f32 %v5860, %v5931
    %v5963 = vsub.f32 %v5861, %v5932
    %v5964 = vsub.f32 %v5862, %v5933
    %v5965 = vsub.f32 %v5863, %v5934
    %v5966 = vsub.f32 %v5864, %v5925
    %v5967 = vsub.f32 %v5865, %v5935
    %v5968 = vsub.f32 %v5866, %v5936
    %v5969 = vsub.f32 %v5867, %v5937
    %v5970 = vsub.f32 %v5868, %v5938
    %v5971 = vsub.f32 %v5869, %v5939
    %v5972 = vsub.f32 %v5870, %v5940
    %v5973 = vsub.f32 %v5871, %v5941
    %v5974 = vmul.f32 %v5958, %v5958
    %v5975 = vmul.f32 %v5959, %v5959
    %v5976 = vmul.f32 %v5960, %v5960
    %v5977 = vmul.f32 %v5961, %v5961
    %v5978 = vmul.f32 %v5962, %v5962
    %v5979 = vmul.f32 %v5963, %v5963
    %v5980 = vmul.f32 %v5964, %v5964
    %v5981 = vmul.f32 %v5965, %v5965
    %v5982 = vmul.f32 %v5966, %v5966
    %v5983 = vmul.f32 %v5967, %v5967
    %v5984 = vmul.f32 %v5968, %v5968
    %v5985 = vmul.f32 %v5969, %v5969
    %v5986 = vmul.f32 %v5970, %v5970
    %v5987 = vmul.f32 %v5971, %v5971
    %v5988 = vmul.f32 %v5972, %v5972
    %v5989 = vmul.f32 %v5973, %v5973
    %v6006 = vrot.slane %v5975, 7
    %v6007 = vsel %vm1991, %v6006, %v5974
    %v6008 = vrot.slane %v5976, 6
    %v6009 = vsel %vm1993, %v6008, %v6007
    %v6010 = vrot.slane %v5977, 5
    %v6011 = vsel %vm1995, %v6010, %v6009
    %v6012 = vrot.slane %v5978, 4
    %v6013 = vsel %vm1997, %v6012, %v6011
    %v6014 = vrot.slane %v5979, 3
    %v6015 = vsel %vm1999, %v6014, %v6013
    %v6016 = vrot.slane %v5980, 2
    %v6017 = vsel %vm2001, %v6016, %v6015
    %v6018 = vrot.slane %v5981, 1
    %v6019 = vsel %vm2003, %v6018, %v6017
    %v6020 = vrot.slane %v5983, 7
    %v6021 = vsel %vm1991, %v6020, %v5982
    %v6022 = vrot.slane %v5984, 6
    %v6023 = vsel %vm1993, %v6022, %v6021
    %v6024 = vrot.slane %v5985, 5
    %v6025 = vsel %vm1995, %v6024, %v6023
    %v6026 = vrot.slane %v5986, 4
    %v6027 = vsel %vm1997, %v6026, %v6025
    %v6028 = vrot.slane %v5987, 3
    %v6029 = vsel %vm1999, %v6028, %v6027
    %v6030 = vrot.slane %v5988, 2
    %v6031 = vsel %vm2001, %v6030, %v6029
    %v6032 = vrot.slane %v5989, 1
    %v6033 = vsel %vm2003, %v6032, %v6031
    %v6036 = vsel %vm607, %v6019, 0.0
    %6037 = vadd.xlane.f32.xlu0 %v6036
    %v6038 = vpop.xlane.xlu0 %6037
    %v6039 = vsel %vm607, %v6033, 0.0
    %6040 = vadd.xlane.f32.xlu0 %v6039
    %v6041 = vpop.xlane.xlu0 %6040
    %v6042 = vmul.f32 %v6038, %v5377
    %v6043 = vmul.f32 %v6041, %v5377
    %v6044 = vadd.f32 %v6042, 1e-05
    %v6045 = vadd.f32 %v6043, 1e-05
    %v6046 = vrsqrt.pop %v6044
    %v6047 = vrsqrt.pop %v6045
    %v6050 = vrot.slane %v6046, 1
    %v6051 = vrot.slane %v6046, 2
    %v6052 = vrot.slane %v6046, 3
    %v6053 = vrot.slane %v6046, 4
    %v6054 = vrot.slane %v6046, 5
    %v6055 = vrot.slane %v6046, 6
    %v6056 = vrot.slane %v6046, 7
    %v6057 = vrot.slane %v6047, 1
    %v6058 = vrot.slane %v6047, 2
    %v6059 = vrot.slane %v6047, 3
    %v6060 = vrot.slane %v6047, 4
    %v6061 = vrot.slane %v6047, 5
    %v6062 = vrot.slane %v6047, 6
    %v6063 = vrot.slane %v6047, 7
    %v6080 = vmul.f32 %v5958, %v6046
    %v6081 = vmul.f32 %v5959, %v6050
    %v6082 = vmul.f32 %v5960, %v6051
    %v6083 = vmul.f32 %v5961, %v6052
    %v6084 = vmul.f32 %v5962, %v6053
    %v6085 = vmul.f32 %v5963, %v6054
    %v6086 = vmul.f32 %v5964, %v6055
    %v6087 = vmul.f32 %v5965, %v6056
    %v6088 = vmul.f32 %v5966, %v6047
    %v6089 = vmul.f32 %v5967, %v6057
    %v6090 = vmul.f32 %v5968, %v6058
    %v6091 = vmul.f32 %v5969, %v6059
    %v6092 = vmul.f32 %v5970, %v6060
    %v6093 = vmul.f32 %v5971, %v6061
    %v6094 = vmul.f32 %v5972, %v6062
    %v6095 = vmul.f32 %v5973, %v6063
    %v6096 = vld [vmem:[%s20] sm:$0x1]
    %v6098 = vlaneseq
    %v6099 = vshrl.u32 %v6098, 7
    %v6100 = vsub.s32 0, %v6099
    %v6101 = vrot.slane %v6096, %v6100
    %v6103 = vmul.f32 %v6080, %v6101
    %v6104 = vmul.f32 %v6081, %v6101
    %v6105 = vmul.f32 %v6082, %v6101
    %v6106 = vmul.f32 %v6083, %v6101
    %v6107 = vmul.f32 %v6084, %v6101
    %v6108 = vmul.f32 %v6085, %v6101
    %v6109 = vmul.f32 %v6086, %v6101
    %v6110 = vmul.f32 %v6087, %v6101
    %v6111 = vmul.f32 %v6088, %v6101
    %v6112 = vmul.f32 %v6089, %v6101
    %v6113 = vmul.f32 %v6090, %v6101
    %v6114 = vmul.f32 %v6091, %v6101
    %v6115 = vmul.f32 %v6092, %v6101
    %v6116 = vmul.f32 %v6093, %v6101
    %v6117 = vmul.f32 %v6094, %v6101
    %v6118 = vmul.f32 %v6095, %v6101
    %v6119 = vld [vmem:[%s21] sm:$0x1]
    %v6121 = vlaneseq
    %v6122 = vshrl.u32 %v6121, 7
    %v6123 = vsub.s32 0, %v6122
    %v6124 = vrot.slane %v6119, %v6123
    %v6126 = vadd.f32 %v6103, %v6124
    %v6127 = vadd.f32 %v6104, %v6124
    %v6128 = vadd.f32 %v6105, %v6124
    %v6129 = vadd.f32 %v6106, %v6124
    %v6130 = vadd.f32 %v6107, %v6124
    %v6131 = vadd.f32 %v6108, %v6124
    %v6132 = vadd.f32 %v6109, %v6124
    %v6133 = vadd.f32 %v6110, %v6124
    %v6134 = vadd.f32 %v6111, %v6124
    %v6135 = vadd.f32 %v6112, %v6124
    %v6136 = vadd.f32 %v6113, %v6124
    %v6137 = vadd.f32 %v6114, %v6124
    %v6138 = vadd.f32 %v6115, %v6124
    %v6139 = vadd.f32 %v6116, %v6124
    %v6140 = vadd.f32 %v6117, %v6124
    %v6141 = vadd.f32 %v6118, %v6124
    %v6142 = vld [vmem:[%s23] sm:$0xff]
    %v6143 = vld [vmem:[%s23 + $0x8] sm:$0xff]
    %v6144 = vld [vmem:[%s23 + $0x10] sm:$0xff]
    %v6145 = vld [vmem:[%s23 + $0x18] sm:$0xff]
    %v6146 = vld [vmem:[%s2] sm:$0xff]
    %v6147 = vld [vmem:[%s2 + $0x8] sm:$0xff]
    %v6148 = vld [vmem:[%s24] sm:$0xff]
    %v6149 = vld [vmem:[%s24 + $0x8] sm:$0xff]
    %v6150 = vld [vmem:[%s24 + $0x10] sm:$0xff]
    %v6151 = vld [vmem:[%s24 + $0x18] sm:$0xff]
    %v6153 = vsel %vm607, %v6146, 0
    %v6156 = vsel %vm607, %v6147, 0
    %6158 = vmatprep.subr.mxu0 0.0
    %6159 = vmatpush1.msra.mxu0 0.0
    %6160 = vmatprep.subr.mxu0 0.0
    %6161 = vmatpush1.msra.mxu0 0.0
    %6162 = vmatprep.subr.mxu0 0.0
    %6163 = vmatpush1.msra.mxu0 0.0
    %6164 = vmatprep.subr.mxu0 0.0
    %6165 = vmatpush1.msra.mxu0 0.0
    %6166 = vmatprep.subr.mxu0 0.0
    %6167 = vmatpush1.msra.mxu0 0.0
    %6168 = vmatprep.subr.mxu0 0.0
    %6169 = vmatpush1.msra.mxu0 0.0
    %6170 = vmatprep.subr.mxu0 0.0
    %6171 = vmatpush1.msra.mxu0 0.0
    %6172 = vmatprep.subr.mxu0 0.0
    %6173 = vmatpush1.msra.mxu0 0.0
    %6174 = vmatprep.subr.mxu0 0.0
    %6175 = vmatpush1.msra.mxu0 0.0
    %6176 = vmatprep.subr.mxu0 0.0
    %6177 = vmatpush1.msra.mxu0 0.0
    %6178 = vmatprep.subr.mxu0 0.0
    %6179 = vmatpush1.msra.mxu0 0.0
    %6180 = vmatprep.subr.mxu0 0.0
    %6181 = vmatpush1.msra.mxu0 0.0
    %6182 = vmatprep.subr.mxu0 0.0
    %6183 = vmatpush1.msra.mxu0 %v6151
    %6184 = vmatprep.subr.mxu0 0.0
    %6185 = vmatpush1.msra.mxu0 %v6150
    %6186 = vmatprep.subr.mxu0 0.0
    %6187 = vmatpush1.msra.mxu0 %v6149
    %6188 = vmatprep.subr.mxu0 0.0
    %6189 = vmatpush1.msra.mxu0 %v6148
    %6190 = vmatprep.subr.mxu0 0.0
    %6191 = vmatpush2.msra.mxu0 0.0
    %6192 = vmatprep.subr.mxu0 0.0
    %6193 = vmatpush2.msra.mxu0 0.0
    %6194 = vmatprep.subr.mxu0 0.0
    %6195 = vmatpush2.msra.mxu0 0.0
    %6196 = vmatprep.subr.mxu0 0.0
    %6197 = vmatpush2.msra.mxu0 0.0
    %6198 = vmatprep.subr.mxu0 0.0
    %6199 = vmatpush2.msra.mxu0 0.0
    %6200 = vmatprep.subr.mxu0 0.0
    %6201 = vmatpush2.msra.mxu0 0.0
    %6202 = vmatprep.subr.mxu0 0.0
    %6203 = vmatpush2.msra.mxu0 0.0
    %6204 = vmatprep.subr.mxu0 0.0
    %6205 = vmatpush2.msra.mxu0 0.0
    %6206 = vmatprep.subr.mxu0 0.0
    %6207 = vmatpush2.msra.mxu0 0.0
    %6208 = vmatprep.subr.mxu0 0.0
    %6209 = vmatpush2.msra.mxu0 0.0
    %6210 = vmatprep.subr.mxu0 0.0
    %6211 = vmatpush2.msra.mxu0 0.0
    %6212 = vmatprep.subr.mxu0 0.0
    %6213 = vmatpush2.msra.mxu0 0.0
    %6214 = vmatprep.subr.mxu0 0.0
    %6215 = vmatpush2.msra.mxu0 0.0
    %6216 = vmatprep.subr.mxu0 0.0
    %6217 = vmatpush2.msra.mxu0 0.0
    %6218 = vmatprep.subr.mxu0 0.0
    %6219 = vmatpush2.msra.mxu0 0.0
    %6220 = vmatprep.subr.mxu0 0.0
    %6221 = vmatpush2.msra.mxu0 0.0
    %6222 = vmatprep.mubr.f32.mxu0 0.0
    %6223 = vmatmul.mubr.f32.gmra.mxu0 %v6153
    %v6224 = vpop.f32.mrf.mxu0
    %v6225 = vadd.f32 0.0, %v6224
    %v6226 = vpop.f32.mrf.mxu0
    %6227 = vmatprep.mubr.f32.mxu0 0.0
    %6228 = vmatmul.mubr.f32.gmra.mxu0 %v6156
    %v6229 = vpop.f32.mrf.mxu0
    %v6230 = vadd.f32 0.0, %v6229
    %v6231 = vpop.f32.mrf.mxu0
    %6232 = vdwg.mxu0
    %v6249 = vrot.slane %v6127, 7
    %v6250 = vsel %vm1991, %v6249, %v6126
    %v6251 = vrot.slane %v6128, 6
    %v6252 = vsel %vm1993, %v6251, %v6250
    %v6253 = vrot.slane %v6129, 5
    %v6254 = vsel %vm1995, %v6253, %v6252
    %v6255 = vrot.slane %v6130, 4
    %v6256 = vsel %vm1997, %v6255, %v6254
    %v6257 = vrot.slane %v6131, 3
    %v6258 = vsel %vm1999, %v6257, %v6256
    %v6259 = vrot.slane %v6132, 2
    %v6260 = vsel %vm2001, %v6259, %v6258
    %v6261 = vrot.slane %v6133, 1
    %v6262 = vsel %vm2003, %v6261, %v6260
    %v6263 = vrot.slane %v6135, 7
    %v6264 = vsel %vm1991, %v6263, %v6134
    %v6265 = vrot.slane %v6136, 6
    %v6266 = vsel %vm1993, %v6265, %v6264
    %v6267 = vrot.slane %v6137, 5
    %v6268 = vsel %vm1995, %v6267, %v6266
    %v6269 = vrot.slane %v6138, 4
    %v6270 = vsel %vm1997, %v6269, %v6268
    %v6271 = vrot.slane %v6139, 3
    %v6272 = vsel %vm1999, %v6271, %v6270
    %v6273 = vrot.slane %v6140, 2
    %v6274 = vsel %vm2001, %v6273, %v6272
    %v6275 = vrot.slane %v6141, 1
    %v6276 = vsel %vm2003, %v6275, %v6274
    %v6277 = vsel %vm607, %v6262, 0
    %v6279 = vsel %vm607, %v6276, 0
    %6281 = vmatprep.subr.mxu0 0.0
    %6282 = vmatpush1.msra.mxu0 0.0
    %6283 = vmatprep.subr.mxu0 0.0
    %6284 = vmatpush1.msra.mxu0 0.0
    %6285 = vmatprep.subr.mxu0 0.0
    %6286 = vmatpush1.msra.mxu0 0.0
    %6287 = vmatprep.subr.mxu0 0.0
    %6288 = vmatpush1.msra.mxu0 0.0
    %6289 = vmatprep.subr.mxu0 0.0
    %6290 = vmatpush1.msra.mxu0 0.0
    %6291 = vmatprep.subr.mxu0 0.0
    %6292 = vmatpush1.msra.mxu0 0.0
    %6293 = vmatprep.subr.mxu0 0.0
    %6294 = vmatpush1.msra.mxu0 0.0
    %6295 = vmatprep.subr.mxu0 0.0
    %6296 = vmatpush1.msra.mxu0 0.0
    %6297 = vmatprep.subr.mxu0 0.0
    %6298 = vmatpush1.msra.mxu0 0.0
    %6299 = vmatprep.subr.mxu0 0.0
    %6300 = vmatpush1.msra.mxu0 0.0
    %6301 = vmatprep.subr.mxu0 0.0
    %6302 = vmatpush1.msra.mxu0 0.0
    %6303 = vmatprep.subr.mxu0 0.0
    %6304 = vmatpush1.msra.mxu0 0.0
    %6305 = vmatprep.subr.mxu0 0.0
    %6306 = vmatpush1.msra.mxu0 %v6145
    %6307 = vmatprep.subr.mxu0 0.0
    %6308 = vmatpush1.msra.mxu0 %v6144
    %6309 = vmatprep.subr.mxu0 0.0
    %6310 = vmatpush1.msra.mxu0 %v6143
    %6311 = vmatprep.subr.mxu0 0.0
    %6312 = vmatpush1.msra.mxu0 %v6142
    %6313 = vmatprep.subr.mxu0 0.0
    %6314 = vmatpush2.msra.mxu0 0.0
    %6315 = vmatprep.subr.mxu0 0.0
    %6316 = vmatpush2.msra.mxu0 0.0
    %6317 = vmatprep.subr.mxu0 0.0
    %6318 = vmatpush2.msra.mxu0 0.0
    %6319 = vmatprep.subr.mxu0 0.0
    %6320 = vmatpush2.msra.mxu0 0.0
    %6321 = vmatprep.subr.mxu0 0.0
    %6322 = vmatpush2.msra.mxu0 0.0
    %6323 = vmatprep.subr.mxu0 0.0
    %6324 = vmatpush2.msra.mxu0 0.0
    %6325 = vmatprep.subr.mxu0 0.0
    %6326 = vmatpush2.msra.mxu0 0.0
    %6327 = vmatprep.subr.mxu0 0.0
    %6328 = vmatpush2.msra.mxu0 0.0
    %6329 = vmatprep.subr.mxu0 0.0
    %6330 = vmatpush2.msra.mxu0 0.0
    %6331 = vmatprep.subr.mxu0 0.0
    %6332 = vmatpush2.msra.mxu0 0.0
    %6333 = vmatprep.subr.mxu0 0.0
    %6334 = vmatpush2.msra.mxu0 0.0
    %6335 = vmatprep.subr.mxu0 0.0
    %6336 = vmatpush2.msra.mxu0 0.0
    %6337 = vmatprep.subr.mxu0 0.0
    %6338 = vmatpush2.msra.mxu0 0.0
    %6339 = vmatprep.subr.mxu0 0.0
    %6340 = vmatpush2.msra.mxu0 0.0
    %6341 = vmatprep.subr.mxu0 0.0
    %6342 = vmatpush2.msra.mxu0 0.0
    %6343 = vmatprep.subr.mxu0 0.0
    %6344 = vmatpush2.msra.mxu0 0.0
    %6345 = vmatprep.mubr.f32.mxu0 0.0
    %6346 = vmatmul.mubr.f32.gmra.mxu0 %v6277
    %v6347 = vpop.f32.mrf.mxu0
    %v6348 = vadd.f32 %v6225, %v6347
    %v6349 = vpop.f32.mrf.mxu0
    %6350 = vmatprep.mubr.f32.mxu0 0.0
    %6351 = vmatmul.mubr.f32.gmra.mxu0 %v6279
    %v6352 = vpop.f32.mrf.mxu0
    %v6353 = vadd.f32 %v6230, %v6352
    %v6354 = vpop.f32.mrf.mxu0
    %6355 = vdwg.mxu0
    %v6356 = vld [vmem:[%s1] sm:$0xff]
    %v6357 = vld [vmem:[%s1 + $0x8] sm:$0xff]
    %v6358 = vld [vmem:[%s22] sm:$0x1]
    %6360 = vset.pattern.permute.xlu0 0
    %6361 = vperm.xlu0 %6360, %v6356
    %v6362 = vpop.permute.xlu0 %6361
    %6365 = vset.pattern.permute.xlu0 0
    %6366 = vperm.xlu0 %6365, %v6357
    %v6367 = vpop.permute.xlu0 %6366
    %v6370 = vlaneseq
    %v6371 = vshrl.u32 %v6370, 7
    %v6372 = vsub.s32 0, %v6371
    %v6373 = vrot.slane %v6358, %v6372
    %v6375 = vmul.f32 %v6362, %v6373
    %v6376 = vmul.f32 %v6367, %v6373
    %v6377 = vadd.f32 %v6348, %v6375
    %v6378 = vadd.f32 %v6353, %v6376
    %v6379 = vld [vmem:[%s25] sm:$0x1]
    %v6381 = vlaneseq
    %v6382 = vshrl.u32 %v6381, 7
    %v6383 = vsub.s32 0, %v6382
    %v6384 = vrot.slane %v6379, %v6383
    %v6386 = vadd.f32 %v6377, %v6384
    %v6387 = vadd.f32 %v6378, %v6384
    %v6388 = vmax.f32 %v6386, 0.0
    %v6389 = vmax.f32 %v6387, 0.0
    %v6390 = vld [vmem:[%s26] sm:$0x1]
    %v6391 = vld [vmem:[#allocation3] sm:$0x1]
    %6393 = vset.pattern.permute.xlu0 0
    %6394 = vperm.xlu0 %6393, %v6391
    %v6395 = vpop.permute.xlu0 %6394
    %v6397 = vlaneseq
    %v6398 = vshrl.u32 %v6397, 7
    %v6399 = vsub.s32 0, %v6398
    %v6400 = vrot.slane %v6395, %v6399
    %v6402 = vsel %vm607, %v6390, 0
    %v6405 = vsel %vm607, %v6388, 0
    %v6408 = vsel %vm607, %v6389, 0
    %6410 = vmatprep.subr.mxu0 0.0
    %6411 = vmatpush1.xpose.msra.mxu0 0.0
    %6412 = vmatprep.subr.mxu0 0.0
    %6413 = vmatpush1.xpose.msra.mxu0 0.0
    %6414 = vmatprep.subr.mxu0 0.0
    %6415 = vmatpush1.xpose.msra.mxu0 0.0
    %6416 = vmatprep.subr.mxu0 0.0
    %6417 = vmatpush1.xpose.msra.mxu0 0.0
    %6418 = vmatprep.subr.mxu0 0.0
    %6419 = vmatpush1.xpose.msra.mxu0 0.0
    %6420 = vmatprep.subr.mxu0 0.0
    %6421 = vmatpush1.xpose.msra.mxu0 0.0
    %6422 = vmatprep.subr.mxu0 0.0
    %6423 = vmatpush1.xpose.msra.mxu0 0.0
    %6424 = vmatprep.subr.mxu0 0.0
    %6425 = vmatpush1.xpose.msra.mxu0 0.0
    %6426 = vmatprep.subr.mxu0 0.0
    %6427 = vmatpush1.xpose.msra.mxu0 0.0
    %6428 = vmatprep.subr.mxu0 0.0
    %6429 = vmatpush1.xpose.msra.mxu0 0.0
    %6430 = vmatprep.subr.mxu0 0.0
    %6431 = vmatpush1.xpose.msra.mxu0 0.0
    %6432 = vmatprep.subr.mxu0 0.0
    %6433 = vmatpush1.xpose.msra.mxu0 0.0
    %6434 = vmatprep.subr.mxu0 0.0
    %6435 = vmatpush1.xpose.msra.mxu0 0.0
    %6436 = vmatprep.subr.mxu0 0.0
    %6437 = vmatpush1.xpose.msra.mxu0 0.0
    %6438 = vmatprep.subr.mxu0 0.0
    %6439 = vmatpush1.xpose.msra.mxu0 %v6408
    %6440 = vmatprep.subr.mxu0 0.0
    %6441 = vmatpush1.xpose.msra.mxu0 %v6405
    %6442 = vmatprep.subr.mxu0 0.0
    %6443 = vmatpush2.xpose.msra.mxu0 0.0
    %6444 = vmatprep.subr.mxu0 0.0
    %6445 = vmatpush2.xpose.msra.mxu0 0.0
    %6446 = vmatprep.subr.mxu0 0.0
    %6447 = vmatpush2.xpose.msra.mxu0 0.0
    %6448 = vmatprep.subr.mxu0 0.0
    %6449 = vmatpush2.xpose.msra.mxu0 0.0
    %6450 = vmatprep.subr.mxu0 0.0
    %6451 = vmatpush2.xpose.msra.mxu0 0.0
    %6452 = vmatprep.subr.mxu0 0.0
    %6453 = vmatpush2.xpose.msra.mxu0 0.0
    %6454 = vmatprep.subr.mxu0 0.0
    %6455 = vmatpush2.xpose.msra.mxu0 0.0
    %6456 = vmatprep.subr.mxu0 0.0
    %6457 = vmatpush2.xpose.msra.mxu0 0.0
    %6458 = vmatprep.subr.mxu0 0.0
    %6459 = vmatpush2.xpose.msra.mxu0 0.0
    %6460 = vmatprep.subr.mxu0 0.0
    %6461 = vmatpush2.xpose.msra.mxu0 0.0
    %6462 = vmatprep.subr.mxu0 0.0
    %6463 = vmatpush2.xpose.msra.mxu0 0.0
    %6464 = vmatprep.subr.mxu0 0.0
    %6465 = vmatpush2.xpose.msra.mxu0 0.0
    %6466 = vmatprep.subr.mxu0 0.0
    %6467 = vmatpush2.xpose.msra.mxu0 0.0
    %6468 = vmatprep.subr.mxu0 0.0
    %6469 = vmatpush2.xpose.msra.mxu0 0.0
    %6470 = vmatprep.subr.mxu0 0.0
    %6471 = vmatpush2.xpose.msra.mxu0 0.0
    %6472 = vmatprep.subr.mxu0 0.0
    %6473 = vmatpush2.xpose.msra.mxu0 0.0
    %6474 = vmatprep.mubr.f32.mxu0 0.0
    %6475 = vmatmul.mubr.f32.gmra.mxu0 %v6402
    %v6476 = vpop.f32.mrf.mxu0
    %v6477 = vadd.f32 %v6400, %v6476
    %v6478 = vpop.f32.mrf.mxu0
    %6479 = vdwg.mxu0
    %vm6480 = vcmask 122880
    %6481 = vst.msk [vmem:[#allocation4] sm:$0x1] %vm6480, %v6477
    // Predicated region
    $region114: #{tpu_custom_call.1} parent=1 // pred_check
      _
    $region115: #{tpu_custom_call.1} parent=1 // pred_check_branch
      %6483 = sbr.rel (0) target = $region117
    $region116: #{tpu_custom_call.1} parent=1 // pred_region
      %s6485 = ssub.s32 16, 16
      %6486 = vsyncadd [#allocation5], %s6485
      %s6488 = sshll.u32 [#allocation4], 4
      %s6489 = int_to_ptr.vmem [resolvable:$true] %s6488
      %6491 = dma.vmem_to_hbm [thread:$0]  %s6489, 16, %s28, [#allocation5]
    $region117: #{tpu_custom_call.1} parent=1 // pred_fallthru
      _
    // Predicated region
    $region118: #{tpu_custom_call.1} parent=1 // pred_check
      _
    $region119: #{tpu_custom_call.1} parent=1 // pred_check_branch
      %6493 = sbr.rel (0) target = $region121
    $region120: #{tpu_custom_call.1} parent=1 // pred_region
      %6494 = dma.done [#allocation5], 16
    $region121: #{tpu_custom_call.1} parent=1 // pred_fallthru
      _
    %6495 = vsyncpa [#allocation5], 1

</llo_original>
